<compile_context>
chip_gen: v6e
topology: v6e:2x2x1
jax: 0.10.0
libtpu: 0.0.40
codegen_flags: <defaults>
</compile_context>

<pallas_src>
import itertools
from functools import partial

import numpy as np
import jax
import jax.numpy as jnp
from jax import lax
from jax.experimental import pallas as pl
from jax.experimental.pallas import tpu as pltpu

LANE = 128

# generation-aware VMEM budget: ~75% of physical VMEM, capped at 100 MiB
# (v7x: 64 MiB -> 48 MiB; v5e/v6e: 128 MiB -> 96 MiB); conservative fallback if query fails.
_VMEM_LIMIT = 48 * 1024 * 1024
try:
    _cap = getattr(pltpu.get_tpu_info(), "vmem_capacity_bytes", None)
    if _cap:
        _VMEM_LIMIT = min(int(_cap) * 3 // 4, 100 * 1024 * 1024)
except Exception:
    pass
TM_DEFAULT = 1024 if _VMEM_LIMIT >= (96 << 20) else 512


def _round_up(n, m):
    return ((n + m - 1) // m) * m


def _mosaic_params(ndims=1):
    return pltpu.CompilerParams(
        dimension_semantics=("parallel",) * ndims,
        vmem_limit_bytes=_VMEM_LIMIT)


# ---------------- fused linear: y = [relu](x @ w)  (scales pre-folded into w) ----------------

def _linear_kernel(x_ref, w_ref, o_ref, *, relu):
    acc = jnp.dot(x_ref[...], w_ref[...], preferred_element_type=jnp.float32)
    if relu:
        acc = jnp.maximum(acc, 0.0)
    o_ref[...] = acc.astype(o_ref.dtype)


def pallas_linear(x, w_pad, relu=False, out_dtype=jnp.float32, tm=None):
    """Row-tiled MXU matmul, bf16 operands / f32 accumulate.
    `w_pad` is pre-padded to a 128-lane slab and pre-cast to bf16 (lane-dense stores).
    Returns the full (M, Np) padded output; callers crop columns as needed."""
    M, K = x.shape
    Np = w_pad.shape[1]
    tm = tm or TM_DEFAULT
    tm = min(tm, _round_up(M, 8))
    Mp = _round_up(M, tm)
    xp = x if x.dtype == jnp.bfloat16 else x.astype(jnp.bfloat16)
    xp = jnp.pad(xp, ((0, Mp - M), (0, 0)))
    out = pl.pallas_call(
        partial(_linear_kernel, relu=relu),
        grid=(Mp // tm,),
        in_specs=[pl.BlockSpec((tm, K), lambda i: (i, 0)),
                  pl.BlockSpec((K, Np), lambda i: (0, 0))],
        out_specs=pl.BlockSpec((tm, Np), lambda i: (i, 0)),
        out_shape=jax.ShapeDtypeStruct((Mp, Np), out_dtype),
        compiler_params=_mosaic_params(1),
    )(xp, w_pad)
    return out[:M]


# --------------------------- fused (cross/self) attention kernel ---------------------------

def _attn_kernel(*refs, heads, head_dim, need_asum, self_attn, tq):
    idx = 0
    xq_ref = None
    if not self_attn:
        xq_ref = refs[idx]; idx += 1
    xkv_ref = refs[idx]; idx += 1
    bias_ref = refs[idx]; idx += 1
    wq_ref = refs[idx]; idx += 1
    wkv_ref = refs[idx]; idx += 1
    wo_ref = refs[idx]; idx += 1
    bo_ref = refs[idx]; idx += 1
    out_ref = refs[idx]; idx += 1
    asum_ref = None
    if need_asum:
        asum_ref = refs[idx]; idx += 1
    kv_ref = refs[idx]; idx += 1          # VMEM scratch: projected k|v, persists across q-tiles
    acc_ref = refs[idx]; idx += 1         # VMEM scratch: f32 output accumulator

    inner = heads * head_dim
    iq = pl.program_id(1)

    # k/v projection computed once per group (iq == 0), cached in VMEM, reused across q-tiles.
    @pl.when(iq == 0)
    def _():
        kv_ref[...] = jnp.dot(xkv_ref[0], wkv_ref[...],
                              preferred_element_type=jnp.float32).astype(jnp.bfloat16)

    if self_attn:
        # self-attention: slice the q tile out of the (already resident) kv block -> no extra DMA
        start = pl.multiple_of(iq * tq, 8)
        xq = xkv_ref[0, pl.ds(start, tq), :]
    else:
        xq = xq_ref[0]
    # softmax scale and BN scale are pre-folded into wq by the wrapper/param-prep
    q = jnp.dot(xq, wq_ref[...], preferred_element_type=jnp.float32).astype(jnp.bfloat16)

    bias = bias_ref[0]                                   # (1, Nkp) additive attention bias
    acc_ref[...] = jnp.broadcast_to(bo_ref[...], acc_ref.shape)

    for h in range(heads):
        lo, hi = h * head_dim, (h + 1) * head_dim
        k = kv_ref[:, lo:hi]                             # (Nkp, hd) bf16
        v = kv_ref[:, inner + lo:inner + hi]             # (Nkp, hd) bf16
        dots = lax.dot_general(q[:, lo:hi], k, (((1,), (1,)), ((), ())),
                               preferred_element_type=jnp.float32) + bias
        m = jnp.max(dots, axis=-1, keepdims=True)
        e = jnp.exp(dots - m)
        attn = e * pl.reciprocal(jnp.sum(e, axis=-1, keepdims=True), approx=True)
        if need_asum:
            if h == 0:
                asum_ref[0] = attn
            else:
                asum_ref[0] += attn
        oh = jnp.dot(attn.astype(jnp.bfloat16), v, preferred_element_type=jnp.float32)
        # concat-free output projection: concat_h(oh) @ Wo == sum_h oh @ Wo[h]
        acc_ref[...] += jnp.dot(oh.astype(jnp.bfloat16), wo_ref[lo:hi, :],
                                preferred_element_type=jnp.float32)

    out_ref[0] = acc_ref[...].astype(out_ref.dtype)


def pallas_attention(xkv, bias, pp, heads, head_dim, xq=None, need_asum=True, tq_max=256):
    """CrossAttention.forward (eval): returns (to_out(attn @ v) [bf16, lane-padded],
    sum_h attn [f32] or None).  xq=None -> self-attention (coarse level): xkv is DMA'd once and
    q tiles are sliced from the same block.  `bias` is the pre-combined additive mask
    (-1e4*(1-key_mask) [+ 1e4*sem]) of shape (B, Nk).
    TODO(synk): Nk is not flash-streamed; add online-softmax Nk tiling if production token counts
    make the (tq, Nk) score tiles exceed VMEM."""
    self_attn = xq is None
    B, Nk, Din = xkv.shape
    Nq = Nk if self_attn else xq.shape[1]
    inner = heads * head_dim
    Dp = pp['wo'].shape[1]

    tq = min(tq_max, _round_up(Nq, 8))
    Nqp = _round_up(Nq, tq)
    nqt = Nqp // tq
    Nkp = _round_up(Nk, LANE)
    if self_attn:
        Nkp = max(Nkp, Nqp)              # q tiles must stay inside the kv block

    xkv_p = jnp.pad(xkv.astype(jnp.bfloat16), ((0, 0), (0, Nkp - Nk), (0, 0)))
    bias_p = jnp.pad(bias.astype(jnp.float32), ((0, 0), (0, Nkp - Nk)),
                     constant_values=-10000.0)[:, None, :]

    inputs, in_specs = [], []
    if not self_attn:
        xq_p = jnp.pad(xq.astype(jnp.bfloat16), ((0, 0), (0, Nqp - Nq), (0, 0)))
        inputs.append(xq_p)
        in_specs.append(pl.BlockSpec((1, tq, Din), lambda b, i: (b, i, 0)))
    inputs += [xkv_p, bias_p, pp['wq'], pp['wkv'], pp['wo'], pp['bo']]
    in_specs += [pl.BlockSpec((1, Nkp, Din), lambda b, i: (b, 0, 0)),
                 pl.BlockSpec((1, 1, Nkp), lambda b, i: (b, 0, 0)),
                 pl.BlockSpec((Din, inner), lambda b, i: (0, 0)),
                 pl.BlockSpec((Din, 2 * inner), lambda b, i: (0, 0)),
                 pl.BlockSpec((inner, Dp), lambda b, i: (0, 0)),
                 pl.BlockSpec((1, Dp), lambda b, i: (0, 0))]

    out_specs = [pl.BlockSpec((1, tq, Dp), lambda b, i: (b, i, 0))]
    out_shapes = [jax.ShapeDtypeStruct((B, Nqp, Dp), jnp.bfloat16)]
    if need_asum:
        out_specs.append(pl.BlockSpec((1, tq, Nkp), lambda b, i: (b, i, 0)))
        out_shapes.append(jax.ShapeDtypeStruct((B, Nqp, Nkp), jnp.float32))

    res = pl.pallas_call(
        partial(_attn_kernel, heads=heads, head_dim=head_dim,
                need_asum=need_asum, self_attn=self_attn, tq=tq),
        grid=(B, nqt),
        in_specs=in_specs,
        out_specs=tuple(out_specs) if need_asum else out_specs[0],
        out_shape=tuple(out_shapes) if need_asum else out_shapes[0],
        scratch_shapes=[pltpu.VMEM((Nkp, 2 * inner), jnp.bfloat16),
                        pltpu.VMEM((tq, Dp), jnp.float32)],
        compiler_params=pltpu.CompilerParams(
            # q-tile axis is "arbitrary" so the kv scratch computed at iq==0 is always
            # valid for later tiles of the same group on the same core (megacore splits B).
            dimension_semantics=("parallel", "arbitrary"),
            vmem_limit_bytes=_VMEM_LIMIT),
    )(*inputs)
    if need_asum:
        out, asum = res
        return out[:, :Nq], asum[:, :Nq, :Nk]
    return res[:, :Nq], None


# -------- fused tail (one kernel): proj + local_pe add + BN + FFN(W1->GELU->W2) + residual --------

def _tail_kernel(cat_ref, lpe_ref, wp_ref, w1_ref, b1_ref, w2_ref, b2_ref, out_ref):
    feat = jnp.dot(cat_ref[...], wp_ref[...], preferred_element_type=jnp.float32)
    feat = feat + lpe_ref[...].astype(jnp.float32)                  # proj(cat) + local_pe
    # BN scale folded into w1; bias b1 applied here
    h = jnp.dot(feat.astype(jnp.bfloat16), w1_ref[...],
                preferred_element_type=jnp.float32) + b1_ref[...]
    # TODO(synk): exact-erf GELU replaced by the tanh approximation (Mosaic has no erf lowering);
    # tanh lands on the otherwise-idle EUP slot.
    g = 0.5 * h * (1.0 + jnp.tanh(0.7978845608028654 * (h + 0.044715 * (h * h * h))))
    ffn = jnp.dot(g.astype(jnp.bfloat16), w2_ref[...],
                  preferred_element_type=jnp.float32) + b2_ref[...]
    out_ref[...] = feat + ffn                                       # residual


def fused_tail(cat, lpe_pad, pp, dim, tm=None):
    """feature = proj(cat) + local_pe; return feature + FFN(BN(feature)) — one streaming pass."""
    M, D2 = cat.shape
    assert lpe_pad.shape[1] == LANE
    tm = tm or TM_DEFAULT
    tm = min(tm, _round_up(M, 8))
    Mp = _round_up(M, tm)
    catp = jnp.pad(cat, ((0, Mp - M), (0, 0)))
    lpep = jnp.pad(lpe_pad, ((0, Mp - M), (0, 0)))
    row128 = pl.BlockSpec((tm, LANE), lambda i: (i, 0))
    out = pl.pallas_call(
        _tail_kernel,
        grid=(Mp // tm,),
        in_specs=[pl.BlockSpec((tm, D2), lambda i: (i, 0)),
                  row128,
                  pl.BlockSpec((D2, LANE), lambda i: (0, 0)),
                  pl.BlockSpec((LANE, LANE), lambda i: (0, 0)),
                  pl.BlockSpec((1, LANE), lambda i: (0, 0)),
                  pl.BlockSpec((LANE, LANE), lambda i: (0, 0)),
                  pl.BlockSpec((1, LANE), lambda i: (0, 0))],
        out_specs=row128,
        out_shape=jax.ShapeDtypeStruct((Mp, LANE), jnp.float32),
        compiler_params=_mosaic_params(1),
    )(catp, lpep, pp['proj'], pp['ffn_w1'], pp['ffn_b1'], pp['ffn_w2'], pp['ffn_b2'])
    return out[:M, :dim]


# ----------------- host-side (static) octree index structures -----------------

def build_structures(voxel_coords):
    """Mirrors coords_generator + batch_dense/_v2 + parent_dense index logic.
    Those use data-dependent-shape ops (torch.unique/sort/masked_scatter); coordinates
    are static here, so the index structures are precomputed in numpy."""
    N = voxel_coords.shape[0]
    c2 = np.concatenate([voxel_coords[:, :1], voxel_coords[:, 1:] // 2], axis=1)
    coord_compress, kv_inv, counts2 = np.unique(c2, axis=0, return_inverse=True, return_counts=True)
    kv_inv = kv_inv.reshape(-1).astype(np.int32)
    N2 = coord_compress.shape[0]

    # coarse level: batch_dense (mode='global' -> group by batch index)
    _, batch_inv, batch_counts = np.unique(coord_compress[:, 0], return_inverse=True, return_counts=True)
    batch_inv = batch_inv.reshape(-1)
    sort = np.argsort(batch_inv, kind='stable')
    sort_inv = np.argsort(sort, kind='stable')
    G = batch_counts.shape[0]
    max_n = int(batch_counts.max())
    dmask = np.arange(max_n)[None, :] < batch_counts[:, None]          # (G, max_n)
    gidx = np.zeros(G * max_n, dtype=np.int32)
    gidx[dmask.reshape(-1)] = sort
    inds2d = gidx.reshape(G, max_n)
    orig_slot = np.flatnonzero(dmask.reshape(-1))[sort_inv].astype(np.int32)
    dkv_inds = inds2d[batch_inv].astype(np.int32)                      # (N2, max_n)
    dkv_mask = dmask.astype(np.int32)[batch_inv]                       # (N2, max_n)

    # fine level: parent_dense / batch_dense_v2 (group voxels by coarse parent)
    psort = np.argsort(kv_inv, kind='stable')
    psort_inv = np.argsort(psort, kind='stable')
    max_c = int(counts2.max())
    pmask = np.arange(max_c)[None, :] < counts2[:, None]               # (N2, max_c)
    pinfo = np.zeros(N2 * max_c, dtype=np.int32)
    pinfo[pmask.reshape(-1)] = psort
    pinfo = pinfo.reshape(N2, max_c)
    orig_slot_fine = np.flatnonzero(pmask.reshape(-1))[psort_inv].astype(np.int32)

    # local_pe: 3x3x3 submanifold-conv neighbor table; invalid neighbours point at the
    # appended zero row (index N) so no mask multiply is needed.
    coord_to_idx = {tuple(int(v) for v in c): i for i, c in enumerate(voxel_coords)}
    offsets = list(itertools.product((-1, 0, 1), repeat=3))
    nbr_idx = np.full((N, 27), N, dtype=np.int32)
    for i, c in enumerate(voxel_coords):
        for j, (dz, dy, dx) in enumerate(offsets):
            key = (int(c[0]), int(c[1]) + dz, int(c[2]) + dy, int(c[3]) + dx)
            if key in coord_to_idx:
                nbr_idx[i, j] = coord_to_idx[key]
    return dict(N=N, N2=N2, kv_inv=kv_inv, G=G, max_n=max_n, max_c=max_c,
                dmask=dmask, gidx=gidx, orig_slot=orig_slot,
                dkv_inds=dkv_inds, dkv_mask=dkv_mask,
                pmask=pmask, pinfo=pinfo, orig_slot_fine=orig_slot_fine,
                nbr_idx=nbr_idx)


# ----------------------------- parameters -----------------------------

def init_layer_params(key, dim, heads, head_dim):
    inner = heads * head_dim
    din = dim + 4
    ks = jax.random.split(key, 7)

    def lin(k, fan_in, fan_out):
        bound = 1.0 / np.sqrt(fan_in)
        return jax.random.uniform(k, (fan_in, fan_out), jnp.float32, -bound, bound)

    def attn_params(k):
        ka = jax.random.split(k, 4)
        return dict(wq=lin(ka[0], din, inner), wk=lin(ka[1], din, inner),
                    wv=lin(ka[2], din, inner), wo=lin(ka[3], inner, dim),
                    bo=jnp.zeros((1, dim), jnp.float32))

    return dict(
        top=attn_params(ks[0]),            # coarsest-level CrossAttention
        attn=attn_params(ks[1]),           # fine-level CrossAttention
        proj=lin(ks[2], 2 * dim, dim),     # Linear(dim*tree_depth, dim, bias=False)
        lpe_w1=lin(ks[3], 27 * din, dim),  # SubMConv3d(dim+4 -> dim, k=3)
        lpe_w2=lin(ks[4], 27 * dim, dim),  # SubMConv3d(dim   -> dim, k=3)
        ffn_w1=lin(ks[5], dim, 2 * dim), ffn_b1=jnp.zeros((2 * dim,), jnp.float32),
        ffn_w2=lin(ks[6], 2 * dim, dim), ffn_b2=jnp.zeros((dim,), jnp.float32),
    )


def prepare_layer_params(p, dim, heads, head_dim):
    """One-time weight prep: fold softmax scale + eval-mode BN scales into weights,
    fuse Wk|Wv, pad all outputs to 128-lane slabs, cast MXU operands to bf16."""
    bn5 = float(1.0 / np.sqrt(1.0 + 1e-5))    # BatchNorm1d default eval stats
    bn3 = float(1.0 / np.sqrt(1.0 + 1e-3))    # BatchNorm1d(eps=1e-3) eval stats
    scale = float(head_dim) ** -0.5

    def pad_cols(w):
        return jnp.pad(w, ((0, 0), (0, LANE - w.shape[1])))

    def pad_both(w):
        return jnp.pad(w, ((0, LANE - w.shape[0]), (0, LANE - w.shape[1])))

    def attn_prep(a):
        return dict(
            wq=(a['wq'] * (scale * bn5)).astype(jnp.bfloat16),
            wkv=(jnp.concatenate([a['wk'], a['wv']], axis=1) * bn5).astype(jnp.bfloat16),
            wo=pad_cols(a['wo']).astype(jnp.bfloat16),
            bo=pad_cols(a['bo']).astype(jnp.float32),
        )

    return dict(
        dim=dim,
        top=attn_prep(p['top']),
        attn=attn_prep(p['attn']),
        proj=pad_cols(p['proj']).astype(jnp.bfloat16),
        lpe_w1=pad_cols(p['lpe_w1'] * bn3).astype(jnp.bfloat16),
        lpe_w2=pad_cols(p['lpe_w2'] * bn3).astype(jnp.bfloat16),
        ffn_w1=pad_both(p['ffn_w1'] * bn5).astype(jnp.bfloat16),
        ffn_b1=pad_cols(p['ffn_b1'].reshape(1, -1)).astype(jnp.float32),
        ffn_w2=pad_both(p['ffn_w2']).astype(jnp.bfloat16),
        ffn_b2=pad_cols(p['ffn_b2'].reshape(1, -1)).astype(jnp.float32),
    )


# --------------------- one OctreeAttentionDense layer (eval) ---------------------

def octree_attention_layer(voxel_features, foremask, S, pp, heads, head_dim, topks):
    """tree_depth=2, mode='global', eval mode (no dropout / no gumbel-softmax).
    BatchNorm1d eval scales are pre-folded into the weights."""
    N, dim = voxel_features.shape
    N2, G, max_n, max_c = S['N2'], S['G'], S['max_n'], S['max_c']
    din = dim + 4

    x = jnp.concatenate([foremask, voxel_features], axis=-1)          # (N, dim+4) f32
    x_bf = x.astype(jnp.bfloat16)                                      # bf16 copy for gathers / MXU

    # ------------- process_coarse_level (2x grid, top_layer, self-attention) -------------
    kv_inv = S['kv_inv']
    qf = jax.ops.segment_max(x, kv_inv, num_segments=N2)              # scatter(reduce='max')
    fore_l = jax.ops.segment_max(foremask[:, -1], kv_inv, num_segments=N2)

    dmask_b = jnp.asarray(S['dmask'], jnp.bfloat16)[..., None]        # (G, max_n, 1)
    dense_q = qf.astype(jnp.bfloat16)[S['gidx']].reshape(G, max_n, din) * dmask_b
    key_mask = jnp.asarray(S['dmask'], jnp.float32)                   # (G, max_n)
    sem = fore_l[S['gidx']].reshape(G, max_n) * key_mask              # per-key semantic score
    # reference: -1e4*(1-attn_mask) plus -1e4*(1-(1+sem)) = +1e4*sem, pre-combined host-side
    bias_c = -10000.0 * (1.0 - key_mask) + 10000.0 * sem

    out_d, asum = pallas_attention(dense_q, bias_c, pp['top'], heads, head_dim,
                                   xq=None, need_asum=True)           # self-attention
    topk_c = topks[1]
    _, topk_idx = jax.lax.top_k(asum, topk_c)                         # (G, max_n, topk_c)

    scatter_feature = out_d[:, :, :dim].reshape(G * max_n, dim)[S['orig_slot']]  # (N2, dim) bf16
    topk_area = topk_idx.reshape(G * max_n, topk_c)[S['orig_slot']]
    ret_inds = jnp.take_along_axis(jnp.asarray(S['dkv_inds']), topk_area, axis=1)
    ret_masks = jnp.take_along_axis(jnp.asarray(S['dkv_mask']), topk_area, axis=1)
    coarse_out = scatter_feature[kv_inv]                              # (N, dim) bf16

    # ------------- process_fine_level (finest grid, attn_layer) -------------
    prev_topk = topks[1]
    kv_max = topks[1] * 3

    pinfo = jnp.asarray(S['pinfo'])                                   # (N2, max_c) child indices
    pmask_i = jnp.asarray(S['pmask'].astype(np.int32))                # (N2, max_c)
    ta_flat = ret_inds.reshape(-1)                                    # selected parents
    this_inds = pinfo[ta_flat]                                        # (N2*prev_topk, max_c)
    this_mask = pmask_i[ta_flat]
    this_mask = jnp.where(ret_masks.reshape(-1, 1) == 0, 0, this_mask)
    # rearrange '(n k) g -> n (g k)'
    this_inds = this_inds.reshape(N2, prev_topk, max_c).transpose(0, 2, 1).reshape(N2, max_c * prev_topk)
    this_mask = this_mask.reshape(N2, prev_topk, max_c).transpose(0, 2, 1).reshape(N2, max_c * prev_topk)
    # children_sample -> per-row stable compaction to kv_max tokens
    width = max_c * prev_topk
    count = jnp.sum(this_mask, axis=-1)
    order = jnp.argsort(1 - this_mask, axis=-1, stable=True)
    compact = jnp.take_along_axis(this_inds, order, axis=-1)
    if width >= kv_max:
        compact = compact[:, :kv_max]
    else:  # fewer candidate slots than kv_max -> pad to kv_max (reference max_num logic)
        compact = jnp.pad(compact, ((0, 0), (0, kv_max - width)))
    compact_mask = (jnp.arange(kv_max)[None, :] < count[:, None]).astype(jnp.float32)
    compact_inds = jnp.where(compact_mask > 0, compact, 0)

    # batch_dense_v2 over parents; fine-level CrossAttention has no semantic mask and its
    # attention-sum / top-k output is never consumed -> need_asum=False (no wasted stream).
    pmask_b = jnp.asarray(S['pmask'], jnp.bfloat16)[..., None]
    dense_fq = x_bf[S['pinfo'].reshape(-1)].reshape(N2, max_c, din) * pmask_b
    kv_feat = x_bf[compact_inds.reshape(-1)].reshape(N2, kv_max, din)
    bias_f = -10000.0 * (1.0 - compact_mask)

    out_f, _ = pallas_attention(kv_feat, bias_f, pp['attn'], heads, head_dim,
                                xq=dense_fq, need_asum=False)
    fine_out = out_f[:, :, :dim].reshape(N2 * max_c, dim)[S['orig_slot_fine']]   # (N, dim) bf16

    # ------------- combine: proj + local_pe, then FFN residual -------------
    cat = jnp.concatenate([coarse_out, fine_out], axis=-1)            # 'n c d -> n (d c)'  bf16

    # local_pe: two (SubMConv3d 3x3x3 -> BN(eps=1e-3, folded) -> ReLU) blocks.
    # Invalid neighbours index the appended zero row; gathers are bf16.
    # TODO(synk): at production voxel counts, replace the XLA 27-neighbour gathers with an
    # in-kernel DMA gather (PrefetchScalarGridSpec row tables) to avoid the 27x HBM blowup.
    nbr = jnp.asarray(S['nbr_idx']).reshape(-1)
    x_pad_b = jnp.concatenate([x_bf, jnp.zeros((1, din), jnp.bfloat16)], axis=0)
    g1 = x_pad_b[nbr].reshape(N, 27 * din)
    h1 = pallas_linear(g1, pp['lpe_w1'], relu=True, out_dtype=jnp.bfloat16)[:, :dim]
    h1_pad = jnp.concatenate([h1, jnp.zeros((1, dim), jnp.bfloat16)], axis=0)
    g2 = h1_pad[nbr].reshape(N, 27 * dim)
    lpe_pad = pallas_linear(g2, pp['lpe_w2'], relu=True, out_dtype=jnp.bfloat16)  # (N, 128) bf16

    # proj + lpe add + BN(folded) + FFN(W1 -> GELU(tanh) -> W2) + residual, single fused kernel.
    return fused_tail(cat, lpe_pad, pp, dim)


# --------------------------------- main ---------------------------------

if __name__ == "__main__":
    dim, nhead, head_dim, dropout = 28, 2, 16, 0.0
    tree_depth, topks = 3, [4, 4, 4]           # BasicBlock args; attn layers use topks[1:]
    batch_size, spatial, n_per_batch = 2, 16, 48

    # deterministic sparse voxel coordinates [b, z, y, x] on a 16^3 grid
    rng = np.random.default_rng(0)
    coords_list = []
    for b in range(batch_size):
        flat = rng.choice(spatial ** 3, size=n_per_batch, replace=False)
        zz = flat // (spatial * spatial)
        yy = (flat // spatial) % spatial
        xx = flat % spatial
        coords_list.append(np.stack([np.full(n_per_batch, b), zz, yy, xx], axis=1))
    voxel_coords = np.concatenate(coords_list, axis=0).astype(np.int64)
    N = voxel_coords.shape[0]

    S = build_structures(voxel_coords)

    key = jax.random.PRNGKey(0)
    k_feat, k_fore, k_p0, k_p1 = jax.random.split(key, 4)
    voxel_features = jax.random.normal(k_feat, (N, dim), jnp.float32)
    foremask = jax.random.uniform(k_fore, (N, 4), jnp.float32)        # foreground scores in [0, 1]

    params = [init_layer_params(k_p0, dim, nhead, head_dim),          # BasicBlock.depth == 2
              init_layer_params(k_p1, dim, nhead, head_dim)]
    # one-time weight prep (fold scales, fuse Wk|Wv, pad, cast) outside the jitted forward
    prepped = [prepare_layer_params(p, dim, nhead, head_dim) for p in params]

    @jax.jit
    def basic_block_forward(vf, fm):
        out = vf
        for pp in prepped:
            out = octree_attention_layer(out, fm, S, pp, nhead, head_dim, topks[1:])
        return out

    out = basic_block_forward(voxel_features, foremask)
    out = jax.block_until_ready(out)
    assert out.shape == (N, dim)
    assert bool(jnp.all(jnp.isfinite(out)))
    print("KERNEL_OK")
</pallas_src>

<mosaic_0001>
module attributes {stable_mosaic.version = 11 : i64} {
  func.func private @main(%arg0: i32) attributes {dimension_semantics = [#tpu.dimension_semantics<core_parallel>], iteration_bounds = array<i64: 2>, tpu.core_type = #tpu.core_type<sc_scalar_subcore>, window_params = []} {
    return
  }
}

module attributes {stable_mosaic.version = 11 : i64} {
  func.func private @main(%arg0: i32) attributes {dimension_semantics = [#tpu.dimension_semantics<core_parallel>], iteration_bounds = array<i64: 2>, tpu.core_type = #tpu.core_type<sc_scalar_subcore>, window_params = []} {
    return
  }
}

module attributes {stable_mosaic.version = 11 : i64} {
  func.func @_linear_kernel(%arg0: i32, %arg1: memref<96x864xbf16, #tpu.memory_space<vmem>>, %arg2: memref<864x128xbf16, #tpu.memory_space<vmem>>, %arg3: memref<96x128xbf16, #tpu.memory_space<vmem>>) attributes {dimension_semantics = [#tpu.dimension_semantics<parallel>], iteration_bounds = array<i64: 1>, scalar_prefetch = 0 : i64, scratch_operands = 0 : i64, tpu.core_type = #tpu.core_type<tc>, window_params = [{transform_indices = @transform_0, window_bounds = array<i64: 96, 864>}, {pipeline_mode = #tpu.pipeline_mode<synchronous>, transform_indices = @transform_1, window_bounds = array<i64: 864, 128>}, {transform_indices = @transform_2, window_bounds = array<i64: 96, 128>}]} {
    %c0 = arith.constant 0 : index
    %c0_0 = arith.constant 0 : index
    %0 = vector.load %arg1[%c0, %c0_0] : memref<96x864xbf16, #tpu.memory_space<vmem>>, vector<96x864xbf16>
    %c0_1 = arith.constant 0 : index
    %c0_2 = arith.constant 0 : index
    %1 = vector.load %arg2[%c0_1, %c0_2] : memref<864x128xbf16, #tpu.memory_space<vmem>>, vector<864x128xbf16>
    %cst = arith.constant dense<0.000000e+00> : vector<96x128xf32>
    %2 = tpu.matmul %0, %1, %cst {dimension_numbers = #tpu.dot_dimension_numbers<[1], [0], [0], [1], [0, 0, 1, 1], [], []>} : vector<96x864xbf16>, vector<864x128xbf16>, vector<96x128xf32> -> vector<96x128xf32>
    %cst_3 = arith.constant 0.000000e+00 : f32
    %3 = vector.broadcast %cst_3 : f32 to vector<96x128xf32>
    %4 = arith.maximumf %2, %3 : vector<96x128xf32>
    %5 = arith.truncf %4 : vector<96x128xf32> to vector<96x128xbf16>
    %c0_4 = arith.constant 0 : index
    %c0_5 = arith.constant 0 : index
    %6 = vector.load %arg3[%c0_4, %c0_5] : memref<96x128xbf16, #tpu.memory_space<vmem>>, vector<96x128xbf16>
    tpu.vector_store %arg3[%c0_4, %c0_5], %5 {strides = array<i32>} : memref<96x128xbf16, #tpu.memory_space<vmem>>, vector<96x128xbf16>,
    return
  }
  func.func @transform_0(%arg0: i32) -> (i32, i32) {
    %c0_i32 = arith.constant 0 : i32
    %c0_i32_0 = arith.constant 0 : i32
    return %arg0, %c0_i32 : i32, i32
  }
  func.func @transform_1(%arg0: i32) -> (i32, i32) {
    %c0_i32 = arith.constant 0 : i32
    %c0_i32_0 = arith.constant 0 : i32
    %c0_i32_1 = arith.constant 0 : i32
    return %c0_i32, %c0_i32_0 : i32, i32
  }
  func.func @transform_2(%arg0: i32) -> (i32, i32) {
    %c0_i32 = arith.constant 0 : i32
    %c0_i32_0 = arith.constant 0 : i32
    return %arg0, %c0_i32 : i32, i32
  }
}

module attributes {stable_mosaic.version = 11 : i64} {
  func.func @_linear_kernel(%arg0: i32, %arg1: memref<96x756xbf16, #tpu.memory_space<vmem>>, %arg2: memref<756x128xbf16, #tpu.memory_space<vmem>>, %arg3: memref<96x128xbf16, #tpu.memory_space<vmem>>) attributes {dimension_semantics = [#tpu.dimension_semantics<parallel>], iteration_bounds = array<i64: 1>, scalar_prefetch = 0 : i64, scratch_operands = 0 : i64, tpu.core_type = #tpu.core_type<tc>, window_params = [{transform_indices = @transform_0, window_bounds = array<i64: 96, 756>}, {pipeline_mode = #tpu.pipeline_mode<synchronous>, transform_indices = @transform_1, window_bounds = array<i64: 756, 128>}, {transform_indices = @transform_2, window_bounds = array<i64: 96, 128>}]} {
    %c0 = arith.constant 0 : index
    %c0_0 = arith.constant 0 : index
    %0 = vector.load %arg1[%c0, %c0_0] : memref<96x756xbf16, #tpu.memory_space<vmem>>, vector<96x756xbf16>
    %c0_1 = arith.constant 0 : index
    %c0_2 = arith.constant 0 : index
    %1 = vector.load %arg2[%c0_1, %c0_2] : memref<756x128xbf16, #tpu.memory_space<vmem>>, vector<756x128xbf16>
    %cst = arith.constant dense<0.000000e+00> : vector<96x128xf32>
    %2 = tpu.matmul %0, %1, %cst {dimension_numbers = #tpu.dot_dimension_numbers<[1], [0], [0], [1], [0, 0, 1, 1], [], []>} : vector<96x756xbf16>, vector<756x128xbf16>, vector<96x128xf32> -> vector<96x128xf32>
    %cst_3 = arith.constant 0.000000e+00 : f32
    %3 = vector.broadcast %cst_3 : f32 to vector<96x128xf32>
    %4 = arith.maximumf %2, %3 : vector<96x128xf32>
    %5 = arith.truncf %4 : vector<96x128xf32> to vector<96x128xbf16>
    %c0_4 = arith.constant 0 : index
    %c0_5 = arith.constant 0 : index
    %6 = vector.load %arg3[%c0_4, %c0_5] : memref<96x128xbf16, #tpu.memory_space<vmem>>, vector<96x128xbf16>
    tpu.vector_store %arg3[%c0_4, %c0_5], %5 {strides = array<i32>} : memref<96x128xbf16, #tpu.memory_space<vmem>>, vector<96x128xbf16>,
    return
  }
  func.func @transform_0(%arg0: i32) -> (i32, i32) {
    %c0_i32 = arith.constant 0 : i32
    %c0_i32_0 = arith.constant 0 : i32
    return %arg0, %c0_i32 : i32, i32
  }
  func.func @transform_1(%arg0: i32) -> (i32, i32) {
    %c0_i32 = arith.constant 0 : i32
    %c0_i32_0 = arith.constant 0 : i32
    %c0_i32_1 = arith.constant 0 : i32
    return %c0_i32, %c0_i32_0 : i32, i32
  }
  func.func @transform_2(%arg0: i32) -> (i32, i32) {
    %c0_i32 = arith.constant 0 : i32
    %c0_i32_0 = arith.constant 0 : i32
    return %arg0, %c0_i32 : i32, i32
  }
}

module attributes {stable_mosaic.version = 11 : i64} {
  func.func @_attn_kernel(%arg0: i32, %arg1: i32, %arg2: memref<1x128x32xbf16, #tpu.memory_space<vmem>>, %arg3: memref<1x1x128xf32, #tpu.memory_space<vmem>>, %arg4: memref<32x32xbf16, #tpu.memory_space<vmem>>, %arg5: memref<32x64xbf16, #tpu.memory_space<vmem>>, %arg6: memref<32x128xbf16, #tpu.memory_space<vmem>>, %arg7: memref<1x128xf32, #tpu.memory_space<vmem>>, %arg8: memref<1x48x128xbf16, #tpu.memory_space<vmem>>, %arg9: memref<1x48x128xf32, #tpu.memory_space<vmem>>, %arg10: memref<128x64xbf16, #tpu.memory_space<vmem>>, %arg11: memref<48x128xf32, #tpu.memory_space<vmem>>) attributes {dimension_semantics = [#tpu.dimension_semantics<parallel>, #tpu.dimension_semantics<arbitrary>], iteration_bounds = array<i64: 2, 1>, scalar_prefetch = 0 : i64, scratch_operands = 2 : i64, tpu.core_type = #tpu.core_type<tc>, window_params = [{transform_indices = @transform_0, window_bounds = array<i64: 1, 128, 32>}, {transform_indices = @transform_1, window_bounds = array<i64: 1, 1, 128>}, {pipeline_mode = #tpu.pipeline_mode<synchronous>, transform_indices = @transform_2, window_bounds = array<i64: 32, 32>}, {pipeline_mode = #tpu.pipeline_mode<synchronous>, transform_indices = @transform_3, window_bounds = array<i64: 32, 64>}, {pipeline_mode = #tpu.pipeline_mode<synchronous>, transform_indices = @transform_4, window_bounds = array<i64: 32, 128>}, {pipeline_mode = #tpu.pipeline_mode<synchronous>, transform_indices = @transform_5, window_bounds = array<i64: 1, 128>}, {transform_indices = @transform_6, window_bounds = array<i64: 1, 48, 128>}, {transform_indices = @transform_7, window_bounds = array<i64: 1, 48, 128>}]} {
    %c0_i32 = arith.constant 0 : i32
    %0 = arith.cmpi eq, %arg1, %c0_i32 : i32
    %1 = arith.extui %0 : i1 to i32
    %c0_i32_0 = arith.constant 0 : i32
    %2 = arith.cmpi ne, %1, %c0_i32_0 : i32
    scf.if %2 {
      %c0_52 = arith.constant 0 : index
      %c0_53 = arith.constant 0 : index
      %c0_54 = arith.constant 0 : index
      %79 = vector.load %arg2[%c0_52, %c0_53, %c0_54] : memref<1x128x32xbf16, #tpu.memory_space<vmem>>, vector<1x128x32xbf16>
      %80 = vector.shape_cast %79 : vector<1x128x32xbf16> to vector<128x32xbf16>
      %c0_55 = arith.constant 0 : index
      %c0_56 = arith.constant 0 : index
      %81 = vector.load %arg5[%c0_55, %c0_56] : memref<32x64xbf16, #tpu.memory_space<vmem>>, vector<32x64xbf16>
      %cst_57 = arith.constant dense<0.000000e+00> : vector<128x64xf32>
      %82 = tpu.matmul %80, %81, %cst_57 {dimension_numbers = #tpu.dot_dimension_numbers<[1], [0], [0], [1], [0, 0, 1, 1], [], []>} : vector<128x32xbf16>, vector<32x64xbf16>, vector<128x64xf32> -> vector<128x64xf32>
      %83 = arith.truncf %82 : vector<128x64xf32> to vector<128x64xbf16>
      %c0_58 = arith.constant 0 : index
      %c0_59 = arith.constant 0 : index
      %84 = vector.load %arg10[%c0_58, %c0_59] : memref<128x64xbf16, #tpu.memory_space<vmem>>, vector<128x64xbf16>
      tpu.vector_store %arg10[%c0_58, %c0_59], %83 {strides = array<i32>} : memref<128x64xbf16, #tpu.memory_space<vmem>>, vector<128x64xbf16>,
    } else {
    }
    %c48_i32 = arith.constant 48 : i32
    %3 = arith.muli %arg1, %c48_i32 : i32
    %4 = tpu.assume_multiple %3, 8 : i32
    %c0 = arith.constant 0 : index
    %5 = arith.index_cast %4 : i32 to index
    %c0_1 = arith.constant 0 : index
    %6 = vector.load %arg2[%c0, %5, %c0_1] : memref<1x128x32xbf16, #tpu.memory_space<vmem>>, vector<1x48x32xbf16>
    %7 = vector.shape_cast %6 : vector<1x48x32xbf16> to vector<48x32xbf16>
    %c0_2 = arith.constant 0 : index
    %c0_3 = arith.constant 0 : index
    %8 = vector.load %arg4[%c0_2, %c0_3] : memref<32x32xbf16, #tpu.memory_space<vmem>>, vector<32x32xbf16>
    %cst = arith.constant dense<0.000000e+00> : vector<48x32xf32>
    %9 = tpu.matmul %7, %8, %cst {dimension_numbers = #tpu.dot_dimension_numbers<[1], [0], [0], [1], [0, 0, 1, 1], [], []>} : vector<48x32xbf16>, vector<32x32xbf16>, vector<48x32xf32> -> vector<48x32xf32>
    %10 = arith.truncf %9 : vector<48x32xf32> to vector<48x32xbf16>
    %c0_4 = arith.constant 0 : index
    %c0_5 = arith.constant 0 : index
    %c0_6 = arith.constant 0 : index
    %11 = vector.load %arg3[%c0_4, %c0_5, %c0_6] : memref<1x1x128xf32, #tpu.memory_space<vmem>>, vector<1x1x128xf32>
    %12 = vector.shape_cast %11 : vector<1x1x128xf32> to vector<1x128xf32>
    %c0_7 = arith.constant 0 : index
    %c0_8 = arith.constant 0 : index
    %13 = vector.load %arg7[%c0_7, %c0_8] : memref<1x128xf32, #tpu.memory_space<vmem>>, vector<1x128xf32>
    %14 = vector.shape_cast %13 : vector<1x128xf32> to vector<1x128xf32>
    %15 = vector.broadcast %14 : vector<1x128xf32> to vector<48x128xf32>
    %c0_9 = arith.constant 0 : index
    %c0_10 = arith.constant 0 : index
    %16 = vector.load %arg11[%c0_9, %c0_10] : memref<48x128xf32, #tpu.memory_space<vmem>>, vector<48x128xf32>
    tpu.vector_store %arg11[%c0_9, %c0_10], %15 {strides = array<i32>} : memref<48x128xf32, #tpu.memory_space<vmem>>, vector<48x128xf32>,
    %c0_11 = arith.constant 0 : index
    %c0_12 = arith.constant 0 : index
    %17 = vector.load %arg10[%c0_11, %c0_12] : memref<128x64xbf16, #tpu.memory_space<vmem>>, vector<128x16xbf16>
    %c0_13 = arith.constant 0 : index
    %c32 = arith.constant 32 : index
    %18 = vector.load %arg10[%c0_13, %c32] : memref<128x64xbf16, #tpu.memory_space<vmem>>, vector<128x16xbf16>
    %19 = vector.extract_strided_slice %10 {offsets = [0, 0], sizes = [48, 16], strides = [1, 1]} : vector<48x32xbf16> to vector<48x16xbf16>
    %cst_14 = arith.constant dense<0.000000e+00> : vector<48x128xf32>
    %20 = tpu.matmul %19, %17, %cst_14 {dimension_numbers = #tpu.dot_dimension_numbers<[1], [1], [0], [0], [0, 0, 1, 0], [], []>} : vector<48x16xbf16>, vector<128x16xbf16>, vector<48x128xf32> -> vector<48x128xf32>
    %21 = vector.broadcast %12 : vector<1x128xf32> to vector<48x128xf32>
    %22 = arith.addf %20, %21 : vector<48x128xf32>
    %cst_15 = arith.constant dense<0xFF800000> : vector<48xf32>
    %23 = vector.multi_reduction <maximumf>, %22, %cst_15 [1] : vector<48x128xf32> to vector<48xf32>
    %24 = vector.shape_cast %23 : vector<48xf32> to vector<48x1xf32>
    %25 = vector.broadcast %24 : vector<48x1xf32> to vector<48x128xf32>
    %26 = arith.subf %22, %25 : vector<48x128xf32>
    %27 = math.exp %26 : vector<48x128xf32>
    %cst_16 = arith.constant dense<0.000000e+00> : vector<48xf32>
    %28 = vector.multi_reduction <add>, %27, %cst_16 [1] : vector<48x128xf32> to vector<48xf32>
    %29 = vector.shape_cast %28 : vector<48xf32> to vector<48x1xf32>
    %30 = tpu.reciprocal %29 {approx = true} : vector<48x1xf32> -> vector<48x1xf32>
    %31 = vector.broadcast %30 : vector<48x1xf32> to vector<48x128xf32>
    %32 = arith.mulf %27, %31 : vector<48x128xf32>
    %c0_17 = arith.constant 0 : index
    %c0_18 = arith.constant 0 : index
    %c0_19 = arith.constant 0 : index
    %33 = vector.load %arg9[%c0_17, %c0_18, %c0_19] : memref<1x48x128xf32, #tpu.memory_space<vmem>>, vector<1x48x128xf32>
    %34 = vector.shape_cast %33 : vector<1x48x128xf32> to vector<48x128xf32>
    %35 = vector.shape_cast %32 : vector<48x128xf32> to vector<1x48x128xf32>
    tpu.vector_store %arg9[%c0_17, %c0_18, %c0_19], %35 {strides = array<i32>} : memref<1x48x128xf32, #tpu.memory_space<vmem>>, vector<1x48x128xf32>,
    %36 = arith.truncf %32 : vector<48x128xf32> to vector<48x128xbf16>
    %cst_20 = arith.constant dense<0.000000e+00> : vector<48x16xf32>
    %37 = tpu.matmul %36, %18, %cst_20 {dimension_numbers = #tpu.dot_dimension_numbers<[1], [0], [0], [1], [0, 0, 1, 1], [], []>} : vector<48x128xbf16>, vector<128x16xbf16>, vector<48x16xf32> -> vector<48x16xf32>
    %c0_21 = arith.constant 0 : index
    %c0_22 = arith.constant 0 : index
    %38 = vector.load %arg11[%c0_21, %c0_22] : memref<48x128xf32, #tpu.memory_space<vmem>>, vector<48x128xf32>
    %39 = arith.truncf %37 : vector<48x16xf32> to vector<48x16xbf16>
    %c0_23 = arith.constant 0 : index
    %c0_24 = arith.constant 0 : index
    %40 = vector.load %arg6[%c0_23, %c0_24] : memref<32x128xbf16, #tpu.memory_space<vmem>>, vector<16x128xbf16>
    %cst_25 = arith.constant dense<0.000000e+00> : vector<48x128xf32>
    %41 = tpu.matmul %39, %40, %cst_25 {dimension_numbers = #tpu.dot_dimension_numbers<[1], [0], [0], [1], [0, 0, 1, 1], [], []>} : vector<48x16xbf16>, vector<16x128xbf16>, vector<48x128xf32> -> vector<48x128xf32>
    %42 = arith.addf %38, %41 : vector<48x128xf32>
    %c0_26 = arith.constant 0 : index
    %c0_27 = arith.constant 0 : index
    %43 = vector.load %arg11[%c0_26, %c0_27] : memref<48x128xf32, #tpu.memory_space<vmem>>, vector<48x128xf32>
    tpu.vector_store %arg11[%c0_26, %c0_27], %42 {strides = array<i32>} : memref<48x128xf32, #tpu.memory_space<vmem>>, vector<48x128xf32>,
    %c0_28 = arith.constant 0 : index
    %c16 = arith.constant 16 : index
    %44 = vector.load %arg10[%c0_28, %c16] : memref<128x64xbf16, #tpu.memory_space<vmem>>, vector<128x16xbf16>
    %c0_29 = arith.constant 0 : index
    %c48 = arith.constant 48 : index
    %45 = vector.load %arg10[%c0_29, %c48] : memref<128x64xbf16, #tpu.memory_space<vmem>>, vector<128x16xbf16>
    %46 = vector.extract_strided_slice %10 {offsets = [0, 16], sizes = [48, 16], strides = [1, 1]} : vector<48x32xbf16> to vector<48x16xbf16>
    %cst_30 = arith.constant dense<0.000000e+00> : vector<48x128xf32>
    %47 = tpu.matmul %46, %44, %cst_30 {dimension_numbers = #tpu.dot_dimension_numbers<[1], [1], [0], [0], [0, 0, 1, 0], [], []>} : vector<48x16xbf16>, vector<128x16xbf16>, vector<48x128xf32> -> vector<48x128xf32>
    %48 = vector.broadcast %12 : vector<1x128xf32> to vector<48x128xf32>
    %49 = arith.addf %47, %48 : vector<48x128xf32>
    %cst_31 = arith.constant dense<0xFF800000> : vector<48xf32>
    %50 = vector.multi_reduction <maximumf>, %49, %cst_31 [1] : vector<48x128xf32> to vector<48xf32>
    %51 = vector.shape_cast %50 : vector<48xf32> to vector<48x1xf32>
    %52 = vector.broadcast %51 : vector<48x1xf32> to vector<48x128xf32>
    %53 = arith.subf %49, %52 : vector<48x128xf32>
    %54 = math.exp %53 : vector<48x128xf32>
    %cst_32 = arith.constant dense<0.000000e+00> : vector<48xf32>
    %55 = vector.multi_reduction <add>, %54, %cst_32 [1] : vector<48x128xf32> to vector<48xf32>
    %56 = vector.shape_cast %55 : vector<48xf32> to vector<48x1xf32>
    %57 = tpu.reciprocal %56 {approx = true} : vector<48x1xf32> -> vector<48x1xf32>
    %58 = vector.broadcast %57 : vector<48x1xf32> to vector<48x128xf32>
    %59 = arith.mulf %54, %58 : vector<48x128xf32>
    %c0_33 = arith.constant 0 : index
    %c0_34 = arith.constant 0 : index
    %c0_35 = arith.constant 0 : index
    %60 = vector.load %arg9[%c0_33, %c0_34, %c0_35] : memref<1x48x128xf32, #tpu.memory_space<vmem>>, vector<1x48x128xf32>
    %61 = vector.shape_cast %60 : vector<1x48x128xf32> to vector<48x128xf32>
    %62 = arith.addf %61, %59 : vector<48x128xf32>
    %c0_36 = arith.constant 0 : index
    %c0_37 = arith.constant 0 : index
    %c0_38 = arith.constant 0 : index
    %63 = vector.load %arg9[%c0_36, %c0_37, %c0_38] : memref<1x48x128xf32, #tpu.memory_space<vmem>>, vector<1x48x128xf32>
    %64 = vector.shape_cast %63 : vector<1x48x128xf32> to vector<48x128xf32>
    %65 = vector.shape_cast %62 : vector<48x128xf32> to vector<1x48x128xf32>
    tpu.vector_store %arg9[%c0_36, %c0_37, %c0_38], %65 {strides = array<i32>} : memref<1x48x128xf32, #tpu.memory_space<vmem>>, vector<1x48x128xf32>,
    %66 = arith.truncf %59 : vector<48x128xf32> to vector<48x128xbf16>
    %cst_39 = arith.constant dense<0.000000e+00> : vector<48x16xf32>
    %67 = tpu.matmul %66, %45, %cst_39 {dimension_numbers = #tpu.dot_dimension_numbers<[1], [0], [0], [1], [0, 0, 1, 1], [], []>} : vector<48x128xbf16>, vector<128x16xbf16>, vector<48x16xf32> -> vector<48x16xf32>
    %c0_40 = arith.constant 0 : index
    %c0_41 = arith.constant 0 : index
    %68 = vector.load %arg11[%c0_40, %c0_41] : memref<48x128xf32, #tpu.memory_space<vmem>>, vector<48x128xf32>
    %69 = arith.truncf %67 : vector<48x16xf32> to vector<48x16xbf16>
    %c16_42 = arith.constant 16 : index
    %c0_43 = arith.constant 0 : index
    %70 = vector.load %arg6[%c16_42, %c0_43] : memref<32x128xbf16, #tpu.memory_space<vmem>>, vector<16x128xbf16>
    %cst_44 = arith.constant dense<0.000000e+00> : vector<48x128xf32>
    %71 = tpu.matmul %69, %70, %cst_44 {dimension_numbers = #tpu.dot_dimension_numbers<[1], [0], [0], [1], [0, 0, 1, 1], [], []>} : vector<48x16xbf16>, vector<16x128xbf16>, vector<48x128xf32> -> vector<48x128xf32>
    %72 = arith.addf %68, %71 : vector<48x128xf32>
    %c0_45 = arith.constant 0 : index
    %c0_46 = arith.constant 0 : index
    %73 = vector.load %arg11[%c0_45, %c0_46] : memref<48x128xf32, #tpu.memory_space<vmem>>, vector<48x128xf32>
    tpu.vector_store %arg11[%c0_45, %c0_46], %72 {strides = array<i32>} : memref<48x128xf32, #tpu.memory_space<vmem>>, vector<48x128xf32>,
    %c0_47 = arith.constant 0 : index
    %c0_48 = arith.constant 0 : index
    %74 = vector.load %arg11[%c0_47, %c0_48] : memref<48x128xf32, #tpu.memory_space<vmem>>, vector<48x128xf32>
    %75 = arith.truncf %74 : vector<48x128xf32> to vector<48x128xbf16>
    %c0_49 = arith.constant 0 : index
    %c0_50 = arith.constant 0 : index
    %c0_51 = arith.constant 0 : index
    %76 = vector.load %arg8[%c0_49, %c0_50, %c0_51] : memref<1x48x128xbf16, #tpu.memory_space<vmem>>, vector<1x48x128xbf16>
    %77 = vector.shape_cast %76 : vector<1x48x128xbf16> to vector<48x128xbf16>
    %78 = vector.shape_cast %75 : vector<48x128xbf16> to vector<1x48x128xbf16>
    tpu.vector_store %arg8[%c0_49, %c0_50, %c0_51], %78 {strides = array<i32>} : memref<1x48x128xbf16, #tpu.memory_space<vmem>>, vector<1x48x128xbf16>,
    return
  }
  func.func @transform_0(%arg0: i32, %arg1: i32) -> (i32, i32, i32) {
    %c0_i32 = arith.constant 0 : i32
    %c0_i32_0 = arith.constant 0 : i32
    %c0_i32_1 = arith.constant 0 : i32
    return %arg0, %c0_i32, %c0_i32_0 : i32, i32, i32
  }
  func.func @transform_1(%arg0: i32, %arg1: i32) -> (i32, i32, i32) {
    %c0_i32 = arith.constant 0 : i32
    %c0_i32_0 = arith.constant 0 : i32
    %c0_i32_1 = arith.constant 0 : i32
    return %arg0, %c0_i32, %c0_i32_0 : i32, i32, i32
  }
  func.func @transform_2(%arg0: i32, %arg1: i32) -> (i32, i32) {
    %c0_i32 = arith.constant 0 : i32
    %c0_i32_0 = arith.constant 0 : i32
    %c0_i32_1 = arith.constant 0 : i32
    return %c0_i32, %c0_i32_0 : i32, i32
  }
  func.func @transform_3(%arg0: i32, %arg1: i32) -> (i32, i32) {
    %c0_i32 = arith.constant 0 : i32
    %c0_i32_0 = arith.constant 0 : i32
    %c0_i32_1 = arith.constant 0 : i32
    return %c0_i32, %c0_i32_0 : i32, i32
  }
  func.func @transform_4(%arg0: i32, %arg1: i32) -> (i32, i32) {
    %c0_i32 = arith.constant 0 : i32
    %c0_i32_0 = arith.constant 0 : i32
    %c0_i32_1 = arith.constant 0 : i32
    return %c0_i32, %c0_i32_0 : i32, i32
  }
  func.func @transform_5(%arg0: i32, %arg1: i32) -> (i32, i32) {
    %c0_i32 = arith.constant 0 : i32
    %c0_i32_0 = arith.constant 0 : i32
    %c0_i32_1 = arith.constant 0 : i32
    return %c0_i32, %c0_i32_0 : i32, i32
  }
  func.func @transform_6(%arg0: i32, %arg1: i32) -> (i32, i32, i32) {
    %c0_i32 = arith.constant 0 : i32
    %c0_i32_0 = arith.constant 0 : i32
    return %arg0, %arg1, %c0_i32 : i32, i32, i32
  }
  func.func @transform_7(%arg0: i32, %arg1: i32) -> (i32, i32, i32) {
    %c0_i32 = arith.constant 0 : i32
    %c0_i32_0 = arith.constant 0 : i32
    return %arg0, %arg1, %c0_i32 : i32, i32, i32
  }
}

module attributes {stable_mosaic.version = 11 : i64} {
  func.func @_attn_kernel(%arg0: i32, %arg1: i32, %arg2: memref<1x8x32xbf16, #tpu.memory_space<vmem>>, %arg3: memref<1x128x32xbf16, #tpu.memory_space<vmem>>, %arg4: memref<1x1x128xf32, #tpu.memory_space<vmem>>, %arg5: memref<32x32xbf16, #tpu.memory_space<vmem>>, %arg6: memref<32x64xbf16, #tpu.memory_space<vmem>>, %arg7: memref<32x128xbf16, #tpu.memory_space<vmem>>, %arg8: memref<1x128xf32, #tpu.memory_space<vmem>>, %arg9: memref<1x8x128xbf16, #tpu.memory_space<vmem>>, %arg10: memref<128x64xbf16, #tpu.memory_space<vmem>>, %arg11: memref<8x128xf32, #tpu.memory_space<vmem>>) attributes {dimension_semantics = [#tpu.dimension_semantics<parallel>, #tpu.dimension_semantics<arbitrary>], iteration_bounds = array<i64: 90, 1>, scalar_prefetch = 0 : i64, scratch_operands = 2 : i64, tpu.core_type = #tpu.core_type<tc>, window_params = [{transform_indices = @transform_0, window_bounds = array<i64: 1, 8, 32>}, {transform_indices = @transform_1, window_bounds = array<i64: 1, 128, 32>}, {transform_indices = @transform_2, window_bounds = array<i64: 1, 1, 128>}, {pipeline_mode = #tpu.pipeline_mode<synchronous>, transform_indices = @transform_3, window_bounds = array<i64: 32, 32>}, {pipeline_mode = #tpu.pipeline_mode<synchronous>, transform_indices = @transform_4, window_bounds = array<i64: 32, 64>}, {pipeline_mode = #tpu.pipeline_mode<synchronous>, transform_indices = @transform_5, window_bounds = array<i64: 32, 128>}, {pipeline_mode = #tpu.pipeline_mode<synchronous>, transform_indices = @transform_6, window_bounds = array<i64: 1, 128>}, {transform_indices = @transform_7, window_bounds = array<i64: 1, 8, 128>}]} {
    %c0_i32 = arith.constant 0 : i32
    %0 = arith.cmpi eq, %arg1, %c0_i32 : i32
    %1 = arith.extui %0 : i1 to i32
    %c0_i32_0 = arith.constant 0 : i32
    %2 = arith.cmpi ne, %1, %c0_i32_0 : i32
    scf.if %2 {
      %c0_44 = arith.constant 0 : index
      %c0_45 = arith.constant 0 : index
      %c0_46 = arith.constant 0 : index
      %67 = vector.load %arg3[%c0_44, %c0_45, %c0_46] : memref<1x128x32xbf16, #tpu.memory_space<vmem>>, vector<1x128x32xbf16>
      %68 = vector.shape_cast %67 : vector<1x128x32xbf16> to vector<128x32xbf16>
      %c0_47 = arith.constant 0 : index
      %c0_48 = arith.constant 0 : index
      %69 = vector.load %arg6[%c0_47, %c0_48] : memref<32x64xbf16, #tpu.memory_space<vmem>>, vector<32x64xbf16>
      %cst_49 = arith.constant dense<0.000000e+00> : vector<128x64xf32>
      %70 = tpu.matmul %68, %69, %cst_49 {dimension_numbers = #tpu.dot_dimension_numbers<[1], [0], [0], [1], [0, 0, 1, 1], [], []>} : vector<128x32xbf16>, vector<32x64xbf16>, vector<128x64xf32> -> vector<128x64xf32>
      %71 = arith.truncf %70 : vector<128x64xf32> to vector<128x64xbf16>
      %c0_50 = arith.constant 0 : index
      %c0_51 = arith.constant 0 : index
      %72 = vector.load %arg10[%c0_50, %c0_51] : memref<128x64xbf16, #tpu.memory_space<vmem>>, vector<128x64xbf16>
      tpu.vector_store %arg10[%c0_50, %c0_51], %71 {strides = array<i32>} : memref<128x64xbf16, #tpu.memory_space<vmem>>, vector<128x64xbf16>,
    } else {
    }
    %c0 = arith.constant 0 : index
    %c0_1 = arith.constant 0 : index
    %c0_2 = arith.constant 0 : index
    %3 = vector.load %arg2[%c0, %c0_1, %c0_2] : memref<1x8x32xbf16, #tpu.memory_space<vmem>>, vector<1x8x32xbf16>
    %4 = vector.shape_cast %3 : vector<1x8x32xbf16> to vector<8x32xbf16>
    %c0_3 = arith.constant 0 : index
    %c0_4 = arith.constant 0 : index
    %5 = vector.load %arg5[%c0_3, %c0_4] : memref<32x32xbf16, #tpu.memory_space<vmem>>, vector<32x32xbf16>
    %cst = arith.constant dense<0.000000e+00> : vector<8x32xf32>
    %6 = tpu.matmul %4, %5, %cst {dimension_numbers = #tpu.dot_dimension_numbers<[1], [0], [0], [1], [0, 0, 1, 1], [], []>} : vector<8x32xbf16>, vector<32x32xbf16>, vector<8x32xf32> -> vector<8x32xf32>
    %7 = arith.truncf %6 : vector<8x32xf32> to vector<8x32xbf16>
    %c0_5 = arith.constant 0 : index
    %c0_6 = arith.constant 0 : index
    %c0_7 = arith.constant 0 : index
    %8 = vector.load %arg4[%c0_5, %c0_6, %c0_7] : memref<1x1x128xf32, #tpu.memory_space<vmem>>, vector<1x1x128xf32>
    %9 = vector.shape_cast %8 : vector<1x1x128xf32> to vector<1x128xf32>
    %c0_8 = arith.constant 0 : index
    %c0_9 = arith.constant 0 : index
    %10 = vector.load %arg8[%c0_8, %c0_9] : memref<1x128xf32, #tpu.memory_space<vmem>>, vector<1x128xf32>
    %11 = vector.shape_cast %10 : vector<1x128xf32> to vector<1x128xf32>
    %12 = vector.broadcast %11 : vector<1x128xf32> to vector<8x128xf32>
    %c0_10 = arith.constant 0 : index
    %c0_11 = arith.constant 0 : index
    %13 = vector.load %arg11[%c0_10, %c0_11] : memref<8x128xf32, #tpu.memory_space<vmem>>, vector<8x128xf32>
    tpu.vector_store %arg11[%c0_10, %c0_11], %12 {strides = array<i32>} : memref<8x128xf32, #tpu.memory_space<vmem>>, vector<8x128xf32>,
    %c0_12 = arith.constant 0 : index
    %c0_13 = arith.constant 0 : index
    %14 = vector.load %arg10[%c0_12, %c0_13] : memref<128x64xbf16, #tpu.memory_space<vmem>>, vector<128x16xbf16>
    %c0_14 = arith.constant 0 : index
    %c32 = arith.constant 32 : index
    %15 = vector.load %arg10[%c0_14, %c32] : memref<128x64xbf16, #tpu.memory_space<vmem>>, vector<128x16xbf16>
    %16 = vector.extract_strided_slice %7 {offsets = [0, 0], sizes = [8, 16], strides = [1, 1]} : vector<8x32xbf16> to vector<8x16xbf16>
    %cst_15 = arith.constant dense<0.000000e+00> : vector<8x128xf32>
    %17 = tpu.matmul %16, %14, %cst_15 {dimension_numbers = #tpu.dot_dimension_numbers<[1], [1], [0], [0], [0, 0, 1, 0], [], []>} : vector<8x16xbf16>, vector<128x16xbf16>, vector<8x128xf32> -> vector<8x128xf32>
    %18 = vector.broadcast %9 : vector<1x128xf32> to vector<8x128xf32>
    %19 = arith.addf %17, %18 : vector<8x128xf32>
    %cst_16 = arith.constant dense<0xFF800000> : vector<8xf32>
    %20 = vector.multi_reduction <maximumf>, %19, %cst_16 [1] : vector<8x128xf32> to vector<8xf32>
    %21 = vector.shape_cast %20 : vector<8xf32> to vector<8x1xf32>
    %22 = vector.broadcast %21 : vector<8x1xf32> to vector<8x128xf32>
    %23 = arith.subf %19, %22 : vector<8x128xf32>
    %24 = math.exp %23 : vector<8x128xf32>
    %cst_17 = arith.constant dense<0.000000e+00> : vector<8xf32>
    %25 = vector.multi_reduction <add>, %24, %cst_17 [1] : vector<8x128xf32> to vector<8xf32>
    %26 = vector.shape_cast %25 : vector<8xf32> to vector<8x1xf32>
    %27 = tpu.reciprocal %26 {approx = true} : vector<8x1xf32> -> vector<8x1xf32>
    %28 = vector.broadcast %27 : vector<8x1xf32> to vector<8x128xf32>
    %29 = arith.mulf %24, %28 : vector<8x128xf32>
    %30 = arith.truncf %29 : vector<8x128xf32> to vector<8x128xbf16>
    %cst_18 = arith.constant dense<0.000000e+00> : vector<8x16xf32>
    %31 = tpu.matmul %30, %15, %cst_18 {dimension_numbers = #tpu.dot_dimension_numbers<[1], [0], [0], [1], [0, 0, 1, 1], [], []>} : vector<8x128xbf16>, vector<128x16xbf16>, vector<8x16xf32> -> vector<8x16xf32>
    %c0_19 = arith.constant 0 : index
    %c0_20 = arith.constant 0 : index
    %32 = vector.load %arg11[%c0_19, %c0_20] : memref<8x128xf32, #tpu.memory_space<vmem>>, vector<8x128xf32>
    %33 = arith.truncf %31 : vector<8x16xf32> to vector<8x16xbf16>
    %c0_21 = arith.constant 0 : index
    %c0_22 = arith.constant 0 : index
    %34 = vector.load %arg7[%c0_21, %c0_22] : memref<32x128xbf16, #tpu.memory_space<vmem>>, vector<16x128xbf16>
    %cst_23 = arith.constant dense<0.000000e+00> : vector<8x128xf32>
    %35 = tpu.matmul %33, %34, %cst_23 {dimension_numbers = #tpu.dot_dimension_numbers<[1], [0], [0], [1], [0, 0, 1, 1], [], []>} : vector<8x16xbf16>, vector<16x128xbf16>, vector<8x128xf32> -> vector<8x128xf32>
    %36 = arith.addf %32, %35 : vector<8x128xf32>
    %c0_24 = arith.constant 0 : index
    %c0_25 = arith.constant 0 : index
    %37 = vector.load %arg11[%c0_24, %c0_25] : memref<8x128xf32, #tpu.memory_space<vmem>>, vector<8x128xf32>
    tpu.vector_store %arg11[%c0_24, %c0_25], %36 {strides = array<i32>} : memref<8x128xf32, #tpu.memory_space<vmem>>, vector<8x128xf32>,
    %c0_26 = arith.constant 0 : index
    %c16 = arith.constant 16 : index
    %38 = vector.load %arg10[%c0_26, %c16] : memref<128x64xbf16, #tpu.memory_space<vmem>>, vector<128x16xbf16>
    %c0_27 = arith.constant 0 : index
    %c48 = arith.constant 48 : index
    %39 = vector.load %arg10[%c0_27, %c48] : memref<128x64xbf16, #tpu.memory_space<vmem>>, vector<128x16xbf16>
    %40 = vector.extract_strided_slice %7 {offsets = [0, 16], sizes = [8, 16], strides = [1, 1]} : vector<8x32xbf16> to vector<8x16xbf16>
    %cst_28 = arith.constant dense<0.000000e+00> : vector<8x128xf32>
    %41 = tpu.matmul %40, %38, %cst_28 {dimension_numbers = #tpu.dot_dimension_numbers<[1], [1], [0], [0], [0, 0, 1, 0], [], []>} : vector<8x16xbf16>, vector<128x16xbf16>, vector<8x128xf32> -> vector<8x128xf32>
    %42 = vector.broadcast %9 : vector<1x128xf32> to vector<8x128xf32>
    %43 = arith.addf %41, %42 : vector<8x128xf32>
    %cst_29 = arith.constant dense<0xFF800000> : vector<8xf32>
    %44 = vector.multi_reduction <maximumf>, %43, %cst_29 [1] : vector<8x128xf32> to vector<8xf32>
    %45 = vector.shape_cast %44 : vector<8xf32> to vector<8x1xf32>
    %46 = vector.broadcast %45 : vector<8x1xf32> to vector<8x128xf32>
    %47 = arith.subf %43, %46 : vector<8x128xf32>
    %48 = math.exp %47 : vector<8x128xf32>
    %cst_30 = arith.constant dense<0.000000e+00> : vector<8xf32>
    %49 = vector.multi_reduction <add>, %48, %cst_30 [1] : vector<8x128xf32> to vector<8xf32>
    %50 = vector.shape_cast %49 : vector<8xf32> to vector<8x1xf32>
    %51 = tpu.reciprocal %50 {approx = true} : vector<8x1xf32> -> vector<8x1xf32>
    %52 = vector.broadcast %51 : vector<8x1xf32> to vector<8x128xf32>
    %53 = arith.mulf %48, %52 : vector<8x128xf32>
    %54 = arith.truncf %53 : vector<8x128xf32> to vector<8x128xbf16>
    %cst_31 = arith.constant dense<0.000000e+00> : vector<8x16xf32>
    %55 = tpu.matmul %54, %39, %cst_31 {dimension_numbers = #tpu.dot_dimension_numbers<[1], [0], [0], [1], [0, 0, 1, 1], [], []>} : vector<8x128xbf16>, vector<128x16xbf16>, vector<8x16xf32> -> vector<8x16xf32>
    %c0_32 = arith.constant 0 : index
    %c0_33 = arith.constant 0 : index
    %56 = vector.load %arg11[%c0_32, %c0_33] : memref<8x128xf32, #tpu.memory_space<vmem>>, vector<8x128xf32>
    %57 = arith.truncf %55 : vector<8x16xf32> to vector<8x16xbf16>
    %c16_34 = arith.constant 16 : index
    %c0_35 = arith.constant 0 : index
    %58 = vector.load %arg7[%c16_34, %c0_35] : memref<32x128xbf16, #tpu.memory_space<vmem>>, vector<16x128xbf16>
    %cst_36 = arith.constant dense<0.000000e+00> : vector<8x128xf32>
    %59 = tpu.matmul %57, %58, %cst_36 {dimension_numbers = #tpu.dot_dimension_numbers<[1], [0], [0], [1], [0, 0, 1, 1], [], []>} : vector<8x16xbf16>, vector<16x128xbf16>, vector<8x128xf32> -> vector<8x128xf32>
    %60 = arith.addf %56, %59 : vector<8x128xf32>
    %c0_37 = arith.constant 0 : index
    %c0_38 = arith.constant 0 : index
    %61 = vector.load %arg11[%c0_37, %c0_38] : memref<8x128xf32, #tpu.memory_space<vmem>>, vector<8x128xf32>
    tpu.vector_store %arg11[%c0_37, %c0_38], %60 {strides = array<i32>} : memref<8x128xf32, #tpu.memory_space<vmem>>, vector<8x128xf32>,
    %c0_39 = arith.constant 0 : index
    %c0_40 = arith.constant 0 : index
    %62 = vector.load %arg11[%c0_39, %c0_40] : memref<8x128xf32, #tpu.memory_space<vmem>>, vector<8x128xf32>
    %63 = arith.truncf %62 : vector<8x128xf32> to vector<8x128xbf16>
    %c0_41 = arith.constant 0 : index
    %c0_42 = arith.constant 0 : index
    %c0_43 = arith.constant 0 : index
    %64 = vector.load %arg9[%c0_41, %c0_42, %c0_43] : memref<1x8x128xbf16, #tpu.memory_space<vmem>>, vector<1x8x128xbf16>
    %65 = vector.shape_cast %64 : vector<1x8x128xbf16> to vector<8x128xbf16>
    %66 = vector.shape_cast %63 : vector<8x128xbf16> to vector<1x8x128xbf16>
    tpu.vector_store %arg9[%c0_41, %c0_42, %c0_43], %66 {strides = array<i32>} : memref<1x8x128xbf16, #tpu.memory_space<vmem>>, vector<1x8x128xbf16>,
    return
  }
  func.func @transform_0(%arg0: i32, %arg1: i32) -> (i32, i32, i32) {
    %c0_i32 = arith.constant 0 : i32
    %c0_i32_0 = arith.constant 0 : i32
    return %arg0, %arg1, %c0_i32 : i32, i32, i32
  }
  func.func @transform_1(%arg0: i32, %arg1: i32) -> (i32, i32, i32) {
    %c0_i32 = arith.constant 0 : i32
    %c0_i32_0 = arith.constant 0 : i32
    %c0_i32_1 = arith.constant 0 : i32
    return %arg0, %c0_i32, %c0_i32_0 : i32, i32, i32
  }
  func.func @transform_2(%arg0: i32, %arg1: i32) -> (i32, i32, i32) {
    %c0_i32 = arith.constant 0 : i32
    %c0_i32_0 = arith.constant 0 : i32
    %c0_i32_1 = arith.constant 0 : i32
    return %arg0, %c0_i32, %c0_i32_0 : i32, i32, i32
  }
  func.func @transform_3(%arg0: i32, %arg1: i32) -> (i32, i32) {
    %c0_i32 = arith.constant 0 : i32
    %c0_i32_0 = arith.constant 0 : i32
    %c0_i32_1 = arith.constant 0 : i32
    return %c0_i32, %c0_i32_0 : i32, i32
  }
  func.func @transform_4(%arg0: i32, %arg1: i32) -> (i32, i32) {
    %c0_i32 = arith.constant 0 : i32
    %c0_i32_0 = arith.constant 0 : i32
    %c0_i32_1 = arith.constant 0 : i32
    return %c0_i32, %c0_i32_0 : i32, i32
  }
  func.func @transform_5(%arg0: i32, %arg1: i32) -> (i32, i32) {
    %c0_i32 = arith.constant 0 : i32
    %c0_i32_0 = arith.constant 0 : i32
    %c0_i32_1 = arith.constant 0 : i32
    return %c0_i32, %c0_i32_0 : i32, i32
  }
  func.func @transform_6(%arg0: i32, %arg1: i32) -> (i32, i32) {
    %c0_i32 = arith.constant 0 : i32
    %c0_i32_0 = arith.constant 0 : i32
    %c0_i32_1 = arith.constant 0 : i32
    return %c0_i32, %c0_i32_0 : i32, i32
  }
  func.func @transform_7(%arg0: i32, %arg1: i32) -> (i32, i32, i32) {
    %c0_i32 = arith.constant 0 : i32
    %c0_i32_0 = arith.constant 0 : i32
    return %arg0, %arg1, %c0_i32 : i32, i32, i32
  }
}

module attributes {stable_mosaic.version = 11 : i64} {
  func.func @_tail_kernel(%arg0: i32, %arg1: memref<96x56xbf16, #tpu.memory_space<vmem>>, %arg2: memref<96x128xbf16, #tpu.memory_space<vmem>>, %arg3: memref<56x128xbf16, #tpu.memory_space<vmem>>, %arg4: memref<128x128xbf16, #tpu.memory_space<vmem>>, %arg5: memref<1x128xf32, #tpu.memory_space<vmem>>, %arg6: memref<128x128xbf16, #tpu.memory_space<vmem>>, %arg7: memref<1x128xf32, #tpu.memory_space<vmem>>, %arg8: memref<96x128xf32, #tpu.memory_space<vmem>>) attributes {dimension_semantics = [#tpu.dimension_semantics<parallel>], iteration_bounds = array<i64: 1>, scalar_prefetch = 0 : i64, scratch_operands = 0 : i64, tpu.core_type = #tpu.core_type<tc>, window_params = [{transform_indices = @transform_0, window_bounds = array<i64: 96, 56>}, {transform_indices = @transform_1, window_bounds = array<i64: 96, 128>}, {pipeline_mode = #tpu.pipeline_mode<synchronous>, transform_indices = @transform_2, window_bounds = array<i64: 56, 128>}, {pipeline_mode = #tpu.pipeline_mode<synchronous>, transform_indices = @transform_3, window_bounds = array<i64: 128, 128>}, {pipeline_mode = #tpu.pipeline_mode<synchronous>, transform_indices = @transform_4, window_bounds = array<i64: 1, 128>}, {pipeline_mode = #tpu.pipeline_mode<synchronous>, transform_indices = @transform_5, window_bounds = array<i64: 128, 128>}, {pipeline_mode = #tpu.pipeline_mode<synchronous>, transform_indices = @transform_6, window_bounds = array<i64: 1, 128>}, {transform_indices = @transform_7, window_bounds = array<i64: 96, 128>}]} {
    %c0 = arith.constant 0 : index
    %c0_0 = arith.constant 0 : index
    %0 = vector.load %arg1[%c0, %c0_0] : memref<96x56xbf16, #tpu.memory_space<vmem>>, vector<96x56xbf16>
    %c0_1 = arith.constant 0 : index
    %c0_2 = arith.constant 0 : index
    %1 = vector.load %arg3[%c0_1, %c0_2] : memref<56x128xbf16, #tpu.memory_space<vmem>>, vector<56x128xbf16>
    %cst = arith.constant dense<0.000000e+00> : vector<96x128xf32>
    %2 = tpu.matmul %0, %1, %cst {dimension_numbers = #tpu.dot_dimension_numbers<[1], [0], [0], [1], [0, 0, 1, 1], [], []>} : vector<96x56xbf16>, vector<56x128xbf16>, vector<96x128xf32> -> vector<96x128xf32>
    %c0_3 = arith.constant 0 : index
    %c0_4 = arith.constant 0 : index
    %3 = vector.load %arg2[%c0_3, %c0_4] : memref<96x128xbf16, #tpu.memory_space<vmem>>, vector<96x128xbf16>
    %4 = arith.extf %3 : vector<96x128xbf16> to vector<96x128xf32>
    %5 = arith.addf %2, %4 : vector<96x128xf32>
    %6 = arith.truncf %5 : vector<96x128xf32> to vector<96x128xbf16>
    %c0_5 = arith.constant 0 : index
    %c0_6 = arith.constant 0 : index
    %7 = vector.load %arg4[%c0_5, %c0_6] : memref<128x128xbf16, #tpu.memory_space<vmem>>, vector<128x128xbf16>
    %cst_7 = arith.constant dense<0.000000e+00> : vector<96x128xf32>
    %8 = tpu.matmul %6, %7, %cst_7 {dimension_numbers = #tpu.dot_dimension_numbers<[1], [0], [0], [1], [0, 0, 1, 1], [], []>} : vector<96x128xbf16>, vector<128x128xbf16>, vector<96x128xf32> -> vector<96x128xf32>
    %c0_8 = arith.constant 0 : index
    %c0_9 = arith.constant 0 : index
    %9 = vector.load %arg5[%c0_8, %c0_9] : memref<1x128xf32, #tpu.memory_space<vmem>>, vector<1x128xf32>
    %10 = vector.broadcast %9 : vector<1x128xf32> to vector<96x128xf32>
    %11 = arith.addf %8, %10 : vector<96x128xf32>
    %cst_10 = arith.constant 5.000000e-01 : f32
    %12 = vector.broadcast %cst_10 : f32 to vector<96x128xf32>
    %13 = arith.mulf %12, %11 : vector<96x128xf32>
    %14 = arith.mulf %11, %11 : vector<96x128xf32>
    %15 = arith.mulf %14, %11 : vector<96x128xf32>
    %cst_11 = arith.constant 4.471500e-02 : f32
    %16 = vector.broadcast %cst_11 : f32 to vector<96x128xf32>
    %17 = arith.mulf %16, %15 : vector<96x128xf32>
    %18 = arith.addf %11, %17 : vector<96x128xf32>
    %cst_12 = arith.constant 0.797884583 : f32
    %19 = vector.broadcast %cst_12 : f32 to vector<96x128xf32>
    %20 = arith.mulf %19, %18 : vector<96x128xf32>
    %21 = math.tanh %20 : vector<96x128xf32>
    %cst_13 = arith.constant 1.000000e+00 : f32
    %22 = vector.broadcast %cst_13 : f32 to vector<96x128xf32>
    %23 = arith.addf %22, %21 : vector<96x128xf32>
    %24 = arith.mulf %13, %23 : vector<96x128xf32>
    %25 = arith.truncf %24 : vector<96x128xf32> to vector<96x128xbf16>
    %c0_14 = arith.constant 0 : index
    %c0_15 = arith.constant 0 : index
    %26 = vector.load %arg6[%c0_14, %c0_15] : memref<128x128xbf16, #tpu.memory_space<vmem>>, vector<128x128xbf16>
    %cst_16 = arith.constant dense<0.000000e+00> : vector<96x128xf32>
    %27 = tpu.matmul %25, %26, %cst_16 {dimension_numbers = #tpu.dot_dimension_numbers<[1], [0], [0], [1], [0, 0, 1, 1], [], []>} : vector<96x128xbf16>, vector<128x128xbf16>, vector<96x128xf32> -> vector<96x128xf32>
    %c0_17 = arith.constant 0 : index
    %c0_18 = arith.constant 0 : index
    %28 = vector.load %arg7[%c0_17, %c0_18] : memref<1x128xf32, #tpu.memory_space<vmem>>, vector<1x128xf32>
    %29 = vector.broadcast %28 : vector<1x128xf32> to vector<96x128xf32>
    %30 = arith.addf %27, %29 : vector<96x128xf32>
    %31 = arith.addf %5, %30 : vector<96x128xf32>
    %c0_19 = arith.constant 0 : index
    %c0_20 = arith.constant 0 : index
    %32 = vector.load %arg8[%c0_19, %c0_20] : memref<96x128xf32, #tpu.memory_space<vmem>>, vector<96x128xf32>
    tpu.vector_store %arg8[%c0_19, %c0_20], %31 {strides = array<i32>} : memref<96x128xf32, #tpu.memory_space<vmem>>, vector<96x128xf32>,
    return
  }
  func.func @transform_0(%arg0: i32) -> (i32, i32) {
    %c0_i32 = arith.constant 0 : i32
    %c0_i32_0 = arith.constant 0 : i32
    return %arg0, %c0_i32 : i32, i32
  }
  func.func @transform_1(%arg0: i32) -> (i32, i32) {
    %c0_i32 = arith.constant 0 : i32
    %c0_i32_0 = arith.constant 0 : i32
    return %arg0, %c0_i32 : i32, i32
  }
  func.func @transform_2(%arg0: i32) -> (i32, i32) {
    %c0_i32 = arith.constant 0 : i32
    %c0_i32_0 = arith.constant 0 : i32
    %c0_i32_1 = arith.constant 0 : i32
    return %c0_i32, %c0_i32_0 : i32, i32
  }
  func.func @transform_3(%arg0: i32) -> (i32, i32) {
    %c0_i32 = arith.constant 0 : i32
    %c0_i32_0 = arith.constant 0 : i32
    %c0_i32_1 = arith.constant 0 : i32
    return %c0_i32, %c0_i32_0 : i32, i32
  }
  func.func @transform_4(%arg0: i32) -> (i32, i32) {
    %c0_i32 = arith.constant 0 : i32
    %c0_i32_0 = arith.constant 0 : i32
    %c0_i32_1 = arith.constant 0 : i32
    return %c0_i32, %c0_i32_0 : i32, i32
  }
  func.func @transform_5(%arg0: i32) -> (i32, i32) {
    %c0_i32 = arith.constant 0 : i32
    %c0_i32_0 = arith.constant 0 : i32
    %c0_i32_1 = arith.constant 0 : i32
    return %c0_i32, %c0_i32_0 : i32, i32
  }
  func.func @transform_6(%arg0: i32) -> (i32, i32) {
    %c0_i32 = arith.constant 0 : i32
    %c0_i32_0 = arith.constant 0 : i32
    %c0_i32_1 = arith.constant 0 : i32
    return %c0_i32, %c0_i32_0 : i32, i32
  }
  func.func @transform_7(%arg0: i32) -> (i32, i32) {
    %c0_i32 = arith.constant 0 : i32
    %c0_i32_0 = arith.constant 0 : i32
    return %arg0, %c0_i32 : i32, i32
  }
}

</mosaic_0001>

<llo_original>
// kernel: basic_block_forward.12
$region0: #{basic_block_forward.12}
  #allocation0 [shape = 'u32[]', space=smem, size = 0x4, offset = 0x4, fixed_abs, tag = 'smem constant byte address 0x4 - core index']
  #allocation1 [shape = 'u32[144,128]{1,0:T(1,128)}', space=vmem, size = 0x12000, scoped, tag = 'internal scratch']
  %s0 = inlined_call_operand.vmem [shape: bf16[96,864], index: 0, kind: input, shape index: {}]
  %s1 = inlined_call_operand.vmem [shape: bf16[864,128], index: 1, kind: input, shape index: {}]
  %s2 = inlined_call_operand.vmem [shape: bf16[96,128], index: 2, kind: output, shape index: {}]
  %s3 = sld [smem:[#allocation0]]
  $region18: #{basic_block_forward.12} parent=0
    _
  %s5 = ssub.s32 1, %s3
  %s6 = scalar_select 0, %s5, %s3
  // Predicated region
  $region2: #{basic_block_forward.12} parent=0 // pred_check
    _
  $region3: #{basic_block_forward.12} parent=0 // pred_check_branch
    %8 = sbr.rel (0) target = $region5
  $region4: #{basic_block_forward.12} parent=0 // pred_region
    _
  $region5: #{basic_block_forward.12} parent=0 // pred_fallthru
    _
  // Predicated region
  $region6: #{basic_block_forward.12} parent=0 // pred_check
    _
  $region7: #{basic_block_forward.12} parent=0 // pred_check_branch
    %10 = sbr.rel (0) target = $region9
  $region8: #{basic_block_forward.12} parent=0 // pred_region
    _
  $region9: #{basic_block_forward.12} parent=0 // pred_fallthru
    _
  %v12 = vld [vmem:[%s0] sm:$0xff]
  %v13 = vld [vmem:[%s0 + $0x8] sm:$0xff]
  %v14 = vld [vmem:[%s0 + $0x10] sm:$0xff]
  %v15 = vld [vmem:[%s0 + $0x18] sm:$0xf]
  %v16 = vld [vmem:[%s0 + $0x1c] sm:$0xff]
  %v17 = vld [vmem:[%s0 + $0x24] sm:$0xff]
  %v18 = vld [vmem:[%s0 + $0x2c] sm:$0xff]
  %v19 = vld [vmem:[%s0 + $0x34] sm:$0xf]
  %v20 = vld [vmem:[%s0 + $0x38] sm:$0xff]
  %v21 = vld [vmem:[%s0 + $0x40] sm:$0xff]
  %v22 = vld [vmem:[%s0 + $0x48] sm:$0xff]
  %v23 = vld [vmem:[%s0 + $0x50] sm:$0xf]
  %v24 = vld [vmem:[%s0 + $0x54] sm:$0xff]
  %v25 = vld [vmem:[%s0 + $0x5c] sm:$0xff]
  %v26 = vld [vmem:[%s0 + $0x64] sm:$0xff]
  %v27 = vld [vmem:[%s0 + $0x6c] sm:$0xf]
  %v28 = vld [vmem:[%s0 + $0x70] sm:$0xff]
  %v29 = vld [vmem:[%s0 + $0x78] sm:$0xff]
  %v30 = vld [vmem:[%s0 + $0x80] sm:$0xff]
  %v31 = vld [vmem:[%s0 + $0x88] sm:$0xf]
  %v32 = vld [vmem:[%s0 + $0x8c] sm:$0xff]
  %v33 = vld [vmem:[%s0 + $0x94] sm:$0xff]
  %v34 = vld [vmem:[%s0 + $0x9c] sm:$0xff]
  %v35 = vld [vmem:[%s0 + $0xa4] sm:$0xf]
  %v36 = vld [vmem:[%s0 + $0xa8] sm:$0xff]
  %v37 = vld [vmem:[%s0 + $0xb0] sm:$0xff]
  %v38 = vld [vmem:[%s0 + $0xb8] sm:$0xff]
  %v39 = vld [vmem:[%s0 + $0xc0] sm:$0xf]
  %v40 = vld [vmem:[%s0 + $0xc4] sm:$0xff]
  %v41 = vld [vmem:[%s0 + $0xcc] sm:$0xff]
  %v42 = vld [vmem:[%s0 + $0xd4] sm:$0xff]
  %v43 = vld [vmem:[%s0 + $0xdc] sm:$0xf]
  %v44 = vld [vmem:[%s0 + $0xe0] sm:$0xff]
  %v45 = vld [vmem:[%s0 + $0xe8] sm:$0xff]
  %v46 = vld [vmem:[%s0 + $0xf0] sm:$0xff]
  %v47 = vld [vmem:[%s0 + $0xf8] sm:$0xf]
  %v48 = vld [vmem:[%s0 + $0xfc] sm:$0xff]
  %v49 = vld [vmem:[%s0 + $0x104] sm:$0xff]
  %v50 = vld [vmem:[%s0 + $0x10c] sm:$0xff]
  %v51 = vld [vmem:[%s0 + $0x114] sm:$0xf]
  %v52 = vld [vmem:[%s0 + $0x118] sm:$0xff]
  %v53 = vld [vmem:[%s0 + $0x120] sm:$0xff]
  %v54 = vld [vmem:[%s0 + $0x128] sm:$0xff]
  %v55 = vld [vmem:[%s0 + $0x130] sm:$0xf]
  %v56 = vld [vmem:[%s0 + $0x134] sm:$0xff]
  %v57 = vld [vmem:[%s0 + $0x13c] sm:$0xff]
  %v58 = vld [vmem:[%s0 + $0x144] sm:$0xff]
  %v59 = vld [vmem:[%s0 + $0x14c] sm:$0xf]
  %v60 = vld [vmem:[%s1] sm:$0xf]
  %v61 = vld [vmem:[%s1 + $0x4] sm:$0xf]
  %v62 = vld [vmem:[%s1 + $0x8] sm:$0xf]
  %v63 = vld [vmem:[%s1 + $0xc] sm:$0xf]
  %v64 = vld [vmem:[%s1 + $0x10] sm:$0xf]
  %v65 = vld [vmem:[%s1 + $0x14] sm:$0xf]
  %v66 = vld [vmem:[%s1 + $0x18] sm:$0xf]
  %v67 = vld [vmem:[%s1 + $0x1c] sm:$0xf]
  %v68 = vld [vmem:[%s1 + $0x20] sm:$0xf]
  %v69 = vld [vmem:[%s1 + $0x24] sm:$0xf]
  %v70 = vld [vmem:[%s1 + $0x28] sm:$0xf]
  %v71 = vld [vmem:[%s1 + $0x2c] sm:$0xf]
  %v72 = vld [vmem:[%s1 + $0x30] sm:$0xf]
  %v73 = vld [vmem:[%s1 + $0x34] sm:$0xf]
  %v74 = vld [vmem:[%s1 + $0x38] sm:$0xf]
  %v75 = vld [vmem:[%s1 + $0x3c] sm:$0xf]
  %v76 = vld [vmem:[%s1 + $0x40] sm:$0xf]
  %v77 = vld [vmem:[%s1 + $0x44] sm:$0xf]
  %v78 = vld [vmem:[%s1 + $0x48] sm:$0xf]
  %v79 = vld [vmem:[%s1 + $0x4c] sm:$0xf]
  %v80 = vld [vmem:[%s1 + $0x50] sm:$0xf]
  %v81 = vld [vmem:[%s1 + $0x54] sm:$0xf]
  %v82 = vld [vmem:[%s1 + $0x58] sm:$0xf]
  %v83 = vld [vmem:[%s1 + $0x5c] sm:$0xf]
  %v84 = vld [vmem:[%s1 + $0x60] sm:$0xf]
  %v85 = vld [vmem:[%s1 + $0x64] sm:$0xf]
  %v86 = vld [vmem:[%s1 + $0x68] sm:$0xf]
  %v87 = vld [vmem:[%s1 + $0x6c] sm:$0xf]
  %v88 = vld [vmem:[%s1 + $0x70] sm:$0xf]
  %v89 = vld [vmem:[%s1 + $0x74] sm:$0xf]
  %v90 = vld [vmem:[%s1 + $0x78] sm:$0xf]
  %v91 = vld [vmem:[%s1 + $0x7c] sm:$0xf]
  %v92 = vld [vmem:[%s1 + $0x80] sm:$0xf]
  %v93 = vld [vmem:[%s1 + $0x84] sm:$0xf]
  %v94 = vld [vmem:[%s1 + $0x88] sm:$0xf]
  %v95 = vld [vmem:[%s1 + $0x8c] sm:$0xf]
  %v96 = vld [vmem:[%s1 + $0x90] sm:$0xf]
  %v97 = vld [vmem:[%s1 + $0x94] sm:$0xf]
  %v98 = vld [vmem:[%s1 + $0x98] sm:$0xf]
  %v99 = vld [vmem:[%s1 + $0x9c] sm:$0xf]
  %v100 = vld [vmem:[%s1 + $0xa0] sm:$0xf]
  %v101 = vld [vmem:[%s1 + $0xa4] sm:$0xf]
  %v102 = vld [vmem:[%s1 + $0xa8] sm:$0xf]
  %v103 = vld [vmem:[%s1 + $0xac] sm:$0xf]
  %v104 = vld [vmem:[%s1 + $0xb0] sm:$0xf]
  %v105 = vld [vmem:[%s1 + $0xb4] sm:$0xf]
  %v106 = vld [vmem:[%s1 + $0xb8] sm:$0xf]
  %v107 = vld [vmem:[%s1 + $0xbc] sm:$0xf]
  %v108 = vld [vmem:[%s1 + $0xc0] sm:$0xf]
  %v109 = vld [vmem:[%s1 + $0xc4] sm:$0xf]
  %v110 = vld [vmem:[%s1 + $0xc8] sm:$0xf]
  %v111 = vld [vmem:[%s1 + $0xcc] sm:$0xf]
  %v112 = vld [vmem:[%s1 + $0xd0] sm:$0xf]
  %v113 = vld [vmem:[%s1 + $0xd4] sm:$0xf]
  %v114 = vld [vmem:[%s1 + $0xd8] sm:$0xf]
  %v115 = vld [vmem:[%s1 + $0xdc] sm:$0xf]
  %v116 = vld [vmem:[%s1 + $0xe0] sm:$0xf]
  %v117 = vld [vmem:[%s1 + $0xe4] sm:$0xf]
  %v118 = vld [vmem:[%s1 + $0xe8] sm:$0xf]
  %v119 = vld [vmem:[%s1 + $0xec] sm:$0xf]
  %v120 = vld [vmem:[%s1 + $0xf0] sm:$0xf]
  %v121 = vld [vmem:[%s1 + $0xf4] sm:$0xf]
  %v122 = vld [vmem:[%s1 + $0xf8] sm:$0xf]
  %v123 = vld [vmem:[%s1 + $0xfc] sm:$0xf]
  %v124 = vld [vmem:[%s1 + $0x100] sm:$0xf]
  %v125 = vld [vmem:[%s1 + $0x104] sm:$0xf]
  %v126 = vld [vmem:[%s1 + $0x108] sm:$0xf]
  %v127 = vld [vmem:[%s1 + $0x10c] sm:$0xf]
  %v128 = vld [vmem:[%s1 + $0x110] sm:$0xf]
  %v129 = vld [vmem:[%s1 + $0x114] sm:$0xf]
  %v130 = vld [vmem:[%s1 + $0x118] sm:$0xf]
  %v131 = vld [vmem:[%s1 + $0x11c] sm:$0xf]
  %v132 = vld [vmem:[%s1 + $0x120] sm:$0xf]
  %v133 = vld [vmem:[%s1 + $0x124] sm:$0xf]
  %v134 = vld [vmem:[%s1 + $0x128] sm:$0xf]
  %v135 = vld [vmem:[%s1 + $0x12c] sm:$0xf]
  %v136 = vld [vmem:[%s1 + $0x130] sm:$0xf]
  %v137 = vld [vmem:[%s1 + $0x134] sm:$0xf]
  %v138 = vld [vmem:[%s1 + $0x138] sm:$0xf]
  %v139 = vld [vmem:[%s1 + $0x13c] sm:$0xf]
  %v140 = vld [vmem:[%s1 + $0x140] sm:$0xf]
  %v141 = vld [vmem:[%s1 + $0x144] sm:$0xf]
  %v142 = vld [vmem:[%s1 + $0x148] sm:$0xf]
  %v143 = vld [vmem:[%s1 + $0x14c] sm:$0xf]
  %v144 = vld [vmem:[%s1 + $0x150] sm:$0xf]
  %v145 = vld [vmem:[%s1 + $0x154] sm:$0xf]
  %v146 = vld [vmem:[%s1 + $0x158] sm:$0xf]
  %v147 = vld [vmem:[%s1 + $0x15c] sm:$0xf]
  %v148 = vld [vmem:[%s1 + $0x160] sm:$0xf]
  %v149 = vld [vmem:[%s1 + $0x164] sm:$0xf]
  %v150 = vld [vmem:[%s1 + $0x168] sm:$0xf]
  %v151 = vld [vmem:[%s1 + $0x16c] sm:$0xf]
  %v152 = vld [vmem:[%s1 + $0x170] sm:$0xf]
  %v153 = vld [vmem:[%s1 + $0x174] sm:$0xf]
  %v154 = vld [vmem:[%s1 + $0x178] sm:$0xf]
  %v155 = vld [vmem:[%s1 + $0x17c] sm:$0xf]
  %v156 = vld [vmem:[%s1 + $0x180] sm:$0xf]
  %v157 = vld [vmem:[%s1 + $0x184] sm:$0xf]
  %v158 = vld [vmem:[%s1 + $0x188] sm:$0xf]
  %v159 = vld [vmem:[%s1 + $0x18c] sm:$0xf]
  %v160 = vld [vmem:[%s1 + $0x190] sm:$0xf]
  %v161 = vld [vmem:[%s1 + $0x194] sm:$0xf]
  %v162 = vld [vmem:[%s1 + $0x198] sm:$0xf]
  %v163 = vld [vmem:[%s1 + $0x19c] sm:$0xf]
  %v164 = vld [vmem:[%s1 + $0x1a0] sm:$0xf]
  %v165 = vld [vmem:[%s1 + $0x1a4] sm:$0xf]
  %v166 = vld [vmem:[%s1 + $0x1a8] sm:$0xf]
  %v167 = vld [vmem:[%s1 + $0x1ac] sm:$0xf]
  %v216 = vunpack.c.l.b16 %v12
  %v217 = vunpack.c.h.b16 %v12
  %v218 = vunpack.c.l.b16 %v13
  %v219 = vunpack.c.h.b16 %v13
  %v220 = vunpack.c.l.b16 %v14
  %v221 = vunpack.c.h.b16 %v14
  %v222 = vunpack.c.l.b16 %v15
  %v223 = vunpack.c.l.b16 %v16
  %v224 = vunpack.c.h.b16 %v16
  %v225 = vunpack.c.l.b16 %v17
  %v226 = vunpack.c.h.b16 %v17
  %v227 = vunpack.c.l.b16 %v18
  %v228 = vunpack.c.h.b16 %v18
  %v229 = vunpack.c.l.b16 %v19
  %v230 = vunpack.c.l.b16 %v20
  %v231 = vunpack.c.h.b16 %v20
  %v232 = vunpack.c.l.b16 %v21
  %v233 = vunpack.c.h.b16 %v21
  %v234 = vunpack.c.l.b16 %v22
  %v235 = vunpack.c.h.b16 %v22
  %v236 = vunpack.c.l.b16 %v23
  %v237 = vunpack.c.l.b16 %v24
  %v238 = vunpack.c.h.b16 %v24
  %v239 = vunpack.c.l.b16 %v25
  %v240 = vunpack.c.h.b16 %v25
  %v241 = vunpack.c.l.b16 %v26
  %v242 = vunpack.c.h.b16 %v26
  %v243 = vunpack.c.l.b16 %v27
  %v244 = vunpack.c.l.b16 %v28
  %v245 = vunpack.c.h.b16 %v28
  %v246 = vunpack.c.l.b16 %v29
  %v247 = vunpack.c.h.b16 %v29
  %v248 = vunpack.c.l.b16 %v30
  %v249 = vunpack.c.h.b16 %v30
  %v250 = vunpack.c.l.b16 %v31
  %v251 = vunpack.c.l.b16 %v32
  %v252 = vunpack.c.h.b16 %v32
  %v253 = vunpack.c.l.b16 %v33
  %v254 = vunpack.c.h.b16 %v33
  %v255 = vunpack.c.l.b16 %v34
  %v256 = vunpack.c.h.b16 %v34
  %v257 = vunpack.c.l.b16 %v35
  %v258 = vunpack.c.l.b16 %v36
  %v259 = vunpack.c.h.b16 %v36
  %v260 = vunpack.c.l.b16 %v37
  %v261 = vunpack.c.h.b16 %v37
  %v262 = vunpack.c.l.b16 %v38
  %v263 = vunpack.c.h.b16 %v38
  %v264 = vunpack.c.l.b16 %v39
  %v265 = vunpack.c.l.b16 %v40
  %v266 = vunpack.c.h.b16 %v40
  %v267 = vunpack.c.l.b16 %v41
  %v268 = vunpack.c.h.b16 %v41
  %v269 = vunpack.c.l.b16 %v42
  %v270 = vunpack.c.h.b16 %v42
  %v271 = vunpack.c.l.b16 %v43
  %v272 = vunpack.c.l.b16 %v44
  %v273 = vunpack.c.h.b16 %v44
  %v274 = vunpack.c.l.b16 %v45
  %v275 = vunpack.c.h.b16 %v45
  %v276 = vunpack.c.l.b16 %v46
  %v277 = vunpack.c.h.b16 %v46
  %v278 = vunpack.c.l.b16 %v47
  %v279 = vunpack.c.l.b16 %v48
  %v280 = vunpack.c.h.b16 %v48
  %v281 = vunpack.c.l.b16 %v49
  %v282 = vunpack.c.h.b16 %v49
  %v283 = vunpack.c.l.b16 %v50
  %v284 = vunpack.c.h.b16 %v50
  %v285 = vunpack.c.l.b16 %v51
  %v286 = vunpack.c.l.b16 %v52
  %v287 = vunpack.c.h.b16 %v52
  %v288 = vunpack.c.l.b16 %v53
  %v289 = vunpack.c.h.b16 %v53
  %v290 = vunpack.c.l.b16 %v54
  %v291 = vunpack.c.h.b16 %v54
  %v292 = vunpack.c.l.b16 %v55
  %v293 = vunpack.c.l.b16 %v56
  %v294 = vunpack.c.h.b16 %v56
  %v295 = vunpack.c.l.b16 %v57
  %v296 = vunpack.c.h.b16 %v57
  %v297 = vunpack.c.l.b16 %v58
  %v298 = vunpack.c.h.b16 %v58
  %v299 = vunpack.c.l.b16 %v59
  %v300 = vpack.c.b16 %v223, %v216
  %v301 = vpack.c.b16 %v224, %v217
  %v302 = vpack.c.b16 %v225, %v218
  %v303 = vpack.c.b16 %v226, %v219
  %v304 = vpack.c.b16 %v227, %v220
  %v305 = vpack.c.b16 %v228, %v221
  %v306 = vpack.c.b16 %v229, %v222
  %v307 = vpack.c.b16 %v237, %v230
  %v308 = vpack.c.b16 %v238, %v231
  %v309 = vpack.c.b16 %v239, %v232
  %v310 = vpack.c.b16 %v240, %v233
  %v311 = vpack.c.b16 %v241, %v234
  %v312 = vpack.c.b16 %v242, %v235
  %v313 = vpack.c.b16 %v243, %v236
  %v314 = vpack.c.b16 %v251, %v244
  %v315 = vpack.c.b16 %v252, %v245
  %v316 = vpack.c.b16 %v253, %v246
  %v317 = vpack.c.b16 %v254, %v247
  %v318 = vpack.c.b16 %v255, %v248
  %v319 = vpack.c.b16 %v256, %v249
  %v320 = vpack.c.b16 %v257, %v250
  %v321 = vpack.c.b16 %v265, %v258
  %v322 = vpack.c.b16 %v266, %v259
  %v323 = vpack.c.b16 %v267, %v260
  %v324 = vpack.c.b16 %v268, %v261
  %v325 = vpack.c.b16 %v269, %v262
  %v326 = vpack.c.b16 %v270, %v263
  %v327 = vpack.c.b16 %v271, %v264
  %v328 = vpack.c.b16 %v279, %v272
  %v329 = vpack.c.b16 %v280, %v273
  %v330 = vpack.c.b16 %v281, %v274
  %v331 = vpack.c.b16 %v282, %v275
  %v332 = vpack.c.b16 %v283, %v276
  %v333 = vpack.c.b16 %v284, %v277
  %v334 = vpack.c.b16 %v285, %v278
  %v335 = vpack.c.b16 %v293, %v286
  %v336 = vpack.c.b16 %v294, %v287
  %v337 = vpack.c.b16 %v295, %v288
  %v338 = vpack.c.b16 %v296, %v289
  %v339 = vpack.c.b16 %v297, %v290
  %v340 = vpack.c.b16 %v298, %v291
  %v341 = vpack.c.b16 %v299, %v292
  %v486 = vunpack.c.l.b16 %v60
  %v487 = vunpack.c.l.b16 %v61
  %v488 = vunpack.c.l.b16 %v62
  %v489 = vunpack.c.l.b16 %v63
  %v490 = vunpack.c.l.b16 %v64
  %v491 = vunpack.c.l.b16 %v65
  %v492 = vunpack.c.l.b16 %v66
  %v493 = vunpack.c.l.b16 %v67
  %v494 = vunpack.c.l.b16 %v68
  %v495 = vunpack.c.l.b16 %v69
  %v496 = vunpack.c.l.b16 %v70
  %v497 = vunpack.c.l.b16 %v71
  %v498 = vunpack.c.l.b16 %v72
  %v499 = vunpack.c.l.b16 %v73
  %v500 = vunpack.c.l.b16 %v74
  %v501 = vunpack.c.l.b16 %v75
  %v502 = vunpack.c.l.b16 %v76
  %v503 = vunpack.c.l.b16 %v77
  %v504 = vunpack.c.l.b16 %v78
  %v505 = vunpack.c.l.b16 %v79
  %v506 = vunpack.c.l.b16 %v80
  %v507 = vunpack.c.l.b16 %v81
  %v508 = vunpack.c.l.b16 %v82
  %v509 = vunpack.c.l.b16 %v83
  %v510 = vunpack.c.l.b16 %v84
  %v511 = vunpack.c.l.b16 %v85
  %v512 = vunpack.c.l.b16 %v86
  %v513 = vunpack.c.l.b16 %v87
  %v514 = vunpack.c.l.b16 %v88
  %v515 = vunpack.c.l.b16 %v89
  %v516 = vunpack.c.l.b16 %v90
  %v517 = vunpack.c.l.b16 %v91
  %v518 = vunpack.c.l.b16 %v92
  %v519 = vunpack.c.l.b16 %v93
  %v520 = vunpack.c.l.b16 %v94
  %v521 = vunpack.c.l.b16 %v95
  %v522 = vunpack.c.l.b16 %v96
  %v523 = vunpack.c.l.b16 %v97
  %v524 = vunpack.c.l.b16 %v98
  %v525 = vunpack.c.l.b16 %v99
  %v526 = vunpack.c.l.b16 %v100
  %v527 = vunpack.c.l.b16 %v101
  %v528 = vunpack.c.l.b16 %v102
  %v529 = vunpack.c.l.b16 %v103
  %v530 = vunpack.c.l.b16 %v104
  %v531 = vunpack.c.l.b16 %v105
  %v532 = vunpack.c.l.b16 %v106
  %v533 = vunpack.c.l.b16 %v107
  %v534 = vunpack.c.l.b16 %v108
  %v535 = vunpack.c.l.b16 %v109
  %v536 = vunpack.c.l.b16 %v110
  %v537 = vunpack.c.l.b16 %v111
  %v538 = vunpack.c.l.b16 %v112
  %v539 = vunpack.c.l.b16 %v113
  %v540 = vunpack.c.l.b16 %v114
  %v541 = vunpack.c.l.b16 %v115
  %v542 = vunpack.c.l.b16 %v116
  %v543 = vunpack.c.l.b16 %v117
  %v544 = vunpack.c.l.b16 %v118
  %v545 = vunpack.c.l.b16 %v119
  %v546 = vunpack.c.l.b16 %v120
  %v547 = vunpack.c.l.b16 %v121
  %v548 = vunpack.c.l.b16 %v122
  %v549 = vunpack.c.l.b16 %v123
  %v550 = vunpack.c.l.b16 %v124
  %v551 = vunpack.c.l.b16 %v125
  %v552 = vunpack.c.l.b16 %v126
  %v553 = vunpack.c.l.b16 %v127
  %v554 = vunpack.c.l.b16 %v128
  %v555 = vunpack.c.l.b16 %v129
  %v556 = vunpack.c.l.b16 %v130
  %v557 = vunpack.c.l.b16 %v131
  %v558 = vunpack.c.l.b16 %v132
  %v559 = vunpack.c.l.b16 %v133
  %v560 = vunpack.c.l.b16 %v134
  %v561 = vunpack.c.l.b16 %v135
  %v562 = vunpack.c.l.b16 %v136
  %v563 = vunpack.c.l.b16 %v137
  %v564 = vunpack.c.l.b16 %v138
  %v565 = vunpack.c.l.b16 %v139
  %v566 = vunpack.c.l.b16 %v140
  %v567 = vunpack.c.l.b16 %v141
  %v568 = vunpack.c.l.b16 %v142
  %v569 = vunpack.c.l.b16 %v143
  %v570 = vunpack.c.l.b16 %v144
  %v571 = vunpack.c.l.b16 %v145
  %v572 = vunpack.c.l.b16 %v146
  %v573 = vunpack.c.l.b16 %v147
  %v574 = vunpack.c.l.b16 %v148
  %v575 = vunpack.c.l.b16 %v149
  %v576 = vunpack.c.l.b16 %v150
  %v577 = vunpack.c.l.b16 %v151
  %v578 = vunpack.c.l.b16 %v152
  %v579 = vunpack.c.l.b16 %v153
  %v580 = vunpack.c.l.b16 %v154
  %v581 = vunpack.c.l.b16 %v155
  %v582 = vunpack.c.l.b16 %v156
  %v583 = vunpack.c.l.b16 %v157
  %v584 = vunpack.c.l.b16 %v158
  %v585 = vunpack.c.l.b16 %v159
  %v586 = vunpack.c.l.b16 %v160
  %v587 = vunpack.c.l.b16 %v161
  %v588 = vunpack.c.l.b16 %v162
  %v589 = vunpack.c.l.b16 %v163
  %v590 = vunpack.c.l.b16 %v164
  %v591 = vunpack.c.l.b16 %v165
  %v592 = vunpack.c.l.b16 %v166
  %v593 = vunpack.c.l.b16 %v167
  %v594 = vpack.c.b16 %v487, %v486
  %v595 = vpack.c.b16 %v489, %v488
  %v596 = vpack.c.b16 %v491, %v490
  %v597 = vpack.c.b16 %v493, %v492
  %v598 = vpack.c.b16 %v495, %v494
  %v599 = vpack.c.b16 %v497, %v496
  %v600 = vpack.c.b16 %v499, %v498
  %v601 = vpack.c.b16 %v501, %v500
  %v602 = vpack.c.b16 %v503, %v502
  %v603 = vpack.c.b16 %v505, %v504
  %v604 = vpack.c.b16 %v507, %v506
  %v605 = vpack.c.b16 %v509, %v508
  %v606 = vpack.c.b16 %v511, %v510
  %v607 = vpack.c.b16 %v513, %v512
  %v608 = vpack.c.b16 %v515, %v514
  %v609 = vpack.c.b16 %v517, %v516
  %v610 = vpack.c.b16 %v519, %v518
  %v611 = vpack.c.b16 %v521, %v520
  %v612 = vpack.c.b16 %v523, %v522
  %v613 = vpack.c.b16 %v525, %v524
  %v614 = vpack.c.b16 %v527, %v526
  %v615 = vpack.c.b16 %v529, %v528
  %v616 = vpack.c.b16 %v531, %v530
  %v617 = vpack.c.b16 %v533, %v532
  %v618 = vpack.c.b16 %v535, %v534
  %v619 = vpack.c.b16 %v537, %v536
  %v620 = vpack.c.b16 %v539, %v538
  %v621 = vpack.c.b16 %v541, %v540
  %v622 = vpack.c.b16 %v543, %v542
  %v623 = vpack.c.b16 %v545, %v544
  %v624 = vpack.c.b16 %v547, %v546
  %v625 = vpack.c.b16 %v549, %v548
  %v626 = vpack.c.b16 %v551, %v550
  %v627 = vpack.c.b16 %v553, %v552
  %v628 = vpack.c.b16 %v555, %v554
  %v629 = vpack.c.b16 %v557, %v556
  %v630 = vpack.c.b16 %v559, %v558
  %v631 = vpack.c.b16 %v561, %v560
  %v632 = vpack.c.b16 %v563, %v562
  %v633 = vpack.c.b16 %v565, %v564
  %v634 = vpack.c.b16 %v567, %v566
  %v635 = vpack.c.b16 %v569, %v568
  %v636 = vpack.c.b16 %v571, %v570
  %v637 = vpack.c.b16 %v573, %v572
  %v638 = vpack.c.b16 %v575, %v574
  %v639 = vpack.c.b16 %v577, %v576
  %v640 = vpack.c.b16 %v579, %v578
  %v641 = vpack.c.b16 %v581, %v580
  %v642 = vpack.c.b16 %v583, %v582
  %v643 = vpack.c.b16 %v585, %v584
  %v644 = vpack.c.b16 %v587, %v586
  %v645 = vpack.c.b16 %v589, %v588
  %v646 = vpack.c.b16 %v591, %v590
  %v647 = vpack.c.b16 %v593, %v592
  %vm702 = vcmask 785408
  %v704 = vsel %vm702, %v306, 0
  %v707 = vsel %vm702, %v313, 0
  %v710 = vsel %vm702, %v320, 0
  %v713 = vsel %vm702, %v327, 0
  %v716 = vsel %vm702, %v334, 0
  %v719 = vsel %vm702, %v341, 0
  %721 = vmatprep.subr.bf16.mxu0 0
  %722 = vmatpush1.bf16.msra.mxu0 %v601
  %723 = vmatprep.subr.bf16.mxu0 0
  %724 = vmatpush1.bf16.msra.mxu0 %v600
  %725 = vmatprep.subr.bf16.mxu0 0
  %726 = vmatpush1.bf16.msra.mxu0 %v599
  %727 = vmatprep.subr.bf16.mxu0 0
  %728 = vmatpush1.bf16.msra.mxu0 %v598
  %729 = vmatprep.subr.bf16.mxu0 0
  %730 = vmatpush1.bf16.msra.mxu0 %v597
  %731 = vmatprep.subr.bf16.mxu0 0
  %732 = vmatpush1.bf16.msra.mxu0 %v596
  %733 = vmatprep.subr.bf16.mxu0 0
  %734 = vmatpush1.bf16.msra.mxu0 %v595
  %735 = vmatprep.subr.bf16.mxu0 0
  %736 = vmatpush1.bf16.msra.mxu0 %v594
  %737 = vmatprep.subr.bf16.mxu0 0
  %738 = vmatpush2.bf16.msra.mxu0 %v609
  %739 = vmatprep.subr.bf16.mxu0 0
  %740 = vmatpush2.bf16.msra.mxu0 %v608
  %741 = vmatprep.subr.bf16.mxu0 0
  %742 = vmatpush2.bf16.msra.mxu0 %v607
  %743 = vmatprep.subr.bf16.mxu0 0
  %744 = vmatpush2.bf16.msra.mxu0 %v606
  %745 = vmatprep.subr.bf16.mxu0 0
  %746 = vmatpush2.bf16.msra.mxu0 %v605
  %747 = vmatprep.subr.bf16.mxu0 0
  %748 = vmatpush2.bf16.msra.mxu0 %v604
  %749 = vmatprep.subr.bf16.mxu0 0
  %750 = vmatpush2.bf16.msra.mxu0 %v603
  %751 = vmatprep.subr.bf16.mxu0 0
  %752 = vmatpush2.bf16.msra.mxu0 %v602
  %753 = vmatprep.mubr.bf16.mxu0 %v301
  %754 = vmatmul.mubr.bf16.gmra.mxu0 %v300
  %v755 = vpop.f32.mrf.mxu0
  %v756 = vadd.f32 0.0, %v755
  %v757 = vpop.f32.mrf.mxu0
  %v758 = vpop.f32.mrf.mxu0
  %v759 = vadd.f32 0.0, %v758
  %v760 = vpop.f32.mrf.mxu0
  %761 = vmatprep.mubr.bf16.mxu0 %v308
  %762 = vmatmul.mubr.bf16.gmra.mxu0 %v307
  %v763 = vpop.f32.mrf.mxu0
  %v764 = vadd.f32 0.0, %v763
  %v765 = vpop.f32.mrf.mxu0
  %v766 = vpop.f32.mrf.mxu0
  %v767 = vadd.f32 0.0, %v766
  %v768 = vpop.f32.mrf.mxu0
  %769 = vmatprep.mubr.bf16.mxu0 %v315
  %770 = vmatmul.mubr.bf16.gmra.mxu0 %v314
  %v771 = vpop.f32.mrf.mxu0
  %v772 = vadd.f32 0.0, %v771
  %v773 = vpop.f32.mrf.mxu0
  %v774 = vpop.f32.mrf.mxu0
  %v775 = vadd.f32 0.0, %v774
  %v776 = vpop.f32.mrf.mxu0
  %777 = vmatprep.mubr.bf16.mxu0 %v322
  %778 = vmatmul.mubr.bf16.gmra.mxu0 %v321
  %v779 = vpop.f32.mrf.mxu0
  %v780 = vadd.f32 0.0, %v779
  %v781 = vpop.f32.mrf.mxu0
  %v782 = vpop.f32.mrf.mxu0
  %v783 = vadd.f32 0.0, %v782
  %v784 = vpop.f32.mrf.mxu0
  %785 = vmatprep.mubr.bf16.mxu0 %v329
  %786 = vmatmul.mubr.bf16.gmra.mxu0 %v328
  %v787 = vpop.f32.mrf.mxu0
  %v788 = vadd.f32 0.0, %v787
  %v789 = vpop.f32.mrf.mxu0
  %v790 = vpop.f32.mrf.mxu0
  %v791 = vadd.f32 0.0, %v790
  %v792 = vpop.f32.mrf.mxu0
  %793 = vmatprep.mubr.bf16.mxu0 %v336
  %794 = vmatmul.mubr.bf16.gmra.mxu0 %v335
  %v795 = vpop.f32.mrf.mxu0
  %v796 = vadd.f32 0.0, %v795
  %v797 = vpop.f32.mrf.mxu0
  %v798 = vpop.f32.mrf.mxu0
  %v799 = vadd.f32 0.0, %v798
  %v800 = vpop.f32.mrf.mxu0
  %801 = vdwg.mxu0
  %802 = vmatprep.subr.bf16.mxu0 0
  %803 = vmatpush1.bf16.msra.mxu0 %v617
  %804 = vmatprep.subr.bf16.mxu0 0
  %805 = vmatpush1.bf16.msra.mxu0 %v616
  %806 = vmatprep.subr.bf16.mxu0 0
  %807 = vmatpush1.bf16.msra.mxu0 %v615
  %808 = vmatprep.subr.bf16.mxu0 0
  %809 = vmatpush1.bf16.msra.mxu0 %v614
  %810 = vmatprep.subr.bf16.mxu0 0
  %811 = vmatpush1.bf16.msra.mxu0 %v613
  %812 = vmatprep.subr.bf16.mxu0 0
  %813 = vmatpush1.bf16.msra.mxu0 %v612
  %814 = vmatprep.subr.bf16.mxu0 0
  %815 = vmatpush1.bf16.msra.mxu0 %v611
  %816 = vmatprep.subr.bf16.mxu0 0
  %817 = vmatpush1.bf16.msra.mxu0 %v610
  %818 = vmatprep.subr.bf16.mxu0 0
  %819 = vmatpush2.bf16.msra.mxu0 %v625
  %820 = vmatprep.subr.bf16.mxu0 0
  %821 = vmatpush2.bf16.msra.mxu0 %v624
  %822 = vmatprep.subr.bf16.mxu0 0
  %823 = vmatpush2.bf16.msra.mxu0 %v623
  %824 = vmatprep.subr.bf16.mxu0 0
  %825 = vmatpush2.bf16.msra.mxu0 %v622
  %826 = vmatprep.subr.bf16.mxu0 0
  %827 = vmatpush2.bf16.msra.mxu0 %v621
  %828 = vmatprep.subr.bf16.mxu0 0
  %829 = vmatpush2.bf16.msra.mxu0 %v620
  %830 = vmatprep.subr.bf16.mxu0 0
  %831 = vmatpush2.bf16.msra.mxu0 %v619
  %832 = vmatprep.subr.bf16.mxu0 0
  %833 = vmatpush2.bf16.msra.mxu0 %v618
  %834 = vmatprep.mubr.bf16.mxu0 %v303
  %835 = vmatmul.mubr.bf16.gmra.mxu0 %v302
  %v836 = vpop.f32.mrf.mxu0
  %v837 = vadd.f32 %v756, %v836
  %v838 = vpop.f32.mrf.mxu0
  %v839 = vpop.f32.mrf.mxu0
  %v840 = vadd.f32 %v759, %v839
  %v841 = vpop.f32.mrf.mxu0
  %842 = vmatprep.mubr.bf16.mxu0 %v310
  %843 = vmatmul.mubr.bf16.gmra.mxu0 %v309
  %v844 = vpop.f32.mrf.mxu0
  %v845 = vadd.f32 %v764, %v844
  %v846 = vpop.f32.mrf.mxu0
  %v847 = vpop.f32.mrf.mxu0
  %v848 = vadd.f32 %v767, %v847
  %v849 = vpop.f32.mrf.mxu0
  %850 = vmatprep.mubr.bf16.mxu0 %v317
  %851 = vmatmul.mubr.bf16.gmra.mxu0 %v316
  %v852 = vpop.f32.mrf.mxu0
  %v853 = vadd.f32 %v772, %v852
  %v854 = vpop.f32.mrf.mxu0
  %v855 = vpop.f32.mrf.mxu0
  %v856 = vadd.f32 %v775, %v855
  %v857 = vpop.f32.mrf.mxu0
  %858 = vmatprep.mubr.bf16.mxu0 %v324
  %859 = vmatmul.mubr.bf16.gmra.mxu0 %v323
  %v860 = vpop.f32.mrf.mxu0
  %v861 = vadd.f32 %v780, %v860
  %v862 = vpop.f32.mrf.mxu0
  %v863 = vpop.f32.mrf.mxu0
  %v864 = vadd.f32 %v783, %v863
  %v865 = vpop.f32.mrf.mxu0
  %866 = vmatprep.mubr.bf16.mxu0 %v331
  %867 = vmatmul.mubr.bf16.gmra.mxu0 %v330
  %v868 = vpop.f32.mrf.mxu0
  %v869 = vadd.f32 %v788, %v868
  %v870 = vpop.f32.mrf.mxu0
  %v871 = vpop.f32.mrf.mxu0
  %v872 = vadd.f32 %v791, %v871
  %v873 = vpop.f32.mrf.mxu0
  %874 = vmatprep.mubr.bf16.mxu0 %v338
  %875 = vmatmul.mubr.bf16.gmra.mxu0 %v337
  %v876 = vpop.f32.mrf.mxu0
  %v877 = vadd.f32 %v796, %v876
  %v878 = vpop.f32.mrf.mxu0
  %v879 = vpop.f32.mrf.mxu0
  %v880 = vadd.f32 %v799, %v879
  %v881 = vpop.f32.mrf.mxu0
  %882 = vdwg.mxu0
  %883 = vmatprep.subr.bf16.mxu0 0
  %884 = vmatpush1.bf16.msra.mxu0 %v633
  %885 = vmatprep.subr.bf16.mxu0 0
  %886 = vmatpush1.bf16.msra.mxu0 %v632
  %887 = vmatprep.subr.bf16.mxu0 0
  %888 = vmatpush1.bf16.msra.mxu0 %v631
  %889 = vmatprep.subr.bf16.mxu0 0
  %890 = vmatpush1.bf16.msra.mxu0 %v630
  %891 = vmatprep.subr.bf16.mxu0 0
  %892 = vmatpush1.bf16.msra.mxu0 %v629
  %893 = vmatprep.subr.bf16.mxu0 0
  %894 = vmatpush1.bf16.msra.mxu0 %v628
  %895 = vmatprep.subr.bf16.mxu0 0
  %896 = vmatpush1.bf16.msra.mxu0 %v627
  %897 = vmatprep.subr.bf16.mxu0 0
  %898 = vmatpush1.bf16.msra.mxu0 %v626
  %899 = vmatprep.subr.bf16.mxu0 0
  %900 = vmatpush2.bf16.msra.mxu0 %v641
  %901 = vmatprep.subr.bf16.mxu0 0
  %902 = vmatpush2.bf16.msra.mxu0 %v640
  %903 = vmatprep.subr.bf16.mxu0 0
  %904 = vmatpush2.bf16.msra.mxu0 %v639
  %905 = vmatprep.subr.bf16.mxu0 0
  %906 = vmatpush2.bf16.msra.mxu0 %v638
  %907 = vmatprep.subr.bf16.mxu0 0
  %908 = vmatpush2.bf16.msra.mxu0 %v637
  %909 = vmatprep.subr.bf16.mxu0 0
  %910 = vmatpush2.bf16.msra.mxu0 %v636
  %911 = vmatprep.subr.bf16.mxu0 0
  %912 = vmatpush2.bf16.msra.mxu0 %v635
  %913 = vmatprep.subr.bf16.mxu0 0
  %914 = vmatpush2.bf16.msra.mxu0 %v634
  %915 = vmatprep.mubr.bf16.mxu0 %v305
  %916 = vmatmul.mubr.bf16.gmra.mxu0 %v304
  %v917 = vpop.f32.mrf.mxu0
  %v918 = vadd.f32 %v837, %v917
  %v919 = vpop.f32.mrf.mxu0
  %v920 = vpop.f32.mrf.mxu0
  %v921 = vadd.f32 %v840, %v920
  %v922 = vpop.f32.mrf.mxu0
  %923 = vmatprep.mubr.bf16.mxu0 %v312
  %924 = vmatmul.mubr.bf16.gmra.mxu0 %v311
  %v925 = vpop.f32.mrf.mxu0
  %v926 = vadd.f32 %v845, %v925
  %v927 = vpop.f32.mrf.mxu0
  %v928 = vpop.f32.mrf.mxu0
  %v929 = vadd.f32 %v848, %v928
  %v930 = vpop.f32.mrf.mxu0
  %931 = vmatprep.mubr.bf16.mxu0 %v319
  %932 = vmatmul.mubr.bf16.gmra.mxu0 %v318
  %v933 = vpop.f32.mrf.mxu0
  %v934 = vadd.f32 %v853, %v933
  %v935 = vpop.f32.mrf.mxu0
  %v936 = vpop.f32.mrf.mxu0
  %v937 = vadd.f32 %v856, %v936
  %v938 = vpop.f32.mrf.mxu0
  %939 = vmatprep.mubr.bf16.mxu0 %v326
  %940 = vmatmul.mubr.bf16.gmra.mxu0 %v325
  %v941 = vpop.f32.mrf.mxu0
  %v942 = vadd.f32 %v861, %v941
  %v943 = vpop.f32.mrf.mxu0
  %v944 = vpop.f32.mrf.mxu0
  %v945 = vadd.f32 %v864, %v944
  %v946 = vpop.f32.mrf.mxu0
  %947 = vmatprep.mubr.bf16.mxu0 %v333
  %948 = vmatmul.mubr.bf16.gmra.mxu0 %v332
  %v949 = vpop.f32.mrf.mxu0
  %v950 = vadd.f32 %v869, %v949
  %v951 = vpop.f32.mrf.mxu0
  %v952 = vpop.f32.mrf.mxu0
  %v953 = vadd.f32 %v872, %v952
  %v954 = vpop.f32.mrf.mxu0
  %955 = vmatprep.mubr.bf16.mxu0 %v340
  %956 = vmatmul.mubr.bf16.gmra.mxu0 %v339
  %v957 = vpop.f32.mrf.mxu0
  %v958 = vadd.f32 %v877, %v957
  %v959 = vpop.f32.mrf.mxu0
  %v960 = vpop.f32.mrf.mxu0
  %v961 = vadd.f32 %v880, %v960
  %v962 = vpop.f32.mrf.mxu0
  %963 = vdwg.mxu0
  %964 = vmatprep.subr.bf16.mxu0 0
  %965 = vmatpush1.bf16.msra.mxu0 0
  %966 = vmatprep.subr.bf16.mxu0 0
  %967 = vmatpush1.bf16.msra.mxu0 0
  %968 = vmatprep.subr.bf16.mxu0 0
  %969 = vmatpush1.bf16.msra.mxu0 %v647
  %970 = vmatprep.subr.bf16.mxu0 0
  %971 = vmatpush1.bf16.msra.mxu0 %v646
  %972 = vmatprep.subr.bf16.mxu0 0
  %973 = vmatpush1.bf16.msra.mxu0 %v645
  %974 = vmatprep.subr.bf16.mxu0 0
  %975 = vmatpush1.bf16.msra.mxu0 %v644
  %976 = vmatprep.subr.bf16.mxu0 0
  %977 = vmatpush1.bf16.msra.mxu0 %v643
  %978 = vmatprep.subr.bf16.mxu0 0
  %979 = vmatpush1.bf16.msra.mxu0 %v642
  %980 = vmatprep.subr.bf16.mxu0 0
  %981 = vmatpush2.bf16.msra.mxu0 0
  %982 = vmatprep.subr.bf16.mxu0 0
  %983 = vmatpush2.bf16.msra.mxu0 0
  %984 = vmatprep.subr.bf16.mxu0 0
  %985 = vmatpush2.bf16.msra.mxu0 0
  %986 = vmatprep.subr.bf16.mxu0 0
  %987 = vmatpush2.bf16.msra.mxu0 0
  %988 = vmatprep.subr.bf16.mxu0 0
  %989 = vmatpush2.bf16.msra.mxu0 0
  %990 = vmatprep.subr.bf16.mxu0 0
  %991 = vmatpush2.bf16.msra.mxu0 0
  %992 = vmatprep.subr.bf16.mxu0 0
  %993 = vmatpush2.bf16.msra.mxu0 0
  %994 = vmatprep.subr.bf16.mxu0 0
  %995 = vmatpush2.bf16.msra.mxu0 0
  %996 = vmatprep.mubr.bf16.mxu0 0
  %997 = vmatmul.mubr.bf16.gmra.mxu0 %v704
  %v998 = vpop.f32.mrf.mxu0
  %v999 = vadd.f32 %v918, %v998
  %v1000 = vpop.f32.mrf.mxu0
  %v1001 = vpop.f32.mrf.mxu0
  %v1002 = vadd.f32 %v921, %v1001
  %v1003 = vpop.f32.mrf.mxu0
  %1004 = vmatprep.mubr.bf16.mxu0 0
  %1005 = vmatmul.mubr.bf16.gmra.mxu0 %v707
  %v1006 = vpop.f32.mrf.mxu0
  %v1007 = vadd.f32 %v926, %v1006
  %v1008 = vpop.f32.mrf.mxu0
  %v1009 = vpop.f32.mrf.mxu0
  %v1010 = vadd.f32 %v929, %v1009
  %v1011 = vpop.f32.mrf.mxu0
  %1012 = vmatprep.mubr.bf16.mxu0 0
  %1013 = vmatmul.mubr.bf16.gmra.mxu0 %v710
  %v1014 = vpop.f32.mrf.mxu0
  %v1015 = vadd.f32 %v934, %v1014
  %v1016 = vpop.f32.mrf.mxu0
  %v1017 = vpop.f32.mrf.mxu0
  %v1018 = vadd.f32 %v937, %v1017
  %v1019 = vpop.f32.mrf.mxu0
  %1020 = vmatprep.mubr.bf16.mxu0 0
  %1021 = vmatmul.mubr.bf16.gmra.mxu0 %v713
  %v1022 = vpop.f32.mrf.mxu0
  %v1023 = vadd.f32 %v942, %v1022
  %v1024 = vpop.f32.mrf.mxu0
  %v1025 = vpop.f32.mrf.mxu0
  %v1026 = vadd.f32 %v945, %v1025
  %v1027 = vpop.f32.mrf.mxu0
  %1028 = vmatprep.mubr.bf16.mxu0 0
  %1029 = vmatmul.mubr.bf16.gmra.mxu0 %v716
  %v1030 = vpop.f32.mrf.mxu0
  %v1031 = vadd.f32 %v950, %v1030
  %v1032 = vpop.f32.mrf.mxu0
  %v1033 = vpop.f32.mrf.mxu0
  %v1034 = vadd.f32 %v953, %v1033
  %v1035 = vpop.f32.mrf.mxu0
  %1036 = vmatprep.mubr.bf16.mxu0 0
  %1037 = vmatmul.mubr.bf16.gmra.mxu0 %v719
  %v1038 = vpop.f32.mrf.mxu0
  %v1039 = vadd.f32 %v958, %v1038
  %v1040 = vpop.f32.mrf.mxu0
  %v1041 = vpop.f32.mrf.mxu0
  %v1042 = vadd.f32 %v961, %v1041
  %v1043 = vpop.f32.mrf.mxu0
  %1044 = vdwg.mxu0
  %v1045 = vmax.f32 %v999, 0.0
  %v1046 = vmax.f32 %v1002, 0.0
  %v1047 = vmax.f32 %v1007, 0.0
  %v1048 = vmax.f32 %v1010, 0.0
  %v1049 = vmax.f32 %v1015, 0.0
  %v1050 = vmax.f32 %v1018, 0.0
  %v1051 = vmax.f32 %v1023, 0.0
  %v1052 = vmax.f32 %v1026, 0.0
  %v1053 = vmax.f32 %v1031, 0.0
  %v1054 = vmax.f32 %v1034, 0.0
  %v1055 = vmax.f32 %v1039, 0.0
  %v1056 = vmax.f32 %v1042, 0.0
  %v1057 = vpack.c.bf16 %v1046, %v1045
  %v1058 = vpack.c.bf16 %v1048, %v1047
  %v1059 = vpack.c.bf16 %v1050, %v1049
  %v1060 = vpack.c.bf16 %v1052, %v1051
  %v1061 = vpack.c.bf16 %v1054, %v1053
  %v1062 = vpack.c.bf16 %v1056, %v1055
  %v1069 = vunpack.c.l.b16 %v1057
  %v1070 = vunpack.c.h.b16 %v1057
  %v1071 = vunpack.c.l.b16 %v1058
  %v1072 = vunpack.c.h.b16 %v1058
  %v1073 = vunpack.c.l.b16 %v1059
  %v1074 = vunpack.c.h.b16 %v1059
  %v1075 = vunpack.c.l.b16 %v1060
  %v1076 = vunpack.c.h.b16 %v1060
  %v1077 = vunpack.c.l.b16 %v1061
  %v1078 = vunpack.c.h.b16 %v1061
  %v1079 = vunpack.c.l.b16 %v1062
  %v1080 = vunpack.c.h.b16 %v1062
  %v1081 = vpack.c.b16 %v1069, %v1069
  %v1082 = vpack.c.b16 %v1070, %v1070
  %v1083 = vpack.c.b16 %v1071, %v1071
  %v1084 = vpack.c.b16 %v1072, %v1072
  %v1085 = vpack.c.b16 %v1073, %v1073
  %v1086 = vpack.c.b16 %v1074, %v1074
  %v1087 = vpack.c.b16 %v1075, %v1075
  %v1088 = vpack.c.b16 %v1076, %v1076
  %v1089 = vpack.c.b16 %v1077, %v1077
  %v1090 = vpack.c.b16 %v1078, %v1078
  %v1091 = vpack.c.b16 %v1079, %v1079
  %v1092 = vpack.c.b16 %v1080, %v1080
  %1105 = vst [vmem:[%s2] sm:$0xf] %v1081
  %1106 = vst [vmem:[%s2 + $0x4] sm:$0xf] %v1082
  %1107 = vst [vmem:[%s2 + $0x8] sm:$0xf] %v1083
  %1108 = vst [vmem:[%s2 + $0xc] sm:$0xf] %v1084
  %1109 = vst [vmem:[%s2 + $0x10] sm:$0xf] %v1085
  %1110 = vst [vmem:[%s2 + $0x14] sm:$0xf] %v1086
  %1111 = vst [vmem:[%s2 + $0x18] sm:$0xf] %v1087
  %1112 = vst [vmem:[%s2 + $0x1c] sm:$0xf] %v1088
  %1113 = vst [vmem:[%s2 + $0x20] sm:$0xf] %v1089
  %1114 = vst [vmem:[%s2 + $0x24] sm:$0xf] %v1090
  %1115 = vst [vmem:[%s2 + $0x28] sm:$0xf] %v1091
  %1116 = vst [vmem:[%s2 + $0x2c] sm:$0xf] %v1092
  // Predicated region
  $region10: #{basic_block_forward.12} parent=0 // pred_check
    _
  $region11: #{basic_block_forward.12} parent=0 // pred_check_branch
    %1118 = sbr.rel (0) target = $region13
  $region12: #{basic_block_forward.12} parent=0 // pred_region
    _
  $region13: #{basic_block_forward.12} parent=0 // pred_fallthru
    _
  // Predicated region
  $region14: #{basic_block_forward.12} parent=0 // pred_check
    _
  $region15: #{basic_block_forward.12} parent=0 // pred_check_branch
    %1120 = sbr.rel (0) target = $region17
  $region16: #{basic_block_forward.12} parent=0 // pred_region
    _
  $region17: #{basic_block_forward.12} parent=0 // pred_fallthru
    _

// kernel: basic_block_forward.13
$region0: #{basic_block_forward.13}
  #allocation0 [shape = 'u32[]', space=smem, size = 0x4, offset = 0x4, fixed_abs, tag = 'smem constant byte address 0x4 - core index']
  #allocation1 [shape = 'u32[144,128]{1,0:T(1,128)}', space=vmem, size = 0x12000, scoped, tag = 'internal scratch']
  %s0 = inlined_call_operand.vmem [shape: bf16[96,756], index: 0, kind: input, shape index: {}]
  %s1 = inlined_call_operand.vmem [shape: bf16[756,128], index: 1, kind: input, shape index: {}]
  %s2 = inlined_call_operand.vmem [shape: bf16[96,128], index: 2, kind: output, shape index: {}]
  %s3 = sld [smem:[#allocation0]]
  $region18: #{basic_block_forward.13} parent=0
    _
  %s5 = ssub.s32 1, %s3
  %s6 = scalar_select 0, %s5, %s3
  // Predicated region
  $region2: #{basic_block_forward.13} parent=0 // pred_check
    _
  $region3: #{basic_block_forward.13} parent=0 // pred_check_branch
    %8 = sbr.rel (0) target = $region5
  $region4: #{basic_block_forward.13} parent=0 // pred_region
    _
  $region5: #{basic_block_forward.13} parent=0 // pred_fallthru
    _
  // Predicated region
  $region6: #{basic_block_forward.13} parent=0 // pred_check
    _
  $region7: #{basic_block_forward.13} parent=0 // pred_check_branch
    %10 = sbr.rel (0) target = $region9
  $region8: #{basic_block_forward.13} parent=0 // pred_region
    _
  $region9: #{basic_block_forward.13} parent=0 // pred_fallthru
    _
  %v12 = vld [vmem:[%s0] sm:$0xff]
  %v13 = vld [vmem:[%s0 + $0x8] sm:$0xff]
  %v14 = vld [vmem:[%s0 + $0x10] sm:$0xff]
  %v15 = vld [vmem:[%s0 + $0x18] sm:$0xff]
  %v16 = vld [vmem:[%s0 + $0x20] sm:$0xff]
  %v17 = vld [vmem:[%s0 + $0x28] sm:$0xff]
  %v18 = vld [vmem:[%s0 + $0x30] sm:$0xff]
  %v19 = vld [vmem:[%s0 + $0x38] sm:$0xff]
  %v20 = vld [vmem:[%s0 + $0x40] sm:$0xff]
  %v21 = vld [vmem:[%s0 + $0x48] sm:$0xff]
  %v22 = vld [vmem:[%s0 + $0x50] sm:$0xff]
  %v23 = vld [vmem:[%s0 + $0x58] sm:$0xff]
  %v24 = vld [vmem:[%s0 + $0x60] sm:$0xff]
  %v25 = vld [vmem:[%s0 + $0x68] sm:$0xff]
  %v26 = vld [vmem:[%s0 + $0x70] sm:$0xff]
  %v27 = vld [vmem:[%s0 + $0x78] sm:$0xff]
  %v28 = vld [vmem:[%s0 + $0x80] sm:$0xff]
  %v29 = vld [vmem:[%s0 + $0x88] sm:$0xff]
  %v30 = vld [vmem:[%s0 + $0x90] sm:$0xff]
  %v31 = vld [vmem:[%s0 + $0x98] sm:$0xff]
  %v32 = vld [vmem:[%s0 + $0xa0] sm:$0xff]
  %v33 = vld [vmem:[%s0 + $0xa8] sm:$0xff]
  %v34 = vld [vmem:[%s0 + $0xb0] sm:$0xff]
  %v35 = vld [vmem:[%s0 + $0xb8] sm:$0xff]
  %v36 = vld [vmem:[%s0 + $0xc0] sm:$0xff]
  %v37 = vld [vmem:[%s0 + $0xc8] sm:$0xff]
  %v38 = vld [vmem:[%s0 + $0xd0] sm:$0xff]
  %v39 = vld [vmem:[%s0 + $0xd8] sm:$0xff]
  %v40 = vld [vmem:[%s0 + $0xe0] sm:$0xff]
  %v41 = vld [vmem:[%s0 + $0xe8] sm:$0xff]
  %v42 = vld [vmem:[%s0 + $0xf0] sm:$0xff]
  %v43 = vld [vmem:[%s0 + $0xf8] sm:$0xff]
  %v44 = vld [vmem:[%s0 + $0x100] sm:$0xff]
  %v45 = vld [vmem:[%s0 + $0x108] sm:$0xff]
  %v46 = vld [vmem:[%s0 + $0x110] sm:$0xff]
  %v47 = vld [vmem:[%s0 + $0x118] sm:$0xff]
  %v48 = vld [vmem:[%s1] sm:$0xf]
  %v49 = vld [vmem:[%s1 + $0x4] sm:$0xf]
  %v50 = vld [vmem:[%s1 + $0x8] sm:$0xf]
  %v51 = vld [vmem:[%s1 + $0xc] sm:$0xf]
  %v52 = vld [vmem:[%s1 + $0x10] sm:$0xf]
  %v53 = vld [vmem:[%s1 + $0x14] sm:$0xf]
  %v54 = vld [vmem:[%s1 + $0x18] sm:$0xf]
  %v55 = vld [vmem:[%s1 + $0x1c] sm:$0xf]
  %v56 = vld [vmem:[%s1 + $0x20] sm:$0xf]
  %v57 = vld [vmem:[%s1 + $0x24] sm:$0xf]
  %v58 = vld [vmem:[%s1 + $0x28] sm:$0xf]
  %v59 = vld [vmem:[%s1 + $0x2c] sm:$0xf]
  %v60 = vld [vmem:[%s1 + $0x30] sm:$0xf]
  %v61 = vld [vmem:[%s1 + $0x34] sm:$0xf]
  %v62 = vld [vmem:[%s1 + $0x38] sm:$0xf]
  %v63 = vld [vmem:[%s1 + $0x3c] sm:$0xf]
  %v64 = vld [vmem:[%s1 + $0x40] sm:$0xf]
  %v65 = vld [vmem:[%s1 + $0x44] sm:$0xf]
  %v66 = vld [vmem:[%s1 + $0x48] sm:$0xf]
  %v67 = vld [vmem:[%s1 + $0x4c] sm:$0xf]
  %v68 = vld [vmem:[%s1 + $0x50] sm:$0xf]
  %v69 = vld [vmem:[%s1 + $0x54] sm:$0xf]
  %v70 = vld [vmem:[%s1 + $0x58] sm:$0xf]
  %v71 = vld [vmem:[%s1 + $0x5c] sm:$0xf]
  %v72 = vld [vmem:[%s1 + $0x60] sm:$0xf]
  %v73 = vld [vmem:[%s1 + $0x64] sm:$0xf]
  %v74 = vld [vmem:[%s1 + $0x68] sm:$0xf]
  %v75 = vld [vmem:[%s1 + $0x6c] sm:$0xf]
  %v76 = vld [vmem:[%s1 + $0x70] sm:$0xf]
  %v77 = vld [vmem:[%s1 + $0x74] sm:$0xf]
  %v78 = vld [vmem:[%s1 + $0x78] sm:$0xf]
  %v79 = vld [vmem:[%s1 + $0x7c] sm:$0xf]
  %v80 = vld [vmem:[%s1 + $0x80] sm:$0xf]
  %v81 = vld [vmem:[%s1 + $0x84] sm:$0xf]
  %v82 = vld [vmem:[%s1 + $0x88] sm:$0xf]
  %v83 = vld [vmem:[%s1 + $0x8c] sm:$0xf]
  %v84 = vld [vmem:[%s1 + $0x90] sm:$0xf]
  %v85 = vld [vmem:[%s1 + $0x94] sm:$0xf]
  %v86 = vld [vmem:[%s1 + $0x98] sm:$0xf]
  %v87 = vld [vmem:[%s1 + $0x9c] sm:$0xf]
  %v88 = vld [vmem:[%s1 + $0xa0] sm:$0xf]
  %v89 = vld [vmem:[%s1 + $0xa4] sm:$0xf]
  %v90 = vld [vmem:[%s1 + $0xa8] sm:$0xf]
  %v91 = vld [vmem:[%s1 + $0xac] sm:$0xf]
  %v92 = vld [vmem:[%s1 + $0xb0] sm:$0xf]
  %v93 = vld [vmem:[%s1 + $0xb4] sm:$0xf]
  %v94 = vld [vmem:[%s1 + $0xb8] sm:$0xf]
  %v95 = vld [vmem:[%s1 + $0xbc] sm:$0xf]
  %v96 = vld [vmem:[%s1 + $0xc0] sm:$0xf]
  %v97 = vld [vmem:[%s1 + $0xc4] sm:$0xf]
  %v98 = vld [vmem:[%s1 + $0xc8] sm:$0xf]
  %v99 = vld [vmem:[%s1 + $0xcc] sm:$0xf]
  %v100 = vld [vmem:[%s1 + $0xd0] sm:$0xf]
  %v101 = vld [vmem:[%s1 + $0xd4] sm:$0xf]
  %v102 = vld [vmem:[%s1 + $0xd8] sm:$0xf]
  %v103 = vld [vmem:[%s1 + $0xdc] sm:$0xf]
  %v104 = vld [vmem:[%s1 + $0xe0] sm:$0xf]
  %v105 = vld [vmem:[%s1 + $0xe4] sm:$0xf]
  %v106 = vld [vmem:[%s1 + $0xe8] sm:$0xf]
  %v107 = vld [vmem:[%s1 + $0xec] sm:$0xf]
  %v108 = vld [vmem:[%s1 + $0xf0] sm:$0xf]
  %v109 = vld [vmem:[%s1 + $0xf4] sm:$0xf]
  %v110 = vld [vmem:[%s1 + $0xf8] sm:$0xf]
  %v111 = vld [vmem:[%s1 + $0xfc] sm:$0xf]
  %v112 = vld [vmem:[%s1 + $0x100] sm:$0xf]
  %v113 = vld [vmem:[%s1 + $0x104] sm:$0xf]
  %v114 = vld [vmem:[%s1 + $0x108] sm:$0xf]
  %v115 = vld [vmem:[%s1 + $0x10c] sm:$0xf]
  %v116 = vld [vmem:[%s1 + $0x110] sm:$0xf]
  %v117 = vld [vmem:[%s1 + $0x114] sm:$0xf]
  %v118 = vld [vmem:[%s1 + $0x118] sm:$0xf]
  %v119 = vld [vmem:[%s1 + $0x11c] sm:$0xf]
  %v120 = vld [vmem:[%s1 + $0x120] sm:$0xf]
  %v121 = vld [vmem:[%s1 + $0x124] sm:$0xf]
  %v122 = vld [vmem:[%s1 + $0x128] sm:$0xf]
  %v123 = vld [vmem:[%s1 + $0x12c] sm:$0xf]
  %v124 = vld [vmem:[%s1 + $0x130] sm:$0xf]
  %v125 = vld [vmem:[%s1 + $0x134] sm:$0xf]
  %v126 = vld [vmem:[%s1 + $0x138] sm:$0xf]
  %v127 = vld [vmem:[%s1 + $0x13c] sm:$0xf]
  %v128 = vld [vmem:[%s1 + $0x140] sm:$0xf]
  %v129 = vld [vmem:[%s1 + $0x144] sm:$0xf]
  %v130 = vld [vmem:[%s1 + $0x148] sm:$0xf]
  %v131 = vld [vmem:[%s1 + $0x14c] sm:$0xf]
  %v132 = vld [vmem:[%s1 + $0x150] sm:$0xf]
  %v133 = vld [vmem:[%s1 + $0x154] sm:$0xf]
  %v134 = vld [vmem:[%s1 + $0x158] sm:$0xf]
  %v135 = vld [vmem:[%s1 + $0x15c] sm:$0xf]
  %v136 = vld [vmem:[%s1 + $0x160] sm:$0xf]
  %v137 = vld [vmem:[%s1 + $0x164] sm:$0xf]
  %v138 = vld [vmem:[%s1 + $0x168] sm:$0xf]
  %v139 = vld [vmem:[%s1 + $0x16c] sm:$0xf]
  %v140 = vld [vmem:[%s1 + $0x170] sm:$0xf]
  %v141 = vld [vmem:[%s1 + $0x174] sm:$0xf]
  %v142 = vld [vmem:[%s1 + $0x178] sm:$0x3]
  %v179 = vunpack.c.l.b16 %v12
  %v180 = vunpack.c.h.b16 %v12
  %v181 = vunpack.c.l.b16 %v13
  %v182 = vunpack.c.h.b16 %v13
  %v183 = vunpack.c.l.b16 %v14
  %v184 = vunpack.c.h.b16 %v14
  %v185 = vunpack.c.l.b16 %v15
  %v186 = vunpack.c.h.b16 %v15
  %v187 = vunpack.c.l.b16 %v16
  %v188 = vunpack.c.h.b16 %v16
  %v189 = vunpack.c.l.b16 %v17
  %v190 = vunpack.c.h.b16 %v17
  %v191 = vunpack.c.l.b16 %v18
  %v192 = vunpack.c.h.b16 %v18
  %v193 = vunpack.c.l.b16 %v19
  %v194 = vunpack.c.h.b16 %v19
  %v195 = vunpack.c.l.b16 %v20
  %v196 = vunpack.c.h.b16 %v20
  %v197 = vunpack.c.l.b16 %v21
  %v198 = vunpack.c.h.b16 %v21
  %v199 = vunpack.c.l.b16 %v22
  %v200 = vunpack.c.h.b16 %v22
  %v201 = vunpack.c.l.b16 %v23
  %v202 = vunpack.c.h.b16 %v23
  %v203 = vunpack.c.l.b16 %v24
  %v204 = vunpack.c.h.b16 %v24
  %v205 = vunpack.c.l.b16 %v25
  %v206 = vunpack.c.h.b16 %v25
  %v207 = vunpack.c.l.b16 %v26
  %v208 = vunpack.c.h.b16 %v26
  %v209 = vunpack.c.l.b16 %v27
  %v210 = vunpack.c.h.b16 %v27
  %v211 = vunpack.c.l.b16 %v28
  %v212 = vunpack.c.h.b16 %v28
  %v213 = vunpack.c.l.b16 %v29
  %v214 = vunpack.c.h.b16 %v29
  %v215 = vunpack.c.l.b16 %v30
  %v216 = vunpack.c.h.b16 %v30
  %v217 = vunpack.c.l.b16 %v31
  %v218 = vunpack.c.h.b16 %v31
  %v219 = vunpack.c.l.b16 %v32
  %v220 = vunpack.c.h.b16 %v32
  %v221 = vunpack.c.l.b16 %v33
  %v222 = vunpack.c.h.b16 %v33
  %v223 = vunpack.c.l.b16 %v34
  %v224 = vunpack.c.h.b16 %v34
  %v225 = vunpack.c.l.b16 %v35
  %v226 = vunpack.c.h.b16 %v35
  %v227 = vunpack.c.l.b16 %v36
  %v228 = vunpack.c.h.b16 %v36
  %v229 = vunpack.c.l.b16 %v37
  %v230 = vunpack.c.h.b16 %v37
  %v231 = vunpack.c.l.b16 %v38
  %v232 = vunpack.c.h.b16 %v38
  %v233 = vunpack.c.l.b16 %v39
  %v234 = vunpack.c.h.b16 %v39
  %v235 = vunpack.c.l.b16 %v40
  %v236 = vunpack.c.h.b16 %v40
  %v237 = vunpack.c.l.b16 %v41
  %v238 = vunpack.c.h.b16 %v41
  %v239 = vunpack.c.l.b16 %v42
  %v240 = vunpack.c.h.b16 %v42
  %v241 = vunpack.c.l.b16 %v43
  %v242 = vunpack.c.h.b16 %v43
  %v243 = vunpack.c.l.b16 %v44
  %v244 = vunpack.c.h.b16 %v44
  %v245 = vunpack.c.l.b16 %v45
  %v246 = vunpack.c.h.b16 %v45
  %v247 = vunpack.c.l.b16 %v46
  %v248 = vunpack.c.h.b16 %v46
  %v249 = vunpack.c.l.b16 %v47
  %v250 = vunpack.c.h.b16 %v47
  %v251 = vpack.c.b16 %v185, %v179
  %v252 = vpack.c.b16 %v186, %v180
  %v253 = vpack.c.b16 %v187, %v181
  %v254 = vpack.c.b16 %v188, %v182
  %v255 = vpack.c.b16 %v189, %v183
  %v256 = vpack.c.b16 %v190, %v184
  %v257 = vpack.c.b16 %v197, %v191
  %v258 = vpack.c.b16 %v198, %v192
  %v259 = vpack.c.b16 %v199, %v193
  %v260 = vpack.c.b16 %v200, %v194
  %v261 = vpack.c.b16 %v201, %v195
  %v262 = vpack.c.b16 %v202, %v196
  %v263 = vpack.c.b16 %v209, %v203
  %v264 = vpack.c.b16 %v210, %v204
  %v265 = vpack.c.b16 %v211, %v205
  %v266 = vpack.c.b16 %v212, %v206
  %v267 = vpack.c.b16 %v213, %v207
  %v268 = vpack.c.b16 %v214, %v208
  %v269 = vpack.c.b16 %v221, %v215
  %v270 = vpack.c.b16 %v222, %v216
  %v271 = vpack.c.b16 %v223, %v217
  %v272 = vpack.c.b16 %v224, %v218
  %v273 = vpack.c.b16 %v225, %v219
  %v274 = vpack.c.b16 %v226, %v220
  %v275 = vpack.c.b16 %v233, %v227
  %v276 = vpack.c.b16 %v234, %v228
  %v277 = vpack.c.b16 %v235, %v229
  %v278 = vpack.c.b16 %v236, %v230
  %v279 = vpack.c.b16 %v237, %v231
  %v280 = vpack.c.b16 %v238, %v232
  %v281 = vpack.c.b16 %v245, %v239
  %v282 = vpack.c.b16 %v246, %v240
  %v283 = vpack.c.b16 %v247, %v241
  %v284 = vpack.c.b16 %v248, %v242
  %v285 = vpack.c.b16 %v249, %v243
  %v286 = vpack.c.b16 %v250, %v244
  %v412 = vunpack.c.l.b16 %v48
  %v413 = vunpack.c.l.b16 %v49
  %v414 = vunpack.c.l.b16 %v50
  %v415 = vunpack.c.l.b16 %v51
  %v416 = vunpack.c.l.b16 %v52
  %v417 = vunpack.c.l.b16 %v53
  %v418 = vunpack.c.l.b16 %v54
  %v419 = vunpack.c.l.b16 %v55
  %v420 = vunpack.c.l.b16 %v56
  %v421 = vunpack.c.l.b16 %v57
  %v422 = vunpack.c.l.b16 %v58
  %v423 = vunpack.c.l.b16 %v59
  %v424 = vunpack.c.l.b16 %v60
  %v425 = vunpack.c.l.b16 %v61
  %v426 = vunpack.c.l.b16 %v62
  %v427 = vunpack.c.l.b16 %v63
  %v428 = vunpack.c.l.b16 %v64
  %v429 = vunpack.c.l.b16 %v65
  %v430 = vunpack.c.l.b16 %v66
  %v431 = vunpack.c.l.b16 %v67
  %v432 = vunpack.c.l.b16 %v68
  %v433 = vunpack.c.l.b16 %v69
  %v434 = vunpack.c.l.b16 %v70
  %v435 = vunpack.c.l.b16 %v71
  %v436 = vunpack.c.l.b16 %v72
  %v437 = vunpack.c.l.b16 %v73
  %v438 = vunpack.c.l.b16 %v74
  %v439 = vunpack.c.l.b16 %v75
  %v440 = vunpack.c.l.b16 %v76
  %v441 = vunpack.c.l.b16 %v77
  %v442 = vunpack.c.l.b16 %v78
  %v443 = vunpack.c.l.b16 %v79
  %v444 = vunpack.c.l.b16 %v80
  %v445 = vunpack.c.l.b16 %v81
  %v446 = vunpack.c.l.b16 %v82
  %v447 = vunpack.c.l.b16 %v83
  %v448 = vunpack.c.l.b16 %v84
  %v449 = vunpack.c.l.b16 %v85
  %v450 = vunpack.c.l.b16 %v86
  %v451 = vunpack.c.l.b16 %v87
  %v452 = vunpack.c.l.b16 %v88
  %v453 = vunpack.c.l.b16 %v89
  %v454 = vunpack.c.l.b16 %v90
  %v455 = vunpack.c.l.b16 %v91
  %v456 = vunpack.c.l.b16 %v92
  %v457 = vunpack.c.l.b16 %v93
  %v458 = vunpack.c.l.b16 %v94
  %v459 = vunpack.c.l.b16 %v95
  %v460 = vunpack.c.l.b16 %v96
  %v461 = vunpack.c.l.b16 %v97
  %v462 = vunpack.c.l.b16 %v98
  %v463 = vunpack.c.l.b16 %v99
  %v464 = vunpack.c.l.b16 %v100
  %v465 = vunpack.c.l.b16 %v101
  %v466 = vunpack.c.l.b16 %v102
  %v467 = vunpack.c.l.b16 %v103
  %v468 = vunpack.c.l.b16 %v104
  %v469 = vunpack.c.l.b16 %v105
  %v470 = vunpack.c.l.b16 %v106
  %v471 = vunpack.c.l.b16 %v107
  %v472 = vunpack.c.l.b16 %v108
  %v473 = vunpack.c.l.b16 %v109
  %v474 = vunpack.c.l.b16 %v110
  %v475 = vunpack.c.l.b16 %v111
  %v476 = vunpack.c.l.b16 %v112
  %v477 = vunpack.c.l.b16 %v113
  %v478 = vunpack.c.l.b16 %v114
  %v479 = vunpack.c.l.b16 %v115
  %v480 = vunpack.c.l.b16 %v116
  %v481 = vunpack.c.l.b16 %v117
  %v482 = vunpack.c.l.b16 %v118
  %v483 = vunpack.c.l.b16 %v119
  %v484 = vunpack.c.l.b16 %v120
  %v485 = vunpack.c.l.b16 %v121
  %v486 = vunpack.c.l.b16 %v122
  %v487 = vunpack.c.l.b16 %v123
  %v488 = vunpack.c.l.b16 %v124
  %v489 = vunpack.c.l.b16 %v125
  %v490 = vunpack.c.l.b16 %v126
  %v491 = vunpack.c.l.b16 %v127
  %v492 = vunpack.c.l.b16 %v128
  %v493 = vunpack.c.l.b16 %v129
  %v494 = vunpack.c.l.b16 %v130
  %v495 = vunpack.c.l.b16 %v131
  %v496 = vunpack.c.l.b16 %v132
  %v497 = vunpack.c.l.b16 %v133
  %v498 = vunpack.c.l.b16 %v134
  %v499 = vunpack.c.l.b16 %v135
  %v500 = vunpack.c.l.b16 %v136
  %v501 = vunpack.c.l.b16 %v137
  %v502 = vunpack.c.l.b16 %v138
  %v503 = vunpack.c.l.b16 %v139
  %v504 = vunpack.c.l.b16 %v140
  %v505 = vunpack.c.l.b16 %v141
  %v506 = vunpack.c.l.b16 %v142
  %v507 = vpack.c.b16 %v413, %v412
  %v508 = vpack.c.b16 %v415, %v414
  %v509 = vpack.c.b16 %v417, %v416
  %v510 = vpack.c.b16 %v419, %v418
  %v511 = vpack.c.b16 %v421, %v420
  %v512 = vpack.c.b16 %v423, %v422
  %v513 = vpack.c.b16 %v425, %v424
  %v514 = vpack.c.b16 %v427, %v426
  %v515 = vpack.c.b16 %v429, %v428
  %v516 = vpack.c.b16 %v431, %v430
  %v517 = vpack.c.b16 %v433, %v432
  %v518 = vpack.c.b16 %v435, %v434
  %v519 = vpack.c.b16 %v437, %v436
  %v520 = vpack.c.b16 %v439, %v438
  %v521 = vpack.c.b16 %v441, %v440
  %v522 = vpack.c.b16 %v443, %v442
  %v523 = vpack.c.b16 %v445, %v444
  %v524 = vpack.c.b16 %v447, %v446
  %v525 = vpack.c.b16 %v449, %v448
  %v526 = vpack.c.b16 %v451, %v450
  %v527 = vpack.c.b16 %v453, %v452
  %v528 = vpack.c.b16 %v455, %v454
  %v529 = vpack.c.b16 %v457, %v456
  %v530 = vpack.c.b16 %v459, %v458
  %v531 = vpack.c.b16 %v461, %v460
  %v532 = vpack.c.b16 %v463, %v462
  %v533 = vpack.c.b16 %v465, %v464
  %v534 = vpack.c.b16 %v467, %v466
  %v535 = vpack.c.b16 %v469, %v468
  %v536 = vpack.c.b16 %v471, %v470
  %v537 = vpack.c.b16 %v473, %v472
  %v538 = vpack.c.b16 %v475, %v474
  %v539 = vpack.c.b16 %v477, %v476
  %v540 = vpack.c.b16 %v479, %v478
  %v541 = vpack.c.b16 %v481, %v480
  %v542 = vpack.c.b16 %v483, %v482
  %v543 = vpack.c.b16 %v485, %v484
  %v544 = vpack.c.b16 %v487, %v486
  %v545 = vpack.c.b16 %v489, %v488
  %v546 = vpack.c.b16 %v491, %v490
  %v547 = vpack.c.b16 %v493, %v492
  %v548 = vpack.c.b16 %v495, %v494
  %v549 = vpack.c.b16 %v497, %v496
  %v550 = vpack.c.b16 %v499, %v498
  %v551 = vpack.c.b16 %v501, %v500
  %v552 = vpack.c.b16 %v503, %v502
  %v553 = vpack.c.b16 %v505, %v504
  %v554 = vpack.c.b16 %v506, %v506
  %vm602 = vcmask 949248
  %v604 = vsel %vm602, %v256, 0
  %v607 = vsel %vm602, %v262, 0
  %v610 = vsel %vm602, %v268, 0
  %v613 = vsel %vm602, %v274, 0
  %v616 = vsel %vm602, %v280, 0
  %v619 = vsel %vm602, %v286, 0
  %vm621 = vcmask 1041408
  %v623 = vsel %vm621, %v554, 0
  %625 = vmatprep.subr.bf16.mxu0 0
  %626 = vmatpush1.bf16.msra.mxu0 %v514
  %627 = vmatprep.subr.bf16.mxu0 0
  %628 = vmatpush1.bf16.msra.mxu0 %v513
  %629 = vmatprep.subr.bf16.mxu0 0
  %630 = vmatpush1.bf16.msra.mxu0 %v512
  %631 = vmatprep.subr.bf16.mxu0 0
  %632 = vmatpush1.bf16.msra.mxu0 %v511
  %633 = vmatprep.subr.bf16.mxu0 0
  %634 = vmatpush1.bf16.msra.mxu0 %v510
  %635 = vmatprep.subr.bf16.mxu0 0
  %636 = vmatpush1.bf16.msra.mxu0 %v509
  %637 = vmatprep.subr.bf16.mxu0 0
  %638 = vmatpush1.bf16.msra.mxu0 %v508
  %639 = vmatprep.subr.bf16.mxu0 0
  %640 = vmatpush1.bf16.msra.mxu0 %v507
  %641 = vmatprep.subr.bf16.mxu0 0
  %642 = vmatpush2.bf16.msra.mxu0 %v522
  %643 = vmatprep.subr.bf16.mxu0 0
  %644 = vmatpush2.bf16.msra.mxu0 %v521
  %645 = vmatprep.subr.bf16.mxu0 0
  %646 = vmatpush2.bf16.msra.mxu0 %v520
  %647 = vmatprep.subr.bf16.mxu0 0
  %648 = vmatpush2.bf16.msra.mxu0 %v519
  %649 = vmatprep.subr.bf16.mxu0 0
  %650 = vmatpush2.bf16.msra.mxu0 %v518
  %651 = vmatprep.subr.bf16.mxu0 0
  %652 = vmatpush2.bf16.msra.mxu0 %v517
  %653 = vmatprep.subr.bf16.mxu0 0
  %654 = vmatpush2.bf16.msra.mxu0 %v516
  %655 = vmatprep.subr.bf16.mxu0 0
  %656 = vmatpush2.bf16.msra.mxu0 %v515
  %657 = vmatprep.mubr.bf16.mxu0 %v252
  %658 = vmatmul.mubr.bf16.gmra.mxu0 %v251
  %v659 = vpop.f32.mrf.mxu0
  %v660 = vadd.f32 0.0, %v659
  %v661 = vpop.f32.mrf.mxu0
  %v662 = vpop.f32.mrf.mxu0
  %v663 = vadd.f32 0.0, %v662
  %v664 = vpop.f32.mrf.mxu0
  %665 = vmatprep.mubr.bf16.mxu0 %v258
  %666 = vmatmul.mubr.bf16.gmra.mxu0 %v257
  %v667 = vpop.f32.mrf.mxu0
  %v668 = vadd.f32 0.0, %v667
  %v669 = vpop.f32.mrf.mxu0
  %v670 = vpop.f32.mrf.mxu0
  %v671 = vadd.f32 0.0, %v670
  %v672 = vpop.f32.mrf.mxu0
  %673 = vmatprep.mubr.bf16.mxu0 %v264
  %674 = vmatmul.mubr.bf16.gmra.mxu0 %v263
  %v675 = vpop.f32.mrf.mxu0
  %v676 = vadd.f32 0.0, %v675
  %v677 = vpop.f32.mrf.mxu0
  %v678 = vpop.f32.mrf.mxu0
  %v679 = vadd.f32 0.0, %v678
  %v680 = vpop.f32.mrf.mxu0
  %681 = vmatprep.mubr.bf16.mxu0 %v270
  %682 = vmatmul.mubr.bf16.gmra.mxu0 %v269
  %v683 = vpop.f32.mrf.mxu0
  %v684 = vadd.f32 0.0, %v683
  %v685 = vpop.f32.mrf.mxu0
  %v686 = vpop.f32.mrf.mxu0
  %v687 = vadd.f32 0.0, %v686
  %v688 = vpop.f32.mrf.mxu0
  %689 = vmatprep.mubr.bf16.mxu0 %v276
  %690 = vmatmul.mubr.bf16.gmra.mxu0 %v275
  %v691 = vpop.f32.mrf.mxu0
  %v692 = vadd.f32 0.0, %v691
  %v693 = vpop.f32.mrf.mxu0
  %v694 = vpop.f32.mrf.mxu0
  %v695 = vadd.f32 0.0, %v694
  %v696 = vpop.f32.mrf.mxu0
  %697 = vmatprep.mubr.bf16.mxu0 %v282
  %698 = vmatmul.mubr.bf16.gmra.mxu0 %v281
  %v699 = vpop.f32.mrf.mxu0
  %v700 = vadd.f32 0.0, %v699
  %v701 = vpop.f32.mrf.mxu0
  %v702 = vpop.f32.mrf.mxu0
  %v703 = vadd.f32 0.0, %v702
  %v704 = vpop.f32.mrf.mxu0
  %705 = vdwg.mxu0
  %706 = vmatprep.subr.bf16.mxu0 0
  %707 = vmatpush1.bf16.msra.mxu0 %v530
  %708 = vmatprep.subr.bf16.mxu0 0
  %709 = vmatpush1.bf16.msra.mxu0 %v529
  %710 = vmatprep.subr.bf16.mxu0 0
  %711 = vmatpush1.bf16.msra.mxu0 %v528
  %712 = vmatprep.subr.bf16.mxu0 0
  %713 = vmatpush1.bf16.msra.mxu0 %v527
  %714 = vmatprep.subr.bf16.mxu0 0
  %715 = vmatpush1.bf16.msra.mxu0 %v526
  %716 = vmatprep.subr.bf16.mxu0 0
  %717 = vmatpush1.bf16.msra.mxu0 %v525
  %718 = vmatprep.subr.bf16.mxu0 0
  %719 = vmatpush1.bf16.msra.mxu0 %v524
  %720 = vmatprep.subr.bf16.mxu0 0
  %721 = vmatpush1.bf16.msra.mxu0 %v523
  %722 = vmatprep.subr.bf16.mxu0 0
  %723 = vmatpush2.bf16.msra.mxu0 %v538
  %724 = vmatprep.subr.bf16.mxu0 0
  %725 = vmatpush2.bf16.msra.mxu0 %v537
  %726 = vmatprep.subr.bf16.mxu0 0
  %727 = vmatpush2.bf16.msra.mxu0 %v536
  %728 = vmatprep.subr.bf16.mxu0 0
  %729 = vmatpush2.bf16.msra.mxu0 %v535
  %730 = vmatprep.subr.bf16.mxu0 0
  %731 = vmatpush2.bf16.msra.mxu0 %v534
  %732 = vmatprep.subr.bf16.mxu0 0
  %733 = vmatpush2.bf16.msra.mxu0 %v533
  %734 = vmatprep.subr.bf16.mxu0 0
  %735 = vmatpush2.bf16.msra.mxu0 %v532
  %736 = vmatprep.subr.bf16.mxu0 0
  %737 = vmatpush2.bf16.msra.mxu0 %v531
  %738 = vmatprep.mubr.bf16.mxu0 %v254
  %739 = vmatmul.mubr.bf16.gmra.mxu0 %v253
  %v740 = vpop.f32.mrf.mxu0
  %v741 = vadd.f32 %v660, %v740
  %v742 = vpop.f32.mrf.mxu0
  %v743 = vpop.f32.mrf.mxu0
  %v744 = vadd.f32 %v663, %v743
  %v745 = vpop.f32.mrf.mxu0
  %746 = vmatprep.mubr.bf16.mxu0 %v260
  %747 = vmatmul.mubr.bf16.gmra.mxu0 %v259
  %v748 = vpop.f32.mrf.mxu0
  %v749 = vadd.f32 %v668, %v748
  %v750 = vpop.f32.mrf.mxu0
  %v751 = vpop.f32.mrf.mxu0
  %v752 = vadd.f32 %v671, %v751
  %v753 = vpop.f32.mrf.mxu0
  %754 = vmatprep.mubr.bf16.mxu0 %v266
  %755 = vmatmul.mubr.bf16.gmra.mxu0 %v265
  %v756 = vpop.f32.mrf.mxu0
  %v757 = vadd.f32 %v676, %v756
  %v758 = vpop.f32.mrf.mxu0
  %v759 = vpop.f32.mrf.mxu0
  %v760 = vadd.f32 %v679, %v759
  %v761 = vpop.f32.mrf.mxu0
  %762 = vmatprep.mubr.bf16.mxu0 %v272
  %763 = vmatmul.mubr.bf16.gmra.mxu0 %v271
  %v764 = vpop.f32.mrf.mxu0
  %v765 = vadd.f32 %v684, %v764
  %v766 = vpop.f32.mrf.mxu0
  %v767 = vpop.f32.mrf.mxu0
  %v768 = vadd.f32 %v687, %v767
  %v769 = vpop.f32.mrf.mxu0
  %770 = vmatprep.mubr.bf16.mxu0 %v278
  %771 = vmatmul.mubr.bf16.gmra.mxu0 %v277
  %v772 = vpop.f32.mrf.mxu0
  %v773 = vadd.f32 %v692, %v772
  %v774 = vpop.f32.mrf.mxu0
  %v775 = vpop.f32.mrf.mxu0
  %v776 = vadd.f32 %v695, %v775
  %v777 = vpop.f32.mrf.mxu0
  %778 = vmatprep.mubr.bf16.mxu0 %v284
  %779 = vmatmul.mubr.bf16.gmra.mxu0 %v283
  %v780 = vpop.f32.mrf.mxu0
  %v781 = vadd.f32 %v700, %v780
  %v782 = vpop.f32.mrf.mxu0
  %v783 = vpop.f32.mrf.mxu0
  %v784 = vadd.f32 %v703, %v783
  %v785 = vpop.f32.mrf.mxu0
  %786 = vdwg.mxu0
  %787 = vmatprep.subr.bf16.mxu0 0
  %788 = vmatpush1.bf16.msra.mxu0 %v546
  %789 = vmatprep.subr.bf16.mxu0 0
  %790 = vmatpush1.bf16.msra.mxu0 %v545
  %791 = vmatprep.subr.bf16.mxu0 0
  %792 = vmatpush1.bf16.msra.mxu0 %v544
  %793 = vmatprep.subr.bf16.mxu0 0
  %794 = vmatpush1.bf16.msra.mxu0 %v543
  %795 = vmatprep.subr.bf16.mxu0 0
  %796 = vmatpush1.bf16.msra.mxu0 %v542
  %797 = vmatprep.subr.bf16.mxu0 0
  %798 = vmatpush1.bf16.msra.mxu0 %v541
  %799 = vmatprep.subr.bf16.mxu0 0
  %800 = vmatpush1.bf16.msra.mxu0 %v540
  %801 = vmatprep.subr.bf16.mxu0 0
  %802 = vmatpush1.bf16.msra.mxu0 %v539
  %803 = vmatprep.subr.bf16.mxu0 0
  %804 = vmatpush2.bf16.msra.mxu0 %v623
  %805 = vmatprep.subr.bf16.mxu0 0
  %806 = vmatpush2.bf16.msra.mxu0 %v553
  %807 = vmatprep.subr.bf16.mxu0 0
  %808 = vmatpush2.bf16.msra.mxu0 %v552
  %809 = vmatprep.subr.bf16.mxu0 0
  %810 = vmatpush2.bf16.msra.mxu0 %v551
  %811 = vmatprep.subr.bf16.mxu0 0
  %812 = vmatpush2.bf16.msra.mxu0 %v550
  %813 = vmatprep.subr.bf16.mxu0 0
  %814 = vmatpush2.bf16.msra.mxu0 %v549
  %815 = vmatprep.subr.bf16.mxu0 0
  %816 = vmatpush2.bf16.msra.mxu0 %v548
  %817 = vmatprep.subr.bf16.mxu0 0
  %818 = vmatpush2.bf16.msra.mxu0 %v547
  %819 = vmatprep.mubr.bf16.mxu0 %v604
  %820 = vmatmul.mubr.bf16.gmra.mxu0 %v255
  %v821 = vpop.f32.mrf.mxu0
  %v822 = vadd.f32 %v741, %v821
  %v823 = vpop.f32.mrf.mxu0
  %v824 = vpop.f32.mrf.mxu0
  %v825 = vadd.f32 %v744, %v824
  %v826 = vpop.f32.mrf.mxu0
  %827 = vmatprep.mubr.bf16.mxu0 %v607
  %828 = vmatmul.mubr.bf16.gmra.mxu0 %v261
  %v829 = vpop.f32.mrf.mxu0
  %v830 = vadd.f32 %v749, %v829
  %v831 = vpop.f32.mrf.mxu0
  %v832 = vpop.f32.mrf.mxu0
  %v833 = vadd.f32 %v752, %v832
  %v834 = vpop.f32.mrf.mxu0
  %835 = vmatprep.mubr.bf16.mxu0 %v610
  %836 = vmatmul.mubr.bf16.gmra.mxu0 %v267
  %v837 = vpop.f32.mrf.mxu0
  %v838 = vadd.f32 %v757, %v837
  %v839 = vpop.f32.mrf.mxu0
  %v840 = vpop.f32.mrf.mxu0
  %v841 = vadd.f32 %v760, %v840
  %v842 = vpop.f32.mrf.mxu0
  %843 = vmatprep.mubr.bf16.mxu0 %v613
  %844 = vmatmul.mubr.bf16.gmra.mxu0 %v273
  %v845 = vpop.f32.mrf.mxu0
  %v846 = vadd.f32 %v765, %v845
  %v847 = vpop.f32.mrf.mxu0
  %v848 = vpop.f32.mrf.mxu0
  %v849 = vadd.f32 %v768, %v848
  %v850 = vpop.f32.mrf.mxu0
  %851 = vmatprep.mubr.bf16.mxu0 %v616
  %852 = vmatmul.mubr.bf16.gmra.mxu0 %v279
  %v853 = vpop.f32.mrf.mxu0
  %v854 = vadd.f32 %v773, %v853
  %v855 = vpop.f32.mrf.mxu0
  %v856 = vpop.f32.mrf.mxu0
  %v857 = vadd.f32 %v776, %v856
  %v858 = vpop.f32.mrf.mxu0
  %859 = vmatprep.mubr.bf16.mxu0 %v619
  %860 = vmatmul.mubr.bf16.gmra.mxu0 %v285
  %v861 = vpop.f32.mrf.mxu0
  %v862 = vadd.f32 %v781, %v861
  %v863 = vpop.f32.mrf.mxu0
  %v864 = vpop.f32.mrf.mxu0
  %v865 = vadd.f32 %v784, %v864
  %v866 = vpop.f32.mrf.mxu0
  %867 = vdwg.mxu0
  %v868 = vmax.f32 %v822, 0.0
  %v869 = vmax.f32 %v825, 0.0
  %v870 = vmax.f32 %v830, 0.0
  %v871 = vmax.f32 %v833, 0.0
  %v872 = vmax.f32 %v838, 0.0
  %v873 = vmax.f32 %v841, 0.0
  %v874 = vmax.f32 %v846, 0.0
  %v875 = vmax.f32 %v849, 0.0
  %v876 = vmax.f32 %v854, 0.0
  %v877 = vmax.f32 %v857, 0.0
  %v878 = vmax.f32 %v862, 0.0
  %v879 = vmax.f32 %v865, 0.0
  %v880 = vpack.c.bf16 %v869, %v868
  %v881 = vpack.c.bf16 %v871, %v870
  %v882 = vpack.c.bf16 %v873, %v872
  %v883 = vpack.c.bf16 %v875, %v874
  %v884 = vpack.c.bf16 %v877, %v876
  %v885 = vpack.c.bf16 %v879, %v878
  %v892 = vunpack.c.l.b16 %v880
  %v893 = vunpack.c.h.b16 %v880
  %v894 = vunpack.c.l.b16 %v881
  %v895 = vunpack.c.h.b16 %v881
  %v896 = vunpack.c.l.b16 %v882
  %v897 = vunpack.c.h.b16 %v882
  %v898 = vunpack.c.l.b16 %v883
  %v899 = vunpack.c.h.b16 %v883
  %v900 = vunpack.c.l.b16 %v884
  %v901 = vunpack.c.h.b16 %v884
  %v902 = vunpack.c.l.b16 %v885
  %v903 = vunpack.c.h.b16 %v885
  %v904 = vpack.c.b16 %v892, %v892
  %v905 = vpack.c.b16 %v893, %v893
  %v906 = vpack.c.b16 %v894, %v894
  %v907 = vpack.c.b16 %v895, %v895
  %v908 = vpack.c.b16 %v896, %v896
  %v909 = vpack.c.b16 %v897, %v897
  %v910 = vpack.c.b16 %v898, %v898
  %v911 = vpack.c.b16 %v899, %v899
  %v912 = vpack.c.b16 %v900, %v900
  %v913 = vpack.c.b16 %v901, %v901
  %v914 = vpack.c.b16 %v902, %v902
  %v915 = vpack.c.b16 %v903, %v903
  %928 = vst [vmem:[%s2] sm:$0xf] %v904
  %929 = vst [vmem:[%s2 + $0x4] sm:$0xf] %v905
  %930 = vst [vmem:[%s2 + $0x8] sm:$0xf] %v906
  %931 = vst [vmem:[%s2 + $0xc] sm:$0xf] %v907
  %932 = vst [vmem:[%s2 + $0x10] sm:$0xf] %v908
  %933 = vst [vmem:[%s2 + $0x14] sm:$0xf] %v909
  %934 = vst [vmem:[%s2 + $0x18] sm:$0xf] %v910
  %935 = vst [vmem:[%s2 + $0x1c] sm:$0xf] %v911
  %936 = vst [vmem:[%s2 + $0x20] sm:$0xf] %v912
  %937 = vst [vmem:[%s2 + $0x24] sm:$0xf] %v913
  %938 = vst [vmem:[%s2 + $0x28] sm:$0xf] %v914
  %939 = vst [vmem:[%s2 + $0x2c] sm:$0xf] %v915
  // Predicated region
  $region10: #{basic_block_forward.13} parent=0 // pred_check
    _
  $region11: #{basic_block_forward.13} parent=0 // pred_check_branch
    %941 = sbr.rel (0) target = $region13
  $region12: #{basic_block_forward.13} parent=0 // pred_region
    _
  $region13: #{basic_block_forward.13} parent=0 // pred_fallthru
    _
  // Predicated region
  $region14: #{basic_block_forward.13} parent=0 // pred_check
    _
  $region15: #{basic_block_forward.13} parent=0 // pred_check_branch
    %943 = sbr.rel (0) target = $region17
  $region16: #{basic_block_forward.13} parent=0 // pred_region
    _
  $region17: #{basic_block_forward.13} parent=0 // pred_fallthru
    _

// kernel: basic_block_forward.10
$region0: #{basic_block_forward.10}
  #allocation0 [shape = 'u32[]', space=smem, size = 0x4, offset = 0x4, fixed_abs, tag = 'smem constant byte address 0x4 - core index']
  #allocation1 [shape = 'u32[144,128]{1,0:T(1,128)}', space=vmem, size = 0x12000, scoped, tag = 'internal scratch']
  #allocation2 [shape = 'bf16[128,64]{1,0:T(8,128)(2,1)}', space=vmem, size = 0x8000, scoped, tag = 'scratch operand']
  #allocation3 [shape = 'f32[48,128]{1,0:T(8,128)}', space=vmem, size = 0x6000, scoped, tag = 'scratch operand']
  %s0 = inlined_call_operand.vmem [shape: bf16[2,128,32], index: 0, kind: input, shape index: {}]
  %s1 = inlined_call_operand.vmem [shape: f32[2,1,128], index: 1, kind: input, shape index: {}]
  %s2 = inlined_call_operand.vmem [shape: bf16[32,32], index: 2, kind: input, shape index: {}]
  %s3 = inlined_call_operand.vmem [shape: bf16[32,64], index: 3, kind: input, shape index: {}]
  %s4 = inlined_call_operand.vmem [shape: bf16[32,128], index: 4, kind: input, shape index: {}]
  %s5 = inlined_call_operand.vmem [shape: f32[1,128], index: 5, kind: input, shape index: {}]
  %s6 = inlined_call_operand.vmem [shape: bf16[2,48,128], index: 6, kind: output, shape index: {0}]
  %s7 = inlined_call_operand.vmem [shape: f32[2,48,128], index: 7, kind: output, shape index: {1}]
  %8 = xla_tuple %s6, %s7
  %s9 = sld [smem:[#allocation0]]
  $region69: #{basic_block_forward.10} parent=0
    _
  %s11 = ssub.s32 1, %s9
  %s12 = scalar_select 0, %s11, %s9
  loop: start=0, step=1, limit=4
  $region2: #{basic_block_forward.10} parent=0 // loop_pre_header
    _
  $region3: #{basic_block_forward.10} parent=0 // loop_header
    %s14 = sphi 0, %s18
    %p15 = scmp.ge.s32.totalorder %s14, 4
    %s21 = sphi 0, %s33
    %s22 = sphi 0, %s29
    %s23 = sphi 0, %s21
    %s24 = sphi 0, %s22
    %s25 = sphi 0, %s23
    %s26 = sphi 0, %s24
    %s36 = sphi 0, %s38
    %s39 = sphi 0, %s36
    %s40 = sphi 0, %s39
    %s56 = sphi 0, %s40
    %s62 = sphi 0, %s64
    %s65 = sphi 0, %s62
    %s66 = sphi 0, %s65
    %s82 = sphi 0, %s66
    %s86 = sphi 0, %s86
    %s88 = sphi 0, %s86
    %s89 = sphi 0, %s88
    %s103 = sphi 0, %s89
    %s107 = sphi 0, %s107
    %s109 = sphi 0, %s107
    %s110 = sphi 0, %s109
    %s124 = sphi 0, %s110
    %s128 = sphi 0, %s128
    %s130 = sphi 0, %s128
    %s131 = sphi 0, %s130
    %s145 = sphi 0, %s131
    %s149 = sphi 0, %s149
    %s151 = sphi 0, %s149
    %s152 = sphi 0, %s151
    %s166 = sphi 0, %s152
    %s174 = sphi 0, %s176
    %s177 = sphi 0, %s174
    %s178 = sphi 0, %s177
    %s194 = sphi 0, %s178
    %s202 = sphi 0, %s204
    %s205 = sphi 0, %s202
    %s206 = sphi 0, %s205
    %s222 = sphi 0, %s206
  $region4: #{basic_block_forward.10} parent=0 // loop_header_branch
    %17 = sbr.rel (%p15) target = $region8
  $region5: #{basic_block_forward.10} parent=0 // loop_body
    %s19 = ssub.s32 %s14, 1
    %s20 = ssub.s32 %s14, 2
    %s27 = sadd.s32 1, %s22
    %p28 = scmp.ge.s32.totalorder %s27, 1
    %s29 = scalar_select %p28, 0, %s27
    %s30 = sadd.s32 1, %s21
    %s31 = scalar_select %p28, %s30, %s21
    %p32 = scmp.ge.s32.totalorder %s31, 2
    %s33 = scalar_select %p32, 0, %s31
    %s34 = ssub.s32 %s21, %s33
    %p35 = scmp.eq.s32.totalorder %s34, 0
    %s37 = sadd.s32 %s36, 1
    %s38 = scalar_select %p35, %s36, %s37
    %p41 = pneg %p35
    %p42 = scmp.eq.s32.totalorder %s14, 1
    %p43 = por %p41, %p42
    %p44 = scmp.ne.s32.totalorder %s36, %s39
    %p45 = scmp.eq.s32.totalorder %s14, 0
    %p46 = por %p44, %p45
    %p47 = scmp.ne.s32.totalorder %s36, %s39
    %p48 = scmp.eq.s32.totalorder %s19, 1
    %p49 = por %p47, %p48
    %p50 = scmp.ne.s32.totalorder %s39, %s40
    %p51 = scmp.eq.s32.totalorder %s19, 0
    %p52 = por %p50, %p51
    %p53 = scmp.ne.s32.totalorder %s39, %s40
    %p54 = scmp.eq.s32.totalorder %s20, 1
    %p55 = por %p53, %p54
    %p57 = scmp.ne.s32.totalorder %s40, %s56
    %p58 = scmp.eq.s32.totalorder %s20, 0
    %p59 = por %p57, %p58
    %s60 = ssub.s32 %s21, %s33
    %p61 = scmp.eq.s32.totalorder %s60, 0
    %s63 = sadd.s32 %s62, 1
    %s64 = scalar_select %p61, %s62, %s63
    %p67 = pneg %p61
    %p68 = scmp.eq.s32.totalorder %s14, 1
    %p69 = por %p67, %p68
    %p70 = scmp.ne.s32.totalorder %s62, %s65
    %p71 = scmp.eq.s32.totalorder %s14, 0
    %p72 = por %p70, %p71
    %p73 = scmp.ne.s32.totalorder %s62, %s65
    %p74 = scmp.eq.s32.totalorder %s19, 1
    %p75 = por %p73, %p74
    %p76 = scmp.ne.s32.totalorder %s65, %s66
    %p77 = scmp.eq.s32.totalorder %s19, 0
    %p78 = por %p76, %p77
    %p79 = scmp.ne.s32.totalorder %s65, %s66
    %p80 = scmp.eq.s32.totalorder %s20, 1
    %p81 = por %p79, %p80
    %p83 = scmp.ne.s32.totalorder %s66, %s82
    %p84 = scmp.eq.s32.totalorder %s20, 0
    %p85 = por %p83, %p84
    %s87 = sadd.s32 %s86, 1
    %p90 = scmp.eq.s32.totalorder %s14, 1
    %p91 = scmp.ne.s32.totalorder %s86, %s88
    %p92 = scmp.eq.s32.totalorder %s14, 0
    %p93 = por %p91, %p92
    %p94 = scmp.ne.s32.totalorder %s86, %s88
    %p95 = scmp.eq.s32.totalorder %s19, 1
    %p96 = por %p94, %p95
    %p97 = scmp.ne.s32.totalorder %s88, %s89
    %p98 = scmp.eq.s32.totalorder %s19, 0
    %p99 = por %p97, %p98
    %p100 = scmp.ne.s32.totalorder %s88, %s89
    %p101 = scmp.eq.s32.totalorder %s20, 1
    %p102 = por %p100, %p101
    %p104 = scmp.ne.s32.totalorder %s89, %s103
    %p105 = scmp.eq.s32.totalorder %s20, 0
    %p106 = por %p104, %p105
    %s108 = sadd.s32 %s107, 1
    %p111 = scmp.eq.s32.totalorder %s14, 1
    %p112 = scmp.ne.s32.totalorder %s107, %s109
    %p113 = scmp.eq.s32.totalorder %s14, 0
    %p114 = por %p112, %p113
    %p115 = scmp.ne.s32.totalorder %s107, %s109
    %p116 = scmp.eq.s32.totalorder %s19, 1
    %p117 = por %p115, %p116
    %p118 = scmp.ne.s32.totalorder %s109, %s110
    %p119 = scmp.eq.s32.totalorder %s19, 0
    %p120 = por %p118, %p119
    %p121 = scmp.ne.s32.totalorder %s109, %s110
    %p122 = scmp.eq.s32.totalorder %s20, 1
    %p123 = por %p121, %p122
    %p125 = scmp.ne.s32.totalorder %s110, %s124
    %p126 = scmp.eq.s32.totalorder %s20, 0
    %p127 = por %p125, %p126
    %s129 = sadd.s32 %s128, 1
    %p132 = scmp.eq.s32.totalorder %s14, 1
    %p133 = scmp.ne.s32.totalorder %s128, %s130
    %p134 = scmp.eq.s32.totalorder %s14, 0
    %p135 = por %p133, %p134
    %p136 = scmp.ne.s32.totalorder %s128, %s130
    %p137 = scmp.eq.s32.totalorder %s19, 1
    %p138 = por %p136, %p137
    %p139 = scmp.ne.s32.totalorder %s130, %s131
    %p140 = scmp.eq.s32.totalorder %s19, 0
    %p141 = por %p139, %p140
    %p142 = scmp.ne.s32.totalorder %s130, %s131
    %p143 = scmp.eq.s32.totalorder %s20, 1
    %p144 = por %p142, %p143
    %p146 = scmp.ne.s32.totalorder %s131, %s145
    %p147 = scmp.eq.s32.totalorder %s20, 0
    %p148 = por %p146, %p147
    %s150 = sadd.s32 %s149, 1
    %p153 = scmp.eq.s32.totalorder %s14, 1
    %p154 = scmp.ne.s32.totalorder %s149, %s151
    %p155 = scmp.eq.s32.totalorder %s14, 0
    %p156 = por %p154, %p155
    %p157 = scmp.ne.s32.totalorder %s149, %s151
    %p158 = scmp.eq.s32.totalorder %s19, 1
    %p159 = por %p157, %p158
    %p160 = scmp.ne.s32.totalorder %s151, %s152
    %p161 = scmp.eq.s32.totalorder %s19, 0
    %p162 = por %p160, %p161
    %p163 = scmp.ne.s32.totalorder %s151, %s152
    %p164 = scmp.eq.s32.totalorder %s20, 1
    %p165 = por %p163, %p164
    %p167 = scmp.ne.s32.totalorder %s152, %s166
    %p168 = scmp.eq.s32.totalorder %s20, 0
    %p169 = por %p167, %p168
    %s170 = ssub.s32 %s21, %s33
    %s171 = ssub.s32 %s22, %s29
    %s172 = sor.u32 %s170, %s171
    %p173 = scmp.eq.s32.totalorder %s172, 0
    %s175 = sadd.s32 %s174, 1
    %s176 = scalar_select %p173, %s174, %s175
    %p179 = pneg %p173
    %p180 = scmp.eq.s32.totalorder %s14, 1
    %p181 = por %p179, %p180
    %p182 = scmp.ne.s32.totalorder %s174, %s177
    %p183 = scmp.eq.s32.totalorder %s14, 0
    %p184 = por %p182, %p183
    %p185 = scmp.ne.s32.totalorder %s174, %s177
    %p186 = scmp.eq.s32.totalorder %s19, 1
    %p187 = por %p185, %p186
    %p188 = scmp.ne.s32.totalorder %s177, %s178
    %p189 = scmp.eq.s32.totalorder %s19, 0
    %p190 = por %p188, %p189
    %p191 = scmp.ne.s32.totalorder %s177, %s178
    %p192 = scmp.eq.s32.totalorder %s20, 1
    %p193 = por %p191, %p192
    %p195 = scmp.ne.s32.totalorder %s178, %s194
    %p196 = scmp.eq.s32.totalorder %s20, 0
    %p197 = por %p195, %p196
    %s198 = ssub.s32 %s21, %s33
    %s199 = ssub.s32 %s22, %s29
    %s200 = sor.u32 %s198, %s199
    %p201 = scmp.eq.s32.totalorder %s200, 0
    %s203 = sadd.s32 %s202, 1
    %s204 = scalar_select %p201, %s202, %s203
    %p207 = pneg %p201
    %p208 = scmp.eq.s32.totalorder %s14, 1
    %p209 = por %p207, %p208
    %p210 = scmp.ne.s32.totalorder %s202, %s205
    %p211 = scmp.eq.s32.totalorder %s14, 0
    %p212 = por %p210, %p211
    %p213 = scmp.ne.s32.totalorder %s202, %s205
    %p214 = scmp.eq.s32.totalorder %s19, 1
    %p215 = por %p213, %p214
    %p216 = scmp.ne.s32.totalorder %s205, %s206
    %p217 = scmp.eq.s32.totalorder %s19, 0
    %p218 = por %p216, %p217
    %p219 = scmp.ne.s32.totalorder %s205, %s206
    %p220 = scmp.eq.s32.totalorder %s20, 1
    %p221 = por %p219, %p220
    %p223 = scmp.ne.s32.totalorder %s206, %s222
    %p224 = scmp.eq.s32.totalorder %s20, 0
    %p225 = por %p223, %p224
    %p226 = scmp.le.s32.totalorder 1, %s14
    %p227 = scmp.lt.s32.totalorder %s14, 3
    %p228 = pnand %p226, %p227
    %p229 = pneg %p228
    // Predicated region
    $region9: #{basic_block_forward.10} parent=5 // pred_check
      _
    $region10: #{basic_block_forward.10} parent=5 // pred_check_branch
      %231 = sbr.rel (%p228) target = $region12
    $region11: #{basic_block_forward.10} parent=5 // pred_region
      %s232 = ssub.s32 %s14, 1
      // Predicated region
      $region13: #{basic_block_forward.10} parent=11 // pred_check
        %p233 = pneg %p99
      $region14: #{basic_block_forward.10} parent=11 // pred_check_branch
        %235 = sbr.rel (%p233) target = $region16
      $region15: #{basic_block_forward.10} parent=11 // pred_region
        _
      $region16: #{basic_block_forward.10} parent=11 // pred_fallthru
        _
      // Predicated region
      $region17: #{basic_block_forward.10} parent=11 // pred_check
        %p236 = pneg %p120
      $region18: #{basic_block_forward.10} parent=11 // pred_check_branch
        %238 = sbr.rel (%p236) target = $region20
      $region19: #{basic_block_forward.10} parent=11 // pred_region
        _
      $region20: #{basic_block_forward.10} parent=11 // pred_fallthru
        _
      // Predicated region
      $region21: #{basic_block_forward.10} parent=11 // pred_check
        %p239 = pneg %p141
      $region22: #{basic_block_forward.10} parent=11 // pred_check_branch
        %241 = sbr.rel (%p239) target = $region24
      $region23: #{basic_block_forward.10} parent=11 // pred_region
        _
      $region24: #{basic_block_forward.10} parent=11 // pred_fallthru
        _
      // Predicated region
      $region25: #{basic_block_forward.10} parent=11 // pred_check
        %p242 = pneg %p162
      $region26: #{basic_block_forward.10} parent=11 // pred_check_branch
        %244 = sbr.rel (%p242) target = $region28
      $region27: #{basic_block_forward.10} parent=11 // pred_region
        _
      $region28: #{basic_block_forward.10} parent=11 // pred_fallthru
        _
    $region12: #{basic_block_forward.10} parent=5 // pred_fallthru
      _
    %p245 = scmp.lt.s32.totalorder %s14, 2
    // Predicated region
    $region29: #{basic_block_forward.10} parent=5 // pred_check
      %p246 = pneg %p245
    $region30: #{basic_block_forward.10} parent=5 // pred_check_branch
      %248 = sbr.rel (%p246) target = $region32
    $region31: #{basic_block_forward.10} parent=5 // pred_region
      // Predicated region
      $region33: #{basic_block_forward.10} parent=31 // pred_check
        %p249 = pneg %p46
      $region34: #{basic_block_forward.10} parent=31 // pred_check_branch
        %251 = sbr.rel (%p249) target = $region36
      $region35: #{basic_block_forward.10} parent=31 // pred_region
        %p252 = scmp.lt.s32.totalorder %s21, 1
        %s253 = scalar_select %p252, %s21, 1
        %s254 = smul.addr %s253, 16
        %s255 = smul.addr %s254, 4
        %s256 = scalar_lea.vmem %s0, %s255
      $region36: #{basic_block_forward.10} parent=31 // pred_fallthru
        _
      // Predicated region
      $region37: #{basic_block_forward.10} parent=31 // pred_check
        %p257 = pneg %p72
      $region38: #{basic_block_forward.10} parent=31 // pred_check_branch
        %259 = sbr.rel (%p257) target = $region40
      $region39: #{basic_block_forward.10} parent=31 // pred_region
        %p260 = scmp.lt.s32.totalorder %s21, 1
        %s261 = scalar_select %p260, %s21, 1
        %s262 = scalar_lea.vmem %s1, %s261
      $region40: #{basic_block_forward.10} parent=31 // pred_fallthru
        _
    $region32: #{basic_block_forward.10} parent=5 // pred_fallthru
      _
    %p263 = scmp.le.s32.totalorder 1, %s14
    %p264 = scmp.lt.s32.totalorder %s14, 3
    %p265 = pnand %p263, %p264
    %p266 = pneg %p265
    // Predicated region
    $region41: #{basic_block_forward.10} parent=5 // pred_check
      _
    $region42: #{basic_block_forward.10} parent=5 // pred_check_branch
      %268 = sbr.rel (%p265) target = $region44
    $region43: #{basic_block_forward.10} parent=5 // pred_region
      %s269 = ssub.s32 %s14, 1
      %p270 = scmp.lt.s32.totalorder %s23, 1
      %s271 = scalar_select %p270, %s23, 1
      %s272 = smul.addr %s271, 16
      %s273 = smul.addr %s272, 4
      %s274 = scalar_lea.vmem %s0, %s273
      %p275 = pneg %p52
      %p276 = pneg %p49
      %p277 = scmp.lt.s32.totalorder %s23, 1
      %s278 = scalar_select %p277, %s23, 1
      %s279 = scalar_lea.vmem %s1, %s278
      %p280 = pneg %p78
      %p281 = pneg %p75
      %p282 = pneg %p99
      %p283 = pneg %p96
      %p284 = pneg %p120
      %p285 = pneg %p117
      %p286 = pneg %p141
      %p287 = pneg %p138
      %p288 = pneg %p162
      %p289 = pneg %p159
      %p290 = pneg %p190
      %p291 = pneg %p187
      %s292 = smul.u32 6, %s24
      %p293 = scmp.lt.s32.totalorder %s23, 1
      %s294 = scalar_select %p293, %s23, 1
      %p295 = scmp.lt.s32.totalorder %s292, 5
      %s296 = scalar_select %p295, %s292, 5
      %s297 = smul.addr %s294, 6
      %s298 = sadd.s32 %s296, %s297
      %s299 = smul.addr %s298, 4
      %s300 = scalar_lea.vmem %s6, %s299
      %p301 = pneg %p218
      %p302 = pneg %p215
      %s303 = smul.u32 6, %s24
      %p304 = scmp.lt.s32.totalorder %s23, 1
      %s305 = scalar_select %p304, %s23, 1
      %p306 = scmp.lt.s32.totalorder %s303, 5
      %s307 = scalar_select %p306, %s303, 5
      %s308 = smul.addr %s305, 6
      %s309 = sadd.s32 %s307, %s308
      %s310 = smul.addr %s309, 8
      %s311 = scalar_lea.vmem %s7, %s310
      %p312 = scmp.lt.s32.totalorder %s23, 1
      %s313 = scalar_select %p312, %s23, 1
      %s314 = smul.addr %s313, 16
      %s315 = smul.addr %s314, 4
      %s316 = scalar_lea.vmem %s0, %s315
      %p317 = scmp.lt.s32.totalorder %s23, 1
      %s318 = scalar_select %p317, %s23, 1
      %s319 = scalar_lea.vmem %s1, %s318
      %s320 = smul.u32 6, %s24
      %p321 = scmp.lt.s32.totalorder %s23, 1
      %s322 = scalar_select %p321, %s23, 1
      %p323 = scmp.lt.s32.totalorder %s320, 5
      %s324 = scalar_select %p323, %s320, 5
      %s325 = smul.addr %s322, 6
      %s326 = sadd.s32 %s324, %s325
      %s327 = smul.addr %s326, 4
      %s328 = scalar_lea.vmem %s6, %s327
      %s329 = smul.u32 6, %s24
      %s330 = smul.u32 6, %s24
      %p331 = scmp.lt.s32.totalorder %s23, 1
      %s332 = scalar_select %p331, %s23, 1
      %p333 = scmp.lt.s32.totalorder %s330, 5
      %s334 = scalar_select %p333, %s330, 5
      %s335 = smul.addr %s332, 6
      %s336 = sadd.s32 %s334, %s335
      %s337 = smul.addr %s336, 8
      %s338 = scalar_lea.vmem %s7, %s337
      %s339 = smul.u32 6, %s24
      %p341 = scmp.eq.s32.totalorder %s24, 0
      // Predicated region
      $region45: #{basic_block_forward.10} parent=43 // pred_check
        %p342 = pneg %p341
      $region46: #{basic_block_forward.10} parent=43 // pred_check_branch
        %344 = sbr.rel (%p342) target = $region48
      $region47: #{basic_block_forward.10} parent=43 // pred_region
        %v345 = vld [vmem:[%s316] sm:$0xf]
        %v346 = vld [vmem:[%s316 + $0x4] sm:$0xf]
        %v347 = vld [vmem:[%s316 + $0x8] sm:$0xf]
        %v348 = vld [vmem:[%s316 + $0xc] sm:$0xf]
        %v349 = vld [vmem:[%s316 + $0x10] sm:$0xf]
        %v350 = vld [vmem:[%s316 + $0x14] sm:$0xf]
        %v351 = vld [vmem:[%s316 + $0x18] sm:$0xf]
        %v352 = vld [vmem:[%s316 + $0x1c] sm:$0xf]
        %v353 = vld [vmem:[%s316 + $0x20] sm:$0xf]
        %v354 = vld [vmem:[%s316 + $0x24] sm:$0xf]
        %v355 = vld [vmem:[%s316 + $0x28] sm:$0xf]
        %v356 = vld [vmem:[%s316 + $0x2c] sm:$0xf]
        %v357 = vld [vmem:[%s316 + $0x30] sm:$0xf]
        %v358 = vld [vmem:[%s316 + $0x34] sm:$0xf]
        %v359 = vld [vmem:[%s316 + $0x38] sm:$0xf]
        %v360 = vld [vmem:[%s316 + $0x3c] sm:$0xf]
        %v361 = vld [vmem:[%s3] sm:$0xf]
        %v362 = vld [vmem:[%s3 + $0x4] sm:$0xf]
        %v363 = vld [vmem:[%s3 + $0x8] sm:$0xf]
        %v364 = vld [vmem:[%s3 + $0xc] sm:$0xf]
        %v381 = vunpack.c.l.b16 %v345
        %v382 = vunpack.c.l.b16 %v346
        %v383 = vunpack.c.l.b16 %v347
        %v384 = vunpack.c.l.b16 %v348
        %v385 = vunpack.c.l.b16 %v349
        %v386 = vunpack.c.l.b16 %v350
        %v387 = vunpack.c.l.b16 %v351
        %v388 = vunpack.c.l.b16 %v352
        %v389 = vunpack.c.l.b16 %v353
        %v390 = vunpack.c.l.b16 %v354
        %v391 = vunpack.c.l.b16 %v355
        %v392 = vunpack.c.l.b16 %v356
        %v393 = vunpack.c.l.b16 %v357
        %v394 = vunpack.c.l.b16 %v358
        %v395 = vunpack.c.l.b16 %v359
        %v396 = vunpack.c.l.b16 %v360
        %v397 = vpack.c.b16 %v382, %v381
        %v398 = vpack.c.b16 %v384, %v383
        %v399 = vpack.c.b16 %v386, %v385
        %v400 = vpack.c.b16 %v388, %v387
        %v401 = vpack.c.b16 %v390, %v389
        %v402 = vpack.c.b16 %v392, %v391
        %v403 = vpack.c.b16 %v394, %v393
        %v404 = vpack.c.b16 %v396, %v395
        %v409 = vunpack.c.l.b16 %v361
        %v410 = vunpack.c.l.b16 %v362
        %v411 = vunpack.c.l.b16 %v363
        %v412 = vunpack.c.l.b16 %v364
        %v413 = vpack.c.b16 %v410, %v409
        %v414 = vpack.c.b16 %v412, %v411
        %vm417 = vcmask 261120
        %v419 = vsel %vm417, %v397, 0
        %v422 = vsel %vm417, %v398, 0
        %v425 = vsel %vm417, %v399, 0
        %v428 = vsel %vm417, %v400, 0
        %v431 = vsel %vm417, %v401, 0
        %v434 = vsel %vm417, %v402, 0
        %v437 = vsel %vm417, %v403, 0
        %v440 = vsel %vm417, %v404, 0
        %442 = vmatprep.subr.bf16.mxu0 0
        %443 = vmatpush1.bf16.msra.mxu0 0
        %444 = vmatprep.subr.bf16.mxu0 0
        %445 = vmatpush1.bf16.msra.mxu0 0
        %446 = vmatprep.subr.bf16.mxu0 0
        %447 = vmatpush1.bf16.msra.mxu0 0
        %448 = vmatprep.subr.bf16.mxu0 0
        %449 = vmatpush1.bf16.msra.mxu0 0
        %450 = vmatprep.subr.bf16.mxu0 0
        %451 = vmatpush1.bf16.msra.mxu0 0
        %452 = vmatprep.subr.bf16.mxu0 0
        %453 = vmatpush1.bf16.msra.mxu0 0
        %454 = vmatprep.subr.bf16.mxu0 0
        %455 = vmatpush1.bf16.msra.mxu0 %v414
        %456 = vmatprep.subr.bf16.mxu0 0
        %457 = vmatpush1.bf16.msra.mxu0 %v413
        %458 = vmatprep.subr.bf16.mxu0 0
        %459 = vmatpush2.bf16.msra.mxu0 0
        %460 = vmatprep.subr.bf16.mxu0 0
        %461 = vmatpush2.bf16.msra.mxu0 0
        %462 = vmatprep.subr.bf16.mxu0 0
        %463 = vmatpush2.bf16.msra.mxu0 0
        %464 = vmatprep.subr.bf16.mxu0 0
        %465 = vmatpush2.bf16.msra.mxu0 0
        %466 = vmatprep.subr.bf16.mxu0 0
        %467 = vmatpush2.bf16.msra.mxu0 0
        %468 = vmatprep.subr.bf16.mxu0 0
        %469 = vmatpush2.bf16.msra.mxu0 0
        %470 = vmatprep.subr.bf16.mxu0 0
        %471 = vmatpush2.bf16.msra.mxu0 0
        %472 = vmatprep.subr.bf16.mxu0 0
        %473 = vmatpush2.bf16.msra.mxu0 0
        %474 = vmatprep.mubr.bf16.mxu0 0
        %475 = vmatmul.mubr.bf16.gmra.mxu0 %v419
        %v476 = vpop.f32.mrf.mxu0
        %v477 = vadd.f32 0.0, %v476
        %v478 = vpop.f32.mrf.mxu0
        %v479 = vpop.f32.mrf.mxu0
        %v480 = vadd.f32 0.0, %v479
        %v481 = vpop.f32.mrf.mxu0
        %482 = vmatprep.mubr.bf16.mxu0 0
        %483 = vmatmul.mubr.bf16.gmra.mxu0 %v422
        %v484 = vpop.f32.mrf.mxu0
        %v485 = vadd.f32 0.0, %v484
        %v486 = vpop.f32.mrf.mxu0
        %v487 = vpop.f32.mrf.mxu0
        %v488 = vadd.f32 0.0, %v487
        %v489 = vpop.f32.mrf.mxu0
        %490 = vmatprep.mubr.bf16.mxu0 0
        %491 = vmatmul.mubr.bf16.gmra.mxu0 %v425
        %v492 = vpop.f32.mrf.mxu0
        %v493 = vadd.f32 0.0, %v492
        %v494 = vpop.f32.mrf.mxu0
        %v495 = vpop.f32.mrf.mxu0
        %v496 = vadd.f32 0.0, %v495
        %v497 = vpop.f32.mrf.mxu0
        %498 = vmatprep.mubr.bf16.mxu0 0
        %499 = vmatmul.mubr.bf16.gmra.mxu0 %v428
        %v500 = vpop.f32.mrf.mxu0
        %v501 = vadd.f32 0.0, %v500
        %v502 = vpop.f32.mrf.mxu0
        %v503 = vpop.f32.mrf.mxu0
        %v504 = vadd.f32 0.0, %v503
        %v505 = vpop.f32.mrf.mxu0
        %506 = vmatprep.mubr.bf16.mxu0 0
        %507 = vmatmul.mubr.bf16.gmra.mxu0 %v431
        %v508 = vpop.f32.mrf.mxu0
        %v509 = vadd.f32 0.0, %v508
        %v510 = vpop.f32.mrf.mxu0
        %v511 = vpop.f32.mrf.mxu0
        %v512 = vadd.f32 0.0, %v511
        %v513 = vpop.f32.mrf.mxu0
        %514 = vmatprep.mubr.bf16.mxu0 0
        %515 = vmatmul.mubr.bf16.gmra.mxu0 %v434
        %v516 = vpop.f32.mrf.mxu0
        %v517 = vadd.f32 0.0, %v516
        %v518 = vpop.f32.mrf.mxu0
        %v519 = vpop.f32.mrf.mxu0
        %v520 = vadd.f32 0.0, %v519
        %v521 = vpop.f32.mrf.mxu0
        %522 = vmatprep.mubr.bf16.mxu0 0
        %523 = vmatmul.mubr.bf16.gmra.mxu0 %v437
        %v524 = vpop.f32.mrf.mxu0
        %v525 = vadd.f32 0.0, %v524
        %v526 = vpop.f32.mrf.mxu0
        %v527 = vpop.f32.mrf.mxu0
        %v528 = vadd.f32 0.0, %v527
        %v529 = vpop.f32.mrf.mxu0
        %530 = vmatprep.mubr.bf16.mxu0 0
        %531 = vmatmul.mubr.bf16.gmra.mxu0 %v440
        %v532 = vpop.f32.mrf.mxu0
        %v533 = vadd.f32 0.0, %v532
        %v534 = vpop.f32.mrf.mxu0
        %v535 = vpop.f32.mrf.mxu0
        %v536 = vadd.f32 0.0, %v535
        %v537 = vpop.f32.mrf.mxu0
        %538 = vdwg.mxu0
        %v539 = vpack.c.bf16 %v480, %v477
        %v540 = vpack.c.bf16 %v488, %v485
        %v541 = vpack.c.bf16 %v496, %v493
        %v542 = vpack.c.bf16 %v504, %v501
        %v543 = vpack.c.bf16 %v512, %v509
        %v544 = vpack.c.bf16 %v520, %v517
        %v545 = vpack.c.bf16 %v528, %v525
        %v546 = vpack.c.bf16 %v536, %v533
        %v555 = vunpack.c.l.b16 %v539
        %v556 = vunpack.c.h.b16 %v539
        %v557 = vunpack.c.l.b16 %v540
        %v558 = vunpack.c.h.b16 %v540
        %v559 = vunpack.c.l.b16 %v541
        %v560 = vunpack.c.h.b16 %v541
        %v561 = vunpack.c.l.b16 %v542
        %v562 = vunpack.c.h.b16 %v542
        %v563 = vunpack.c.l.b16 %v543
        %v564 = vunpack.c.h.b16 %v543
        %v565 = vunpack.c.l.b16 %v544
        %v566 = vunpack.c.h.b16 %v544
        %v567 = vunpack.c.l.b16 %v545
        %v568 = vunpack.c.h.b16 %v545
        %v569 = vunpack.c.l.b16 %v546
        %v570 = vunpack.c.h.b16 %v546
        %v571 = vpack.c.b16 %v555, %v555
        %v572 = vpack.c.b16 %v556, %v556
        %v573 = vpack.c.b16 %v557, %v557
        %v574 = vpack.c.b16 %v558, %v558
        %v575 = vpack.c.b16 %v559, %v559
        %v576 = vpack.c.b16 %v560, %v560
        %v577 = vpack.c.b16 %v561, %v561
        %v578 = vpack.c.b16 %v562, %v562
        %v579 = vpack.c.b16 %v563, %v563
        %v580 = vpack.c.b16 %v564, %v564
        %v581 = vpack.c.b16 %v565, %v565
        %v582 = vpack.c.b16 %v566, %v566
        %v583 = vpack.c.b16 %v567, %v567
        %v584 = vpack.c.b16 %v568, %v568
        %v585 = vpack.c.b16 %v569, %v569
        %v586 = vpack.c.b16 %v570, %v570
        %vm603 = vcmask 519168
        %604 = vst.msk [vmem:[#allocation2] sm:$0xf] %vm603, %v571
        %605 = vst.msk [vmem:[#allocation2 + $0x4] sm:$0xf] %vm603, %v572
        %606 = vst.msk [vmem:[#allocation2 + $0x8] sm:$0xf] %vm603, %v573
        %607 = vst.msk [vmem:[#allocation2 + $0xc] sm:$0xf] %vm603, %v574
        %608 = vst.msk [vmem:[#allocation2 + $0x10] sm:$0xf] %vm603, %v575
        %609 = vst.msk [vmem:[#allocation2 + $0x14] sm:$0xf] %vm603, %v576
        %610 = vst.msk [vmem:[#allocation2 + $0x18] sm:$0xf] %vm603, %v577
        %611 = vst.msk [vmem:[#allocation2 + $0x1c] sm:$0xf] %vm603, %v578
        %612 = vst.msk [vmem:[#allocation2 + $0x20] sm:$0xf] %vm603, %v579
        %613 = vst.msk [vmem:[#allocation2 + $0x24] sm:$0xf] %vm603, %v580
        %614 = vst.msk [vmem:[#allocation2 + $0x28] sm:$0xf] %vm603, %v581
        %615 = vst.msk [vmem:[#allocation2 + $0x2c] sm:$0xf] %vm603, %v582
        %616 = vst.msk [vmem:[#allocation2 + $0x30] sm:$0xf] %vm603, %v583
        %617 = vst.msk [vmem:[#allocation2 + $0x34] sm:$0xf] %vm603, %v584
        %618 = vst.msk [vmem:[#allocation2 + $0x38] sm:$0xf] %vm603, %v585
        %619 = vst.msk [vmem:[#allocation2 + $0x3c] sm:$0xf] %vm603, %v586
      $region48: #{basic_block_forward.10} parent=43 // pred_fallthru
        _
      %s620 = smul.u32 %s24, 48
      %s621 = sshra.s32 %s620, 3
      %s622 = sand.u32 %s620, 7
      %s623 = smul.addr %s621, 4
      %s624 = scalar_lea.vmem %s316, %s623
      %v625 = vld [vmem:[%s624] sm:$0xf]
      %v626 = vld [vmem:[%s624 + $0x4] sm:$0xf]
      %v627 = vld [vmem:[%s624 + $0x8] sm:$0xf]
      %v628 = vld [vmem:[%s624 + $0xc] sm:$0xf]
      %v629 = vld [vmem:[%s624 + $0x10] sm:$0xf]
      %v630 = vld [vmem:[%s624 + $0x14] sm:$0xf]
      %v631 = vld [vmem:[%s2] sm:$0xf]
      %v632 = vld [vmem:[%s2 + $0x4] sm:$0xf]
      %v633 = vld [vmem:[%s2 + $0x8] sm:$0xf]
      %v634 = vld [vmem:[%s2 + $0xc] sm:$0xf]
      %v641 = vunpack.c.l.b16 %v625
      %v642 = vunpack.c.l.b16 %v626
      %v643 = vunpack.c.l.b16 %v627
      %v644 = vunpack.c.l.b16 %v628
      %v645 = vunpack.c.l.b16 %v629
      %v646 = vunpack.c.l.b16 %v630
      %v647 = vpack.c.b16 %v642, %v641
      %v648 = vpack.c.b16 %v644, %v643
      %v649 = vpack.c.b16 %v646, %v645
      %v654 = vunpack.c.l.b16 %v631
      %v655 = vunpack.c.l.b16 %v632
      %v656 = vunpack.c.l.b16 %v633
      %v657 = vunpack.c.l.b16 %v634
      %v658 = vpack.c.b16 %v655, %v654
      %v659 = vpack.c.b16 %v657, %v656
      %vm662 = vcmask 261120
      %v664 = vsel %vm662, %v647, 0
      %v667 = vsel %vm662, %v648, 0
      %v670 = vsel %vm662, %v649, 0
      %672 = vmatprep.subr.bf16.mxu0 0
      %673 = vmatpush1.bf16.msra.mxu0 0
      %674 = vmatprep.subr.bf16.mxu0 0
      %675 = vmatpush1.bf16.msra.mxu0 0
      %676 = vmatprep.subr.bf16.mxu0 0
      %677 = vmatpush1.bf16.msra.mxu0 0
      %678 = vmatprep.subr.bf16.mxu0 0
      %679 = vmatpush1.bf16.msra.mxu0 0
      %680 = vmatprep.subr.bf16.mxu0 0
      %681 = vmatpush1.bf16.msra.mxu0 0
      %682 = vmatprep.subr.bf16.mxu0 0
      %683 = vmatpush1.bf16.msra.mxu0 0
      %684 = vmatprep.subr.bf16.mxu0 0
      %685 = vmatpush1.bf16.msra.mxu0 %v659
      %686 = vmatprep.subr.bf16.mxu0 0
      %687 = vmatpush1.bf16.msra.mxu0 %v658
      %688 = vmatprep.subr.bf16.mxu0 0
      %689 = vmatpush2.bf16.msra.mxu0 0
      %690 = vmatprep.subr.bf16.mxu0 0
      %691 = vmatpush2.bf16.msra.mxu0 0
      %692 = vmatprep.subr.bf16.mxu0 0
      %693 = vmatpush2.bf16.msra.mxu0 0
      %694 = vmatprep.subr.bf16.mxu0 0
      %695 = vmatpush2.bf16.msra.mxu0 0
      %696 = vmatprep.subr.bf16.mxu0 0
      %697 = vmatpush2.bf16.msra.mxu0 0
      %698 = vmatprep.subr.bf16.mxu0 0
      %699 = vmatpush2.bf16.msra.mxu0 0
      %700 = vmatprep.subr.bf16.mxu0 0
      %701 = vmatpush2.bf16.msra.mxu0 0
      %702 = vmatprep.subr.bf16.mxu0 0
      %703 = vmatpush2.bf16.msra.mxu0 0
      %704 = vmatprep.mubr.bf16.mxu0 0
      %705 = vmatmul.mubr.bf16.gmra.mxu0 %v664
      %v706 = vpop.f32.mrf.mxu0
      %v707 = vadd.f32 0.0, %v706
      %v708 = vpop.f32.mrf.mxu0
      %v709 = vpop.f32.mrf.mxu0
      %v710 = vadd.f32 0.0, %v709
      %v711 = vpop.f32.mrf.mxu0
      %712 = vmatprep.mubr.bf16.mxu0 0
      %713 = vmatmul.mubr.bf16.gmra.mxu0 %v667
      %v714 = vpop.f32.mrf.mxu0
      %v715 = vadd.f32 0.0, %v714
      %v716 = vpop.f32.mrf.mxu0
      %v717 = vpop.f32.mrf.mxu0
      %v718 = vadd.f32 0.0, %v717
      %v719 = vpop.f32.mrf.mxu0
      %720 = vmatprep.mubr.bf16.mxu0 0
      %721 = vmatmul.mubr.bf16.gmra.mxu0 %v670
      %v722 = vpop.f32.mrf.mxu0
      %v723 = vadd.f32 0.0, %v722
      %v724 = vpop.f32.mrf.mxu0
      %v725 = vpop.f32.mrf.mxu0
      %v726 = vadd.f32 0.0, %v725
      %v727 = vpop.f32.mrf.mxu0
      %728 = vdwg.mxu0
      %v729 = vpack.c.bf16 %v710, %v707
      %v730 = vpack.c.bf16 %v718, %v715
      %v731 = vpack.c.bf16 %v726, %v723
      %v732 = vld [vmem:[%s319] sm:$0x1]
      %v733 = vld [vmem:[%s5] sm:$0x1]
      %v735 = vlaneseq
      %v736 = vshrl.u32 %v735, 7
      %v737 = vsub.s32 0, %v736
      %v738 = vrot.slane %v733, %v737
      %740 = vst [vmem:[#allocation3] sm:$0xff] %v738
      %741 = vst [vmem:[#allocation3 + $0x8] sm:$0xff] %v738
      %742 = vst [vmem:[#allocation3 + $0x10] sm:$0xff] %v738
      %743 = vst [vmem:[#allocation3 + $0x18] sm:$0xff] %v738
      %744 = vst [vmem:[#allocation3 + $0x20] sm:$0xff] %v738
      %745 = vst [vmem:[#allocation3 + $0x28] sm:$0xff] %v738
      %v746 = vld [vmem:[#allocation2] sm:$0xf]
      %v747 = vld [vmem:[#allocation2 + $0x4] sm:$0xf]
      %v748 = vld [vmem:[#allocation2 + $0x8] sm:$0xf]
      %v749 = vld [vmem:[#allocation2 + $0xc] sm:$0xf]
      %v750 = vld [vmem:[#allocation2 + $0x10] sm:$0xf]
      %v751 = vld [vmem:[#allocation2 + $0x14] sm:$0xf]
      %v752 = vld [vmem:[#allocation2 + $0x18] sm:$0xf]
      %v753 = vld [vmem:[#allocation2 + $0x1c] sm:$0xf]
      %v754 = vld [vmem:[#allocation2 + $0x20] sm:$0xf]
      %v755 = vld [vmem:[#allocation2 + $0x24] sm:$0xf]
      %v756 = vld [vmem:[#allocation2 + $0x28] sm:$0xf]
      %v757 = vld [vmem:[#allocation2 + $0x2c] sm:$0xf]
      %v758 = vld [vmem:[#allocation2 + $0x30] sm:$0xf]
      %v759 = vld [vmem:[#allocation2 + $0x34] sm:$0xf]
      %v760 = vld [vmem:[#allocation2 + $0x38] sm:$0xf]
      %v761 = vld [vmem:[#allocation2 + $0x3c] sm:$0xf]
      %v763 = vlaneseq
      %v764 = vshrl.u32 %v763, 7
      %v765 = vsub.s32 0, %v764
      %v766 = vrot.slane %v732, %v765
      %v784 = vunpack.c.l.b16 %v746
      %v785 = vunpack.c.l.b16 %v747
      %v786 = vunpack.c.l.b16 %v748
      %v787 = vunpack.c.l.b16 %v749
      %v788 = vunpack.c.l.b16 %v750
      %v789 = vunpack.c.l.b16 %v751
      %v790 = vunpack.c.l.b16 %v752
      %v791 = vunpack.c.l.b16 %v753
      %v792 = vunpack.c.l.b16 %v754
      %v793 = vunpack.c.l.b16 %v755
      %v794 = vunpack.c.l.b16 %v756
      %v795 = vunpack.c.l.b16 %v757
      %v796 = vunpack.c.l.b16 %v758
      %v797 = vunpack.c.l.b16 %v759
      %v798 = vunpack.c.l.b16 %v760
      %v799 = vunpack.c.l.b16 %v761
      %v800 = vpack.c.b16 %v785, %v784
      %v801 = vpack.c.b16 %v787, %v786
      %v802 = vpack.c.b16 %v789, %v788
      %v803 = vpack.c.b16 %v791, %v790
      %v804 = vpack.c.b16 %v793, %v792
      %v805 = vpack.c.b16 %v795, %v794
      %v806 = vpack.c.b16 %v797, %v796
      %v807 = vpack.c.b16 %v799, %v798
      %vm808 = vcmask 130048
      %v810 = vsel %vm808, %v729, 0
      %v813 = vsel %vm808, %v730, 0
      %v816 = vsel %vm808, %v731, 0
      %v819 = vsel %vm808, %v800, 0
      %v822 = vsel %vm808, %v801, 0
      %v825 = vsel %vm808, %v802, 0
      %v828 = vsel %vm808, %v803, 0
      %v831 = vsel %vm808, %v804, 0
      %v834 = vsel %vm808, %v805, 0
      %v837 = vsel %vm808, %v806, 0
      %v840 = vsel %vm808, %v807, 0
      %842 = vmatprep.subr.bf16.mxu0 0
      %843 = vmatpush1.bf16.xpose.msra.mxu0 %v840
      %844 = vmatprep.subr.bf16.mxu0 0
      %845 = vmatpush1.bf16.xpose.msra.mxu0 %v837
      %846 = vmatprep.subr.bf16.mxu0 0
      %847 = vmatpush1.bf16.xpose.msra.mxu0 %v834
      %848 = vmatprep.subr.bf16.mxu0 0
      %849 = vmatpush1.bf16.xpose.msra.mxu0 %v831
      %850 = vmatprep.subr.bf16.mxu0 0
      %851 = vmatpush1.bf16.xpose.msra.mxu0 %v828
      %852 = vmatprep.subr.bf16.mxu0 0
      %853 = vmatpush1.bf16.xpose.msra.mxu0 %v825
      %854 = vmatprep.subr.bf16.mxu0 0
      %855 = vmatpush1.bf16.xpose.msra.mxu0 %v822
      %856 = vmatprep.subr.bf16.mxu0 0
      %857 = vmatpush1.bf16.xpose.msra.mxu0 %v819
      %858 = vmatprep.subr.bf16.mxu0 0
      %859 = vmatpush2.bf16.xpose.msra.mxu0 0
      %860 = vmatprep.subr.bf16.mxu0 0
      %861 = vmatpush2.bf16.xpose.msra.mxu0 0
      %862 = vmatprep.subr.bf16.mxu0 0
      %863 = vmatpush2.bf16.xpose.msra.mxu0 0
      %864 = vmatprep.subr.bf16.mxu0 0
      %865 = vmatpush2.bf16.xpose.msra.mxu0 0
      %866 = vmatprep.subr.bf16.mxu0 0
      %867 = vmatpush2.bf16.xpose.msra.mxu0 0
      %868 = vmatprep.subr.bf16.mxu0 0
      %869 = vmatpush2.bf16.xpose.msra.mxu0 0
      %870 = vmatprep.subr.bf16.mxu0 0
      %871 = vmatpush2.bf16.xpose.msra.mxu0 0
      %872 = vmatprep.subr.bf16.mxu0 0
      %873 = vmatpush2.bf16.xpose.msra.mxu0 0
      %874 = vmatprep.mubr.bf16.mxu0 0
      %875 = vmatmul.mubr.bf16.gmra.mxu0 %v810
      %v876 = vpop.f32.mrf.mxu0
      %v877 = vadd.f32 %v766, %v876
      %v878 = vpop.f32.mrf.mxu0
      %v879 = vpop.f32.mrf.mxu0
      %v880 = vadd.f32 %v766, %v879
      %v881 = vpop.f32.mrf.mxu0
      %882 = vmatprep.mubr.bf16.mxu0 0
      %883 = vmatmul.mubr.bf16.gmra.mxu0 %v813
      %v884 = vpop.f32.mrf.mxu0
      %v885 = vadd.f32 %v766, %v884
      %v886 = vpop.f32.mrf.mxu0
      %v887 = vpop.f32.mrf.mxu0
      %v888 = vadd.f32 %v766, %v887
      %v889 = vpop.f32.mrf.mxu0
      %890 = vmatprep.mubr.bf16.mxu0 0
      %891 = vmatmul.mubr.bf16.gmra.mxu0 %v816
      %v892 = vpop.f32.mrf.mxu0
      %v893 = vadd.f32 %v766, %v892
      %v894 = vpop.f32.mrf.mxu0
      %v895 = vpop.f32.mrf.mxu0
      %v896 = vadd.f32 %v766, %v895
      %v897 = vpop.f32.mrf.mxu0
      %898 = vdwg.mxu0
      %899 = vmax.xlane.f32.xlu0 %v877
      %v900 = vpop.xlane.xlu0 %899
      %901 = vmax.xlane.f32.xlu0 %v880
      %v902 = vpop.xlane.xlu0 %901
      %903 = vmax.xlane.f32.xlu0 %v885
      %v904 = vpop.xlane.xlu0 %903
      %905 = vmax.xlane.f32.xlu0 %v888
      %v906 = vpop.xlane.xlu0 %905
      %907 = vmax.xlane.f32.xlu0 %v893
      %v908 = vpop.xlane.xlu0 %907
      %909 = vmax.xlane.f32.xlu0 %v896
      %v910 = vpop.xlane.xlu0 %909
      %v911 = vsub.f32 %v877, %v900
      %v912 = vsub.f32 %v880, %v902
      %v913 = vsub.f32 %v885, %v904
      %v914 = vsub.f32 %v888, %v906
      %v915 = vsub.f32 %v893, %v908
      %v916 = vsub.f32 %v896, %v910
      %v917 = vmul.f32 %v911, 1.442695
      %v918 = vpow.pop %v917
      %v919 = vmul.f32 %v912, 1.442695
      %v920 = vpow.pop %v919
      %v921 = vmul.f32 %v913, 1.442695
      %v922 = vpow.pop %v921
      %v923 = vmul.f32 %v914, 1.442695
      %v924 = vpow.pop %v923
      %v925 = vmul.f32 %v915, 1.442695
      %v926 = vpow.pop %v925
      %v927 = vmul.f32 %v916, 1.442695
      %v928 = vpow.pop %v927
      %929 = vadd.xlane.f32.xlu0 %v918
      %v930 = vpop.xlane.xlu0 %929
      %931 = vadd.xlane.f32.xlu0 %v920
      %v932 = vpop.xlane.xlu0 %931
      %933 = vadd.xlane.f32.xlu0 %v922
      %v934 = vpop.xlane.xlu0 %933
      %935 = vadd.xlane.f32.xlu0 %v924
      %v936 = vpop.xlane.xlu0 %935
      %937 = vadd.xlane.f32.xlu0 %v926
      %v938 = vpop.xlane.xlu0 %937
      %939 = vadd.xlane.f32.xlu0 %v928
      %v940 = vpop.xlane.xlu0 %939
      %v941 = vrcp.pop %v930
      %v942 = vrcp.pop %v932
      %v943 = vrcp.pop %v934
      %v944 = vrcp.pop %v936
      %v945 = vrcp.pop %v938
      %v946 = vrcp.pop %v940
      %v947 = vmul.f32 %v918, %v941
      %v948 = vmul.f32 %v920, %v942
      %v949 = vmul.f32 %v922, %v943
      %v950 = vmul.f32 %v924, %v944
      %v951 = vmul.f32 %v926, %v945
      %v952 = vmul.f32 %v928, %v946
      %953 = vst [vmem:[%s338] sm:$0xff] %v947
      %954 = vst [vmem:[%s338 + $0x8] sm:$0xff] %v948
      %955 = vst [vmem:[%s338 + $0x10] sm:$0xff] %v949
      %956 = vst [vmem:[%s338 + $0x18] sm:$0xff] %v950
      %957 = vst [vmem:[%s338 + $0x20] sm:$0xff] %v951
      %958 = vst [vmem:[%s338 + $0x28] sm:$0xff] %v952
      %v959 = vpack.c.bf16 %v948, %v947
      %v960 = vpack.c.bf16 %v950, %v949
      %v961 = vpack.c.bf16 %v952, %v951
      %962 = vrot.lane.b32.xlu0 %v800, 96
      %v963 = vpop.permute.xlu0 %962
      %964 = vrot.lane.b32.xlu0 %v801, 96
      %v965 = vpop.permute.xlu0 %964
      %966 = vrot.lane.b32.xlu0 %v802, 96
      %v967 = vpop.permute.xlu0 %966
      %968 = vrot.lane.b32.xlu0 %v803, 96
      %v969 = vpop.permute.xlu0 %968
      %970 = vrot.lane.b32.xlu0 %v804, 96
      %v971 = vpop.permute.xlu0 %970
      %972 = vrot.lane.b32.xlu0 %v805, 96
      %v973 = vpop.permute.xlu0 %972
      %974 = vrot.lane.b32.xlu0 %v806, 96
      %v975 = vpop.permute.xlu0 %974
      %976 = vrot.lane.b32.xlu0 %v807, 96
      %v977 = vpop.permute.xlu0 %976
      %986 = vmatprep.subr.bf16.mxu0 0
      %987 = vmatpush1.bf16.msra.mxu0 %v977
      %988 = vmatprep.subr.bf16.mxu0 0
      %989 = vmatpush1.bf16.msra.mxu0 %v975
      %990 = vmatprep.subr.bf16.mxu0 0
      %991 = vmatpush1.bf16.msra.mxu0 %v973
      %992 = vmatprep.subr.bf16.mxu0 0
      %993 = vmatpush1.bf16.msra.mxu0 %v971
      %994 = vmatprep.subr.bf16.mxu0 0
      %995 = vmatpush1.bf16.msra.mxu0 %v969
      %996 = vmatprep.subr.bf16.mxu0 0
      %997 = vmatpush1.bf16.msra.mxu0 %v967
      %998 = vmatprep.subr.bf16.mxu0 0
      %999 = vmatpush1.bf16.msra.mxu0 %v965
      %1000 = vmatprep.subr.bf16.mxu0 0
      %1001 = vmatpush1.bf16.msra.mxu0 %v963
      %1002 = vmatprep.subr.bf16.mxu0 0
      %1003 = vmatpush2.bf16.msra.mxu0 0
      %1004 = vmatprep.subr.bf16.mxu0 0
      %1005 = vmatpush2.bf16.msra.mxu0 0
      %1006 = vmatprep.subr.bf16.mxu0 0
      %1007 = vmatpush2.bf16.msra.mxu0 0
      %1008 = vmatprep.subr.bf16.mxu0 0
      %1009 = vmatpush2.bf16.msra.mxu0 0
      %1010 = vmatprep.subr.bf16.mxu0 0
      %1011 = vmatpush2.bf16.msra.mxu0 0
      %1012 = vmatprep.subr.bf16.mxu0 0
      %1013 = vmatpush2.bf16.msra.mxu0 0
      %1014 = vmatprep.subr.bf16.mxu0 0
      %1015 = vmatpush2.bf16.msra.mxu0 0
      %1016 = vmatprep.subr.bf16.mxu0 0
      %1017 = vmatpush2.bf16.msra.mxu0 0
      %1018 = vmatprep.mubr.bf16.mxu0 0
      %1019 = vmatmul.mubr.bf16.gmra.mxu0 %v959
      %v1020 = vpop.f32.mrf.mxu0
      %v1021 = vadd.f32 0.0, %v1020
      %v1022 = vpop.f32.mrf.mxu0
      %v1023 = vpop.f32.mrf.mxu0
      %v1024 = vadd.f32 0.0, %v1023
      %v1025 = vpop.f32.mrf.mxu0
      %1026 = vmatprep.mubr.bf16.mxu0 0
      %1027 = vmatmul.mubr.bf16.gmra.mxu0 %v960
      %v1028 = vpop.f32.mrf.mxu0
      %v1029 = vadd.f32 0.0, %v1028
      %v1030 = vpop.f32.mrf.mxu0
      %v1031 = vpop.f32.mrf.mxu0
      %v1032 = vadd.f32 0.0, %v1031
      %v1033 = vpop.f32.mrf.mxu0
      %1034 = vmatprep.mubr.bf16.mxu0 0
      %1035 = vmatmul.mubr.bf16.gmra.mxu0 %v961
      %v1036 = vpop.f32.mrf.mxu0
      %v1037 = vadd.f32 0.0, %v1036
      %v1038 = vpop.f32.mrf.mxu0
      %v1039 = vpop.f32.mrf.mxu0
      %v1040 = vadd.f32 0.0, %v1039
      %v1041 = vpop.f32.mrf.mxu0
      %1042 = vdwg.mxu0
      %v1043 = vld [vmem:[#allocation3] sm:$0xff]
      %v1044 = vld [vmem:[#allocation3 + $0x8] sm:$0xff]
      %v1045 = vld [vmem:[#allocation3 + $0x10] sm:$0xff]
      %v1046 = vld [vmem:[#allocation3 + $0x18] sm:$0xff]
      %v1047 = vld [vmem:[#allocation3 + $0x20] sm:$0xff]
      %v1048 = vld [vmem:[#allocation3 + $0x28] sm:$0xff]
      %v1049 = vpack.c.bf16 %v1024, %v1021
      %v1050 = vpack.c.bf16 %v1032, %v1029
      %v1051 = vpack.c.bf16 %v1040, %v1037
      %v1052 = vld [vmem:[%s4] sm:$0xf]
      %v1053 = vld [vmem:[%s4 + $0x4] sm:$0xf]
      %v1056 = vunpack.c.l.b16 %v1052
      %v1057 = vunpack.c.l.b16 %v1053
      %v1058 = vpack.c.b16 %v1057, %v1056
      %v1061 = vsel %vm808, %v1049, 0
      %v1064 = vsel %vm808, %v1050, 0
      %v1067 = vsel %vm808, %v1051, 0
      %1069 = vmatprep.subr.bf16.mxu0 0
      %1070 = vmatpush1.bf16.msra.mxu0 0
      %1071 = vmatprep.subr.bf16.mxu0 0
      %1072 = vmatpush1.bf16.msra.mxu0 0
      %1073 = vmatprep.subr.bf16.mxu0 0
      %1074 = vmatpush1.bf16.msra.mxu0 0
      %1075 = vmatprep.subr.bf16.mxu0 0
      %1076 = vmatpush1.bf16.msra.mxu0 0
      %1077 = vmatprep.subr.bf16.mxu0 0
      %1078 = vmatpush1.bf16.msra.mxu0 0
      %1079 = vmatprep.subr.bf16.mxu0 0
      %1080 = vmatpush1.bf16.msra.mxu0 0
      %1081 = vmatprep.subr.bf16.mxu0 0
      %1082 = vmatpush1.bf16.msra.mxu0 0
      %1083 = vmatprep.subr.bf16.mxu0 0
      %1084 = vmatpush1.bf16.msra.mxu0 %v1058
      %1085 = vmatprep.subr.bf16.mxu0 0
      %1086 = vmatpush2.bf16.msra.mxu0 0
      %1087 = vmatprep.subr.bf16.mxu0 0
      %1088 = vmatpush2.bf16.msra.mxu0 0
      %1089 = vmatprep.subr.bf16.mxu0 0
      %1090 = vmatpush2.bf16.msra.mxu0 0
      %1091 = vmatprep.subr.bf16.mxu0 0
      %1092 = vmatpush2.bf16.msra.mxu0 0
      %1093 = vmatprep.subr.bf16.mxu0 0
      %1094 = vmatpush2.bf16.msra.mxu0 0
      %1095 = vmatprep.subr.bf16.mxu0 0
      %1096 = vmatpush2.bf16.msra.mxu0 0
      %1097 = vmatprep.subr.bf16.mxu0 0
      %1098 = vmatpush2.bf16.msra.mxu0 0
      %1099 = vmatprep.subr.bf16.mxu0 0
      %1100 = vmatpush2.bf16.msra.mxu0 0
      %1101 = vmatprep.mubr.bf16.mxu0 0
      %1102 = vmatmul.mubr.bf16.gmra.mxu0 %v1061
      %v1103 = vpop.f32.mrf.mxu0
      %v1104 = vadd.f32 0.0, %v1103
      %v1105 = vpop.f32.mrf.mxu0
      %v1106 = vpop.f32.mrf.mxu0
      %v1107 = vadd.f32 0.0, %v1106
      %v1108 = vpop.f32.mrf.mxu0
      %1109 = vmatprep.mubr.bf16.mxu0 0
      %1110 = vmatmul.mubr.bf16.gmra.mxu0 %v1064
      %v1111 = vpop.f32.mrf.mxu0
      %v1112 = vadd.f32 0.0, %v1111
      %v1113 = vpop.f32.mrf.mxu0
      %v1114 = vpop.f32.mrf.mxu0
      %v1115 = vadd.f32 0.0, %v1114
      %v1116 = vpop.f32.mrf.mxu0
      %1117 = vmatprep.mubr.bf16.mxu0 0
      %1118 = vmatmul.mubr.bf16.gmra.mxu0 %v1067
      %v1119 = vpop.f32.mrf.mxu0
      %v1120 = vadd.f32 0.0, %v1119
      %v1121 = vpop.f32.mrf.mxu0
      %v1122 = vpop.f32.mrf.mxu0
      %v1123 = vadd.f32 0.0, %v1122
      %v1124 = vpop.f32.mrf.mxu0
      %1125 = vdwg.mxu0
      %v1126 = vadd.f32 %v1043, %v1104
      %v1127 = vadd.f32 %v1044, %v1107
      %v1128 = vadd.f32 %v1045, %v1112
      %v1129 = vadd.f32 %v1046, %v1115
      %v1130 = vadd.f32 %v1047, %v1120
      %v1131 = vadd.f32 %v1048, %v1123
      %1132 = vst [vmem:[#allocation3] sm:$0xff] %v1126
      %1133 = vst [vmem:[#allocation3 + $0x8] sm:$0xff] %v1127
      %1134 = vst [vmem:[#allocation3 + $0x10] sm:$0xff] %v1128
      %1135 = vst [vmem:[#allocation3 + $0x18] sm:$0xff] %v1129
      %1136 = vst [vmem:[#allocation3 + $0x20] sm:$0xff] %v1130
      %1137 = vst [vmem:[#allocation3 + $0x28] sm:$0xff] %v1131
      %v1138 = vld [vmem:[#allocation2] sm:$0xf]
      %v1139 = vld [vmem:[#allocation2 + $0x4] sm:$0xf]
      %v1140 = vld [vmem:[#allocation2 + $0x8] sm:$0xf]
      %v1141 = vld [vmem:[#allocation2 + $0xc] sm:$0xf]
      %v1142 = vld [vmem:[#allocation2 + $0x10] sm:$0xf]
      %v1143 = vld [vmem:[#allocation2 + $0x14] sm:$0xf]
      %v1144 = vld [vmem:[#allocation2 + $0x18] sm:$0xf]
      %v1145 = vld [vmem:[#allocation2 + $0x1c] sm:$0xf]
      %v1146 = vld [vmem:[#allocation2 + $0x20] sm:$0xf]
      %v1147 = vld [vmem:[#allocation2 + $0x24] sm:$0xf]
      %v1148 = vld [vmem:[#allocation2 + $0x28] sm:$0xf]
      %v1149 = vld [vmem:[#allocation2 + $0x2c] sm:$0xf]
      %v1150 = vld [vmem:[#allocation2 + $0x30] sm:$0xf]
      %v1151 = vld [vmem:[#allocation2 + $0x34] sm:$0xf]
      %v1152 = vld [vmem:[#allocation2 + $0x38] sm:$0xf]
      %v1153 = vld [vmem:[#allocation2 + $0x3c] sm:$0xf]
      %1157 = vrot.lane.b32.xlu0 %v729, 112
      %v1158 = vpop.permute.xlu0 %1157
      %1159 = vrot.lane.b32.xlu0 %v730, 112
      %v1160 = vpop.permute.xlu0 %1159
      %1161 = vrot.lane.b32.xlu0 %v731, 112
      %v1162 = vpop.permute.xlu0 %1161
      %v1179 = vunpack.c.l.b16 %v1138
      %v1180 = vunpack.c.l.b16 %v1139
      %v1181 = vunpack.c.l.b16 %v1140
      %v1182 = vunpack.c.l.b16 %v1141
      %v1183 = vunpack.c.l.b16 %v1142
      %v1184 = vunpack.c.l.b16 %v1143
      %v1185 = vunpack.c.l.b16 %v1144
      %v1186 = vunpack.c.l.b16 %v1145
      %v1187 = vunpack.c.l.b16 %v1146
      %v1188 = vunpack.c.l.b16 %v1147
      %v1189 = vunpack.c.l.b16 %v1148
      %v1190 = vunpack.c.l.b16 %v1149
      %v1191 = vunpack.c.l.b16 %v1150
      %v1192 = vunpack.c.l.b16 %v1151
      %v1193 = vunpack.c.l.b16 %v1152
      %v1194 = vunpack.c.l.b16 %v1153
      %v1195 = vpack.c.b16 %v1180, %v1179
      %v1196 = vpack.c.b16 %v1182, %v1181
      %v1197 = vpack.c.b16 %v1184, %v1183
      %v1198 = vpack.c.b16 %v1186, %v1185
      %v1199 = vpack.c.b16 %v1188, %v1187
      %v1200 = vpack.c.b16 %v1190, %v1189
      %v1201 = vpack.c.b16 %v1192, %v1191
      %v1202 = vpack.c.b16 %v1194, %v1193
      %1203 = vrot.lane.b32.xlu0 %v1195, 112
      %v1204 = vpop.permute.xlu0 %1203
      %1205 = vrot.lane.b32.xlu0 %v1196, 112
      %v1206 = vpop.permute.xlu0 %1205
      %1207 = vrot.lane.b32.xlu0 %v1197, 112
      %v1208 = vpop.permute.xlu0 %1207
      %1209 = vrot.lane.b32.xlu0 %v1198, 112
      %v1210 = vpop.permute.xlu0 %1209
      %1211 = vrot.lane.b32.xlu0 %v1199, 112
      %v1212 = vpop.permute.xlu0 %1211
      %1213 = vrot.lane.b32.xlu0 %v1200, 112
      %v1214 = vpop.permute.xlu0 %1213
      %1215 = vrot.lane.b32.xlu0 %v1201, 112
      %v1216 = vpop.permute.xlu0 %1215
      %1217 = vrot.lane.b32.xlu0 %v1202, 112
      %v1218 = vpop.permute.xlu0 %1217
      %v1220 = vsel %vm808, %v1158, 0
      %v1223 = vsel %vm808, %v1160, 0
      %v1226 = vsel %vm808, %v1162, 0
      %v1229 = vsel %vm808, %v1204, 0
      %v1232 = vsel %vm808, %v1206, 0
      %v1235 = vsel %vm808, %v1208, 0
      %v1238 = vsel %vm808, %v1210, 0
      %v1241 = vsel %vm808, %v1212, 0
      %v1244 = vsel %vm808, %v1214, 0
      %v1247 = vsel %vm808, %v1216, 0
      %v1250 = vsel %vm808, %v1218, 0
      %1252 = vmatprep.subr.bf16.mxu0 0
      %1253 = vmatpush1.bf16.xpose.msra.mxu0 %v1250
      %1254 = vmatprep.subr.bf16.mxu0 0
      %1255 = vmatpush1.bf16.xpose.msra.mxu0 %v1247
      %1256 = vmatprep.subr.bf16.mxu0 0
      %1257 = vmatpush1.bf16.xpose.msra.mxu0 %v1244
      %1258 = vmatprep.subr.bf16.mxu0 0
      %1259 = vmatpush1.bf16.xpose.msra.mxu0 %v1241
      %1260 = vmatprep.subr.bf16.mxu0 0
      %1261 = vmatpush1.bf16.xpose.msra.mxu0 %v1238
      %1262 = vmatprep.subr.bf16.mxu0 0
      %1263 = vmatpush1.bf16.xpose.msra.mxu0 %v1235
      %1264 = vmatprep.subr.bf16.mxu0 0
      %1265 = vmatpush1.bf16.xpose.msra.mxu0 %v1232
      %1266 = vmatprep.subr.bf16.mxu0 0
      %1267 = vmatpush1.bf16.xpose.msra.mxu0 %v1229
      %1268 = vmatprep.subr.bf16.mxu0 0
      %1269 = vmatpush2.bf16.xpose.msra.mxu0 0
      %1270 = vmatprep.subr.bf16.mxu0 0
      %1271 = vmatpush2.bf16.xpose.msra.mxu0 0
      %1272 = vmatprep.subr.bf16.mxu0 0
      %1273 = vmatpush2.bf16.xpose.msra.mxu0 0
      %1274 = vmatprep.subr.bf16.mxu0 0
      %1275 = vmatpush2.bf16.xpose.msra.mxu0 0
      %1276 = vmatprep.subr.bf16.mxu0 0
      %1277 = vmatpush2.bf16.xpose.msra.mxu0 0
      %1278 = vmatprep.subr.bf16.mxu0 0
      %1279 = vmatpush2.bf16.xpose.msra.mxu0 0
      %1280 = vmatprep.subr.bf16.mxu0 0
      %1281 = vmatpush2.bf16.xpose.msra.mxu0 0
      %1282 = vmatprep.subr.bf16.mxu0 0
      %1283 = vmatpush2.bf16.xpose.msra.mxu0 0
      %1284 = vmatprep.mubr.bf16.mxu0 0
      %1285 = vmatmul.mubr.bf16.gmra.mxu0 %v1220
      %v1286 = vpop.f32.mrf.mxu0
      %v1287 = vadd.f32 %v766, %v1286
      %v1288 = vpop.f32.mrf.mxu0
      %v1289 = vpop.f32.mrf.mxu0
      %v1290 = vadd.f32 %v766, %v1289
      %v1291 = vpop.f32.mrf.mxu0
      %1292 = vmatprep.mubr.bf16.mxu0 0
      %1293 = vmatmul.mubr.bf16.gmra.mxu0 %v1223
      %v1294 = vpop.f32.mrf.mxu0
      %v1295 = vadd.f32 %v766, %v1294
      %v1296 = vpop.f32.mrf.mxu0
      %v1297 = vpop.f32.mrf.mxu0
      %v1298 = vadd.f32 %v766, %v1297
      %v1299 = vpop.f32.mrf.mxu0
      %1300 = vmatprep.mubr.bf16.mxu0 0
      %1301 = vmatmul.mubr.bf16.gmra.mxu0 %v1226
      %v1302 = vpop.f32.mrf.mxu0
      %v1303 = vadd.f32 %v766, %v1302
      %v1304 = vpop.f32.mrf.mxu0
      %v1305 = vpop.f32.mrf.mxu0
      %v1306 = vadd.f32 %v766, %v1305
      %v1307 = vpop.f32.mrf.mxu0
      %1308 = vdwg.mxu0
      %1309 = vmax.xlane.f32.xlu0 %v1287
      %v1310 = vpop.xlane.xlu0 %1309
      %1311 = vmax.xlane.f32.xlu0 %v1290
      %v1312 = vpop.xlane.xlu0 %1311
      %1313 = vmax.xlane.f32.xlu0 %v1295
      %v1314 = vpop.xlane.xlu0 %1313
      %1315 = vmax.xlane.f32.xlu0 %v1298
      %v1316 = vpop.xlane.xlu0 %1315
      %1317 = vmax.xlane.f32.xlu0 %v1303
      %v1318 = vpop.xlane.xlu0 %1317
      %1319 = vmax.xlane.f32.xlu0 %v1306
      %v1320 = vpop.xlane.xlu0 %1319
      %v1321 = vsub.f32 %v1287, %v1310
      %v1322 = vsub.f32 %v1290, %v1312
      %v1323 = vsub.f32 %v1295, %v1314
      %v1324 = vsub.f32 %v1298, %v1316
      %v1325 = vsub.f32 %v1303, %v1318
      %v1326 = vsub.f32 %v1306, %v1320
      %v1327 = vmul.f32 %v1321, 1.442695
      %v1328 = vpow.pop %v1327
      %v1329 = vmul.f32 %v1322, 1.442695
      %v1330 = vpow.pop %v1329
      %v1331 = vmul.f32 %v1323, 1.442695
      %v1332 = vpow.pop %v1331
      %v1333 = vmul.f32 %v1324, 1.442695
      %v1334 = vpow.pop %v1333
      %v1335 = vmul.f32 %v1325, 1.442695
      %v1336 = vpow.pop %v1335
      %v1337 = vmul.f32 %v1326, 1.442695
      %v1338 = vpow.pop %v1337
      %1339 = vadd.xlane.f32.xlu0 %v1328
      %v1340 = vpop.xlane.xlu0 %1339
      %1341 = vadd.xlane.f32.xlu0 %v1330
      %v1342 = vpop.xlane.xlu0 %1341
      %1343 = vadd.xlane.f32.xlu0 %v1332
      %v1344 = vpop.xlane.xlu0 %1343
      %1345 = vadd.xlane.f32.xlu0 %v1334
      %v1346 = vpop.xlane.xlu0 %1345
      %1347 = vadd.xlane.f32.xlu0 %v1336
      %v1348 = vpop.xlane.xlu0 %1347
      %1349 = vadd.xlane.f32.xlu0 %v1338
      %v1350 = vpop.xlane.xlu0 %1349
      %v1351 = vrcp.pop %v1340
      %v1352 = vrcp.pop %v1342
      %v1353 = vrcp.pop %v1344
      %v1354 = vrcp.pop %v1346
      %v1355 = vrcp.pop %v1348
      %v1356 = vrcp.pop %v1350
      %v1357 = vmul.f32 %v1328, %v1351
      %v1358 = vmul.f32 %v1330, %v1352
      %v1359 = vmul.f32 %v1332, %v1353
      %v1360 = vmul.f32 %v1334, %v1354
      %v1361 = vmul.f32 %v1336, %v1355
      %v1362 = vmul.f32 %v1338, %v1356
      %v1363 = vld [vmem:[%s338] sm:$0xff]
      %v1364 = vld [vmem:[%s338 + $0x8] sm:$0xff]
      %v1365 = vld [vmem:[%s338 + $0x10] sm:$0xff]
      %v1366 = vld [vmem:[%s338 + $0x18] sm:$0xff]
      %v1367 = vld [vmem:[%s338 + $0x20] sm:$0xff]
      %v1368 = vld [vmem:[%s338 + $0x28] sm:$0xff]
      %v1369 = vadd.f32 %v1363, %v1357
      %v1370 = vadd.f32 %v1364, %v1358
      %v1371 = vadd.f32 %v1365, %v1359
      %v1372 = vadd.f32 %v1366, %v1360
      %v1373 = vadd.f32 %v1367, %v1361
      %v1374 = vadd.f32 %v1368, %v1362
      %1375 = vst [vmem:[%s338] sm:$0xff] %v1369
      %1376 = vst [vmem:[%s338 + $0x8] sm:$0xff] %v1370
      %1377 = vst [vmem:[%s338 + $0x10] sm:$0xff] %v1371
      %1378 = vst [vmem:[%s338 + $0x18] sm:$0xff] %v1372
      %1379 = vst [vmem:[%s338 + $0x20] sm:$0xff] %v1373
      %1380 = vst [vmem:[%s338 + $0x28] sm:$0xff] %v1374
      %v1381 = vpack.c.bf16 %v1358, %v1357
      %v1382 = vpack.c.bf16 %v1360, %v1359
      %v1383 = vpack.c.bf16 %v1362, %v1361
      %1384 = vrot.lane.b32.xlu0 %v1195, 80
      %v1385 = vpop.permute.xlu0 %1384
      %1386 = vrot.lane.b32.xlu0 %v1196, 80
      %v1387 = vpop.permute.xlu0 %1386
      %1388 = vrot.lane.b32.xlu0 %v1197, 80
      %v1389 = vpop.permute.xlu0 %1388
      %1390 = vrot.lane.b32.xlu0 %v1198, 80
      %v1391 = vpop.permute.xlu0 %1390
      %1392 = vrot.lane.b32.xlu0 %v1199, 80
      %v1393 = vpop.permute.xlu0 %1392
      %1394 = vrot.lane.b32.xlu0 %v1200, 80
      %v1395 = vpop.permute.xlu0 %1394
      %1396 = vrot.lane.b32.xlu0 %v1201, 80
      %v1397 = vpop.permute.xlu0 %1396
      %1398 = vrot.lane.b32.xlu0 %v1202, 80
      %v1399 = vpop.permute.xlu0 %1398
      %1408 = vmatprep.subr.bf16.mxu0 0
      %1409 = vmatpush1.bf16.msra.mxu0 %v1399
      %1410 = vmatprep.subr.bf16.mxu0 0
      %1411 = vmatpush1.bf16.msra.mxu0 %v1397
      %1412 = vmatprep.subr.bf16.mxu0 0
      %1413 = vmatpush1.bf16.msra.mxu0 %v1395
      %1414 = vmatprep.subr.bf16.mxu0 0
      %1415 = vmatpush1.bf16.msra.mxu0 %v1393
      %1416 = vmatprep.subr.bf16.mxu0 0
      %1417 = vmatpush1.bf16.msra.mxu0 %v1391
      %1418 = vmatprep.subr.bf16.mxu0 0
      %1419 = vmatpush1.bf16.msra.mxu0 %v1389
      %1420 = vmatprep.subr.bf16.mxu0 0
      %1421 = vmatpush1.bf16.msra.mxu0 %v1387
      %1422 = vmatprep.subr.bf16.mxu0 0
      %1423 = vmatpush1.bf16.msra.mxu0 %v1385
      %1424 = vmatprep.subr.bf16.mxu0 0
      %1425 = vmatpush2.bf16.msra.mxu0 0
      %1426 = vmatprep.subr.bf16.mxu0 0
      %1427 = vmatpush2.bf16.msra.mxu0 0
      %1428 = vmatprep.subr.bf16.mxu0 0
      %1429 = vmatpush2.bf16.msra.mxu0 0
      %1430 = vmatprep.subr.bf16.mxu0 0
      %1431 = vmatpush2.bf16.msra.mxu0 0
      %1432 = vmatprep.subr.bf16.mxu0 0
      %1433 = vmatpush2.bf16.msra.mxu0 0
      %1434 = vmatprep.subr.bf16.mxu0 0
      %1435 = vmatpush2.bf16.msra.mxu0 0
      %1436 = vmatprep.subr.bf16.mxu0 0
      %1437 = vmatpush2.bf16.msra.mxu0 0
      %1438 = vmatprep.subr.bf16.mxu0 0
      %1439 = vmatpush2.bf16.msra.mxu0 0
      %1440 = vmatprep.mubr.bf16.mxu0 0
      %1441 = vmatmul.mubr.bf16.gmra.mxu0 %v1381
      %v1442 = vpop.f32.mrf.mxu0
      %v1443 = vadd.f32 0.0, %v1442
      %v1444 = vpop.f32.mrf.mxu0
      %v1445 = vpop.f32.mrf.mxu0
      %v1446 = vadd.f32 0.0, %v1445
      %v1447 = vpop.f32.mrf.mxu0
      %1448 = vmatprep.mubr.bf16.mxu0 0
      %1449 = vmatmul.mubr.bf16.gmra.mxu0 %v1382
      %v1450 = vpop.f32.mrf.mxu0
      %v1451 = vadd.f32 0.0, %v1450
      %v1452 = vpop.f32.mrf.mxu0
      %v1453 = vpop.f32.mrf.mxu0
      %v1454 = vadd.f32 0.0, %v1453
      %v1455 = vpop.f32.mrf.mxu0
      %1456 = vmatprep.mubr.bf16.mxu0 0
      %1457 = vmatmul.mubr.bf16.gmra.mxu0 %v1383
      %v1458 = vpop.f32.mrf.mxu0
      %v1459 = vadd.f32 0.0, %v1458
      %v1460 = vpop.f32.mrf.mxu0
      %v1461 = vpop.f32.mrf.mxu0
      %v1462 = vadd.f32 0.0, %v1461
      %v1463 = vpop.f32.mrf.mxu0
      %1464 = vdwg.mxu0
      %v1465 = vld [vmem:[#allocation3] sm:$0xff]
      %v1466 = vld [vmem:[#allocation3 + $0x8] sm:$0xff]
      %v1467 = vld [vmem:[#allocation3 + $0x10] sm:$0xff]
      %v1468 = vld [vmem:[#allocation3 + $0x18] sm:$0xff]
      %v1469 = vld [vmem:[#allocation3 + $0x20] sm:$0xff]
      %v1470 = vld [vmem:[#allocation3 + $0x28] sm:$0xff]
      %v1471 = vpack.c.bf16 %v1446, %v1443
      %v1472 = vpack.c.bf16 %v1454, %v1451
      %v1473 = vpack.c.bf16 %v1462, %v1459
      %v1474 = vld [vmem:[%s4 + $0x8] sm:$0xf]
      %v1475 = vld [vmem:[%s4 + $0xc] sm:$0xf]
      %v1478 = vunpack.c.l.b16 %v1474
      %v1479 = vunpack.c.l.b16 %v1475
      %v1480 = vpack.c.b16 %v1479, %v1478
      %v1483 = vsel %vm808, %v1471, 0
      %v1486 = vsel %vm808, %v1472, 0
      %v1489 = vsel %vm808, %v1473, 0
      %1491 = vmatprep.subr.bf16.mxu0 0
      %1492 = vmatpush1.bf16.msra.mxu0 0
      %1493 = vmatprep.subr.bf16.mxu0 0
      %1494 = vmatpush1.bf16.msra.mxu0 0
      %1495 = vmatprep.subr.bf16.mxu0 0
      %1496 = vmatpush1.bf16.msra.mxu0 0
      %1497 = vmatprep.subr.bf16.mxu0 0
      %1498 = vmatpush1.bf16.msra.mxu0 0
      %1499 = vmatprep.subr.bf16.mxu0 0
      %1500 = vmatpush1.bf16.msra.mxu0 0
      %1501 = vmatprep.subr.bf16.mxu0 0
      %1502 = vmatpush1.bf16.msra.mxu0 0
      %1503 = vmatprep.subr.bf16.mxu0 0
      %1504 = vmatpush1.bf16.msra.mxu0 0
      %1505 = vmatprep.subr.bf16.mxu0 0
      %1506 = vmatpush1.bf16.msra.mxu0 %v1480
      %1507 = vmatprep.subr.bf16.mxu0 0
      %1508 = vmatpush2.bf16.msra.mxu0 0
      %1509 = vmatprep.subr.bf16.mxu0 0
      %1510 = vmatpush2.bf16.msra.mxu0 0
      %1511 = vmatprep.subr.bf16.mxu0 0
      %1512 = vmatpush2.bf16.msra.mxu0 0
      %1513 = vmatprep.subr.bf16.mxu0 0
      %1514 = vmatpush2.bf16.msra.mxu0 0
      %1515 = vmatprep.subr.bf16.mxu0 0
      %1516 = vmatpush2.bf16.msra.mxu0 0
      %1517 = vmatprep.subr.bf16.mxu0 0
      %1518 = vmatpush2.bf16.msra.mxu0 0
      %1519 = vmatprep.subr.bf16.mxu0 0
      %1520 = vmatpush2.bf16.msra.mxu0 0
      %1521 = vmatprep.subr.bf16.mxu0 0
      %1522 = vmatpush2.bf16.msra.mxu0 0
      %1523 = vmatprep.mubr.bf16.mxu0 0
      %1524 = vmatmul.mubr.bf16.gmra.mxu0 %v1483
      %v1525 = vpop.f32.mrf.mxu0
      %v1526 = vadd.f32 0.0, %v1525
      %v1527 = vpop.f32.mrf.mxu0
      %v1528 = vpop.f32.mrf.mxu0
      %v1529 = vadd.f32 0.0, %v1528
      %v1530 = vpop.f32.mrf.mxu0
      %1531 = vmatprep.mubr.bf16.mxu0 0
      %1532 = vmatmul.mubr.bf16.gmra.mxu0 %v1486
      %v1533 = vpop.f32.mrf.mxu0
      %v1534 = vadd.f32 0.0, %v1533
      %v1535 = vpop.f32.mrf.mxu0
      %v1536 = vpop.f32.mrf.mxu0
      %v1537 = vadd.f32 0.0, %v1536
      %v1538 = vpop.f32.mrf.mxu0
      %1539 = vmatprep.mubr.bf16.mxu0 0
      %1540 = vmatmul.mubr.bf16.gmra.mxu0 %v1489
      %v1541 = vpop.f32.mrf.mxu0
      %v1542 = vadd.f32 0.0, %v1541
      %v1543 = vpop.f32.mrf.mxu0
      %v1544 = vpop.f32.mrf.mxu0
      %v1545 = vadd.f32 0.0, %v1544
      %v1546 = vpop.f32.mrf.mxu0
      %1547 = vdwg.mxu0
      %v1548 = vadd.f32 %v1465, %v1526
      %v1549 = vadd.f32 %v1466, %v1529
      %v1550 = vadd.f32 %v1467, %v1534
      %v1551 = vadd.f32 %v1468, %v1537
      %v1552 = vadd.f32 %v1469, %v1542
      %v1553 = vadd.f32 %v1470, %v1545
      %1554 = vst [vmem:[#allocation3] sm:$0xff] %v1548
      %1555 = vst [vmem:[#allocation3 + $0x8] sm:$0xff] %v1549
      %1556 = vst [vmem:[#allocation3 + $0x10] sm:$0xff] %v1550
      %1557 = vst [vmem:[#allocation3 + $0x18] sm:$0xff] %v1551
      %1558 = vst [vmem:[#allocation3 + $0x20] sm:$0xff] %v1552
      %1559 = vst [vmem:[#allocation3 + $0x28] sm:$0xff] %v1553
      %v1560 = vld [vmem:[#allocation3] sm:$0xff]
      %v1561 = vld [vmem:[#allocation3 + $0x8] sm:$0xff]
      %v1562 = vld [vmem:[#allocation3 + $0x10] sm:$0xff]
      %v1563 = vld [vmem:[#allocation3 + $0x18] sm:$0xff]
      %v1564 = vld [vmem:[#allocation3 + $0x20] sm:$0xff]
      %v1565 = vld [vmem:[#allocation3 + $0x28] sm:$0xff]
      %v1566 = vpack.c.bf16 %v1561, %v1560
      %v1567 = vpack.c.bf16 %v1563, %v1562
      %v1568 = vpack.c.bf16 %v1565, %v1564
      %v1572 = vunpack.c.l.b16 %v1566
      %v1573 = vunpack.c.h.b16 %v1566
      %v1574 = vunpack.c.l.b16 %v1567
      %v1575 = vunpack.c.h.b16 %v1567
      %v1576 = vunpack.c.l.b16 %v1568
      %v1577 = vunpack.c.h.b16 %v1568
      %v1578 = vpack.c.b16 %v1572, %v1572
      %v1579 = vpack.c.b16 %v1573, %v1573
      %v1580 = vpack.c.b16 %v1574, %v1574
      %v1581 = vpack.c.b16 %v1575, %v1575
      %v1582 = vpack.c.b16 %v1576, %v1576
      %v1583 = vpack.c.b16 %v1577, %v1577
      %1590 = vst [vmem:[%s328] sm:$0xf] %v1578
      %1591 = vst [vmem:[%s328 + $0x4] sm:$0xf] %v1579
      %1592 = vst [vmem:[%s328 + $0x8] sm:$0xf] %v1580
      %1593 = vst [vmem:[%s328 + $0xc] sm:$0xf] %v1581
      %1594 = vst [vmem:[%s328 + $0x10] sm:$0xf] %v1582
      %1595 = vst [vmem:[%s328 + $0x14] sm:$0xf] %v1583
      %s1596 = smul.u32 6, %s24
      %p1597 = scmp.lt.s32.totalorder %s23, 1
      %s1598 = scalar_select %p1597, %s23, 1
      %p1599 = scmp.lt.s32.totalorder %s1596, 5
      %s1600 = scalar_select %p1599, %s1596, 5
      %s1601 = smul.addr %s1598, 6
      %s1602 = sadd.s32 %s1600, %s1601
      %s1603 = smul.addr %s1602, 4
      %s1604 = scalar_lea.vmem %s6, %s1603
      %s1605 = smul.u32 6, %s24
      %p1606 = scmp.lt.s32.totalorder %s23, 1
      %s1607 = scalar_select %p1606, %s23, 1
      %p1608 = scmp.lt.s32.totalorder %s1605, 5
      %s1609 = scalar_select %p1608, %s1605, 5
      %s1610 = smul.addr %s1607, 6
      %s1611 = sadd.s32 %s1609, %s1610
      %s1612 = smul.addr %s1611, 8
      %s1613 = scalar_lea.vmem %s7, %s1612
      // Predicated region
      $region49: #{basic_block_forward.10} parent=43 // pred_check
        %p1614 = pneg %p187
      $region50: #{basic_block_forward.10} parent=43 // pred_check_branch
        %1616 = sbr.rel (%p1614) target = $region52
      $region51: #{basic_block_forward.10} parent=43 // pred_region
        %s1617 = smul.u32 6, %s24
      $region52: #{basic_block_forward.10} parent=43 // pred_fallthru
        _
      // Predicated region
      $region53: #{basic_block_forward.10} parent=43 // pred_check
        %p1618 = pneg %p215
      $region54: #{basic_block_forward.10} parent=43 // pred_check_branch
        %1620 = sbr.rel (%p1618) target = $region56
      $region55: #{basic_block_forward.10} parent=43 // pred_region
        %s1621 = smul.u32 6, %s24
      $region56: #{basic_block_forward.10} parent=43 // pred_fallthru
        _
    $region44: #{basic_block_forward.10} parent=5 // pred_fallthru
      _
    %p1622 = scmp.le.s32.totalorder 2, %s14
    // Predicated region
    $region57: #{basic_block_forward.10} parent=5 // pred_check
      %p1623 = pneg %p1622
    $region58: #{basic_block_forward.10} parent=5 // pred_check_branch
      %1625 = sbr.rel (%p1623) target = $region60
    $region59: #{basic_block_forward.10} parent=5 // pred_region
      %s1626 = ssub.s32 %s14, 2
      // Predicated region
      $region61: #{basic_block_forward.10} parent=59 // pred_check
        %p1627 = pneg %p193
      $region62: #{basic_block_forward.10} parent=59 // pred_check_branch
        %1629 = sbr.rel (%p1627) target = $region64
      $region63: #{basic_block_forward.10} parent=59 // pred_region
        %s1630 = smul.u32 6, %s26
        %p1631 = scmp.lt.s32.totalorder %s25, 1
        %s1632 = scalar_select %p1631, %s25, 1
        %p1633 = scmp.lt.s32.totalorder %s1630, 5
        %s1634 = scalar_select %p1633, %s1630, 5
        %s1635 = smul.addr %s1632, 6
        %s1636 = sadd.s32 %s1634, %s1635
        %s1637 = smul.addr %s1636, 4
        %s1638 = scalar_lea.vmem %s6, %s1637
      $region64: #{basic_block_forward.10} parent=59 // pred_fallthru
        _
      // Predicated region
      $region65: #{basic_block_forward.10} parent=59 // pred_check
        %p1639 = pneg %p221
      $region66: #{basic_block_forward.10} parent=59 // pred_check_branch
        %1641 = sbr.rel (%p1639) target = $region68
      $region67: #{basic_block_forward.10} parent=59 // pred_region
        %s1642 = smul.u32 6, %s26
        %p1643 = scmp.lt.s32.totalorder %s25, 1
        %s1644 = scalar_select %p1643, %s25, 1
        %p1645 = scmp.lt.s32.totalorder %s1642, 5
        %s1646 = scalar_select %p1645, %s1642, 5
        %s1647 = smul.addr %s1644, 6
        %s1648 = sadd.s32 %s1646, %s1647
        %s1649 = smul.addr %s1648, 8
        %s1650 = scalar_lea.vmem %s7, %s1649
      $region68: #{basic_block_forward.10} parent=59 // pred_fallthru
        _
    $region60: #{basic_block_forward.10} parent=5 // pred_fallthru
      _
  $region6: #{basic_block_forward.10} parent=0 // loop_footer
    %s18 = sadd.s32 1, %s14
  $region7: #{basic_block_forward.10} parent=0 // loop_footer_branch
    %13 = sbr.rel target = $region3
  $region8: #{basic_block_forward.10} parent=0 // loop_exit
    _

// kernel: basic_block_forward.11
$region0: #{basic_block_forward.11}
  #allocation0 [shape = 'u32[]', space=smem, size = 0x4, offset = 0x4, fixed_abs, tag = 'smem constant byte address 0x4 - core index']
  #allocation1 [shape = 'u32[144,128]{1,0:T(1,128)}', space=vmem, size = 0x12000, scoped, tag = 'internal scratch']
  #allocation2 [shape = 'bf16[128,64]{1,0:T(8,128)(2,1)}', space=vmem, size = 0x8000, scoped, tag = 'scratch operand']
  #allocation3 [shape = 'f32[8,128]{1,0:T(8,128)}', space=vmem, size = 0x1000, scoped, tag = 'scratch operand']
  %s0 = inlined_call_operand.vmem [shape: bf16[90,8,32], index: 0, kind: input, shape index: {}]
  %s1 = inlined_call_operand.vmem [shape: bf16[90,128,32], index: 1, kind: input, shape index: {}]
  %s2 = inlined_call_operand.vmem [shape: f32[90,1,128], index: 2, kind: input, shape index: {}]
  %s3 = inlined_call_operand.vmem [shape: bf16[32,32], index: 3, kind: input, shape index: {}]
  %s4 = inlined_call_operand.vmem [shape: bf16[32,64], index: 4, kind: input, shape index: {}]
  %s5 = inlined_call_operand.vmem [shape: bf16[32,128], index: 5, kind: input, shape index: {}]
  %s6 = inlined_call_operand.vmem [shape: f32[1,128], index: 6, kind: input, shape index: {}]
  %s7 = inlined_call_operand.vmem [shape: bf16[90,8,128], index: 7, kind: output, shape index: {}]
  %s8 = sld [smem:[#allocation0]]
  $region65: #{basic_block_forward.11} parent=0
    _
  %s10 = ssub.s32 1, %s8
  %s11 = scalar_select 0, %s10, %s8
  loop: start=0, step=1, limit=92
  $region2: #{basic_block_forward.11} parent=0 // loop_pre_header
    _
  $region3: #{basic_block_forward.11} parent=0 // loop_header
    %s13 = sphi 0, %s17
    %p14 = scmp.ge.s32.totalorder %s13, 92
    %s20 = sphi 0, %s32
    %s21 = sphi 0, %s28
    %s22 = sphi 0, %s20
    %s23 = sphi 0, %s21
    %s24 = sphi 0, %s22
    %s25 = sphi 0, %s23
    %s37 = sphi 0, %s39
    %s40 = sphi 0, %s37
    %s41 = sphi 0, %s40
    %s57 = sphi 0, %s41
    %s63 = sphi 0, %s65
    %s66 = sphi 0, %s63
    %s67 = sphi 0, %s66
    %s83 = sphi 0, %s67
    %s89 = sphi 0, %s91
    %s92 = sphi 0, %s89
    %s93 = sphi 0, %s92
    %s109 = sphi 0, %s93
    %s113 = sphi 0, %s113
    %s115 = sphi 0, %s113
    %s116 = sphi 0, %s115
    %s130 = sphi 0, %s116
    %s134 = sphi 0, %s134
    %s136 = sphi 0, %s134
    %s137 = sphi 0, %s136
    %s151 = sphi 0, %s137
    %s155 = sphi 0, %s155
    %s157 = sphi 0, %s155
    %s158 = sphi 0, %s157
    %s172 = sphi 0, %s158
    %s176 = sphi 0, %s176
    %s178 = sphi 0, %s176
    %s179 = sphi 0, %s178
    %s193 = sphi 0, %s179
    %s201 = sphi 0, %s203
    %s204 = sphi 0, %s201
    %s205 = sphi 0, %s204
    %s221 = sphi 0, %s205
  $region4: #{basic_block_forward.11} parent=0 // loop_header_branch
    %16 = sbr.rel (%p14) target = $region8
  $region5: #{basic_block_forward.11} parent=0 // loop_body
    %s18 = ssub.s32 %s13, 1
    %s19 = ssub.s32 %s13, 2
    %s26 = sadd.s32 1, %s21
    %p27 = scmp.ge.s32.totalorder %s26, 1
    %s28 = scalar_select %p27, 0, %s26
    %s29 = sadd.s32 1, %s20
    %s30 = scalar_select %p27, %s29, %s20
    %p31 = scmp.ge.s32.totalorder %s30, 90
    %s32 = scalar_select %p31, 0, %s30
    %s33 = ssub.s32 %s20, %s32
    %s34 = ssub.s32 %s21, %s28
    %s35 = sor.u32 %s33, %s34
    %p36 = scmp.eq.s32.totalorder %s35, 0
    %s38 = sadd.s32 %s37, 1
    %s39 = scalar_select %p36, %s37, %s38
    %p42 = pneg %p36
    %p43 = scmp.eq.s32.totalorder %s13, 89
    %p44 = por %p42, %p43
    %p45 = scmp.ne.s32.totalorder %s37, %s40
    %p46 = scmp.eq.s32.totalorder %s13, 0
    %p47 = por %p45, %p46
    %p48 = scmp.ne.s32.totalorder %s37, %s40
    %p49 = scmp.eq.s32.totalorder %s18, 89
    %p50 = por %p48, %p49
    %p51 = scmp.ne.s32.totalorder %s40, %s41
    %p52 = scmp.eq.s32.totalorder %s18, 0
    %p53 = por %p51, %p52
    %p54 = scmp.ne.s32.totalorder %s40, %s41
    %p55 = scmp.eq.s32.totalorder %s19, 89
    %p56 = por %p54, %p55
    %p58 = scmp.ne.s32.totalorder %s41, %s57
    %p59 = scmp.eq.s32.totalorder %s19, 0
    %p60 = por %p58, %p59
    %s61 = ssub.s32 %s20, %s32
    %p62 = scmp.eq.s32.totalorder %s61, 0
    %s64 = sadd.s32 %s63, 1
    %s65 = scalar_select %p62, %s63, %s64
    %p68 = pneg %p62
    %p69 = scmp.eq.s32.totalorder %s13, 89
    %p70 = por %p68, %p69
    %p71 = scmp.ne.s32.totalorder %s63, %s66
    %p72 = scmp.eq.s32.totalorder %s13, 0
    %p73 = por %p71, %p72
    %p74 = scmp.ne.s32.totalorder %s63, %s66
    %p75 = scmp.eq.s32.totalorder %s18, 89
    %p76 = por %p74, %p75
    %p77 = scmp.ne.s32.totalorder %s66, %s67
    %p78 = scmp.eq.s32.totalorder %s18, 0
    %p79 = por %p77, %p78
    %p80 = scmp.ne.s32.totalorder %s66, %s67
    %p81 = scmp.eq.s32.totalorder %s19, 89
    %p82 = por %p80, %p81
    %p84 = scmp.ne.s32.totalorder %s67, %s83
    %p85 = scmp.eq.s32.totalorder %s19, 0
    %p86 = por %p84, %p85
    %s87 = ssub.s32 %s20, %s32
    %p88 = scmp.eq.s32.totalorder %s87, 0
    %s90 = sadd.s32 %s89, 1
    %s91 = scalar_select %p88, %s89, %s90
    %p94 = pneg %p88
    %p95 = scmp.eq.s32.totalorder %s13, 89
    %p96 = por %p94, %p95
    %p97 = scmp.ne.s32.totalorder %s89, %s92
    %p98 = scmp.eq.s32.totalorder %s13, 0
    %p99 = por %p97, %p98
    %p100 = scmp.ne.s32.totalorder %s89, %s92
    %p101 = scmp.eq.s32.totalorder %s18, 89
    %p102 = por %p100, %p101
    %p103 = scmp.ne.s32.totalorder %s92, %s93
    %p104 = scmp.eq.s32.totalorder %s18, 0
    %p105 = por %p103, %p104
    %p106 = scmp.ne.s32.totalorder %s92, %s93
    %p107 = scmp.eq.s32.totalorder %s19, 89
    %p108 = por %p106, %p107
    %p110 = scmp.ne.s32.totalorder %s93, %s109
    %p111 = scmp.eq.s32.totalorder %s19, 0
    %p112 = por %p110, %p111
    %s114 = sadd.s32 %s113, 1
    %p117 = scmp.eq.s32.totalorder %s13, 89
    %p118 = scmp.ne.s32.totalorder %s113, %s115
    %p119 = scmp.eq.s32.totalorder %s13, 0
    %p120 = por %p118, %p119
    %p121 = scmp.ne.s32.totalorder %s113, %s115
    %p122 = scmp.eq.s32.totalorder %s18, 89
    %p123 = por %p121, %p122
    %p124 = scmp.ne.s32.totalorder %s115, %s116
    %p125 = scmp.eq.s32.totalorder %s18, 0
    %p126 = por %p124, %p125
    %p127 = scmp.ne.s32.totalorder %s115, %s116
    %p128 = scmp.eq.s32.totalorder %s19, 89
    %p129 = por %p127, %p128
    %p131 = scmp.ne.s32.totalorder %s116, %s130
    %p132 = scmp.eq.s32.totalorder %s19, 0
    %p133 = por %p131, %p132
    %s135 = sadd.s32 %s134, 1
    %p138 = scmp.eq.s32.totalorder %s13, 89
    %p139 = scmp.ne.s32.totalorder %s134, %s136
    %p140 = scmp.eq.s32.totalorder %s13, 0
    %p141 = por %p139, %p140
    %p142 = scmp.ne.s32.totalorder %s134, %s136
    %p143 = scmp.eq.s32.totalorder %s18, 89
    %p144 = por %p142, %p143
    %p145 = scmp.ne.s32.totalorder %s136, %s137
    %p146 = scmp.eq.s32.totalorder %s18, 0
    %p147 = por %p145, %p146
    %p148 = scmp.ne.s32.totalorder %s136, %s137
    %p149 = scmp.eq.s32.totalorder %s19, 89
    %p150 = por %p148, %p149
    %p152 = scmp.ne.s32.totalorder %s137, %s151
    %p153 = scmp.eq.s32.totalorder %s19, 0
    %p154 = por %p152, %p153
    %s156 = sadd.s32 %s155, 1
    %p159 = scmp.eq.s32.totalorder %s13, 89
    %p160 = scmp.ne.s32.totalorder %s155, %s157
    %p161 = scmp.eq.s32.totalorder %s13, 0
    %p162 = por %p160, %p161
    %p163 = scmp.ne.s32.totalorder %s155, %s157
    %p164 = scmp.eq.s32.totalorder %s18, 89
    %p165 = por %p163, %p164
    %p166 = scmp.ne.s32.totalorder %s157, %s158
    %p167 = scmp.eq.s32.totalorder %s18, 0
    %p168 = por %p166, %p167
    %p169 = scmp.ne.s32.totalorder %s157, %s158
    %p170 = scmp.eq.s32.totalorder %s19, 89
    %p171 = por %p169, %p170
    %p173 = scmp.ne.s32.totalorder %s158, %s172
    %p174 = scmp.eq.s32.totalorder %s19, 0
    %p175 = por %p173, %p174
    %s177 = sadd.s32 %s176, 1
    %p180 = scmp.eq.s32.totalorder %s13, 89
    %p181 = scmp.ne.s32.totalorder %s176, %s178
    %p182 = scmp.eq.s32.totalorder %s13, 0
    %p183 = por %p181, %p182
    %p184 = scmp.ne.s32.totalorder %s176, %s178
    %p185 = scmp.eq.s32.totalorder %s18, 89
    %p186 = por %p184, %p185
    %p187 = scmp.ne.s32.totalorder %s178, %s179
    %p188 = scmp.eq.s32.totalorder %s18, 0
    %p189 = por %p187, %p188
    %p190 = scmp.ne.s32.totalorder %s178, %s179
    %p191 = scmp.eq.s32.totalorder %s19, 89
    %p192 = por %p190, %p191
    %p194 = scmp.ne.s32.totalorder %s179, %s193
    %p195 = scmp.eq.s32.totalorder %s19, 0
    %p196 = por %p194, %p195
    %s197 = ssub.s32 %s20, %s32
    %s198 = ssub.s32 %s21, %s28
    %s199 = sor.u32 %s197, %s198
    %p200 = scmp.eq.s32.totalorder %s199, 0
    %s202 = sadd.s32 %s201, 1
    %s203 = scalar_select %p200, %s201, %s202
    %p206 = pneg %p200
    %p207 = scmp.eq.s32.totalorder %s13, 89
    %p208 = por %p206, %p207
    %p209 = scmp.ne.s32.totalorder %s201, %s204
    %p210 = scmp.eq.s32.totalorder %s13, 0
    %p211 = por %p209, %p210
    %p212 = scmp.ne.s32.totalorder %s201, %s204
    %p213 = scmp.eq.s32.totalorder %s18, 89
    %p214 = por %p212, %p213
    %p215 = scmp.ne.s32.totalorder %s204, %s205
    %p216 = scmp.eq.s32.totalorder %s18, 0
    %p217 = por %p215, %p216
    %p218 = scmp.ne.s32.totalorder %s204, %s205
    %p219 = scmp.eq.s32.totalorder %s19, 89
    %p220 = por %p218, %p219
    %p222 = scmp.ne.s32.totalorder %s205, %s221
    %p223 = scmp.eq.s32.totalorder %s19, 0
    %p224 = por %p222, %p223
    %p225 = scmp.le.s32.totalorder 1, %s13
    %p226 = scmp.lt.s32.totalorder %s13, 91
    %p227 = pnand %p225, %p226
    %p228 = pneg %p227
    // Predicated region
    $region9: #{basic_block_forward.11} parent=5 // pred_check
      _
    $region10: #{basic_block_forward.11} parent=5 // pred_check_branch
      %230 = sbr.rel (%p227) target = $region12
    $region11: #{basic_block_forward.11} parent=5 // pred_region
      %s231 = ssub.s32 %s13, 1
      // Predicated region
      $region13: #{basic_block_forward.11} parent=11 // pred_check
        %p232 = pneg %p126
      $region14: #{basic_block_forward.11} parent=11 // pred_check_branch
        %234 = sbr.rel (%p232) target = $region16
      $region15: #{basic_block_forward.11} parent=11 // pred_region
        _
      $region16: #{basic_block_forward.11} parent=11 // pred_fallthru
        _
      // Predicated region
      $region17: #{basic_block_forward.11} parent=11 // pred_check
        %p235 = pneg %p147
      $region18: #{basic_block_forward.11} parent=11 // pred_check_branch
        %237 = sbr.rel (%p235) target = $region20
      $region19: #{basic_block_forward.11} parent=11 // pred_region
        _
      $region20: #{basic_block_forward.11} parent=11 // pred_fallthru
        _
      // Predicated region
      $region21: #{basic_block_forward.11} parent=11 // pred_check
        %p238 = pneg %p168
      $region22: #{basic_block_forward.11} parent=11 // pred_check_branch
        %240 = sbr.rel (%p238) target = $region24
      $region23: #{basic_block_forward.11} parent=11 // pred_region
        _
      $region24: #{basic_block_forward.11} parent=11 // pred_fallthru
        _
      // Predicated region
      $region25: #{basic_block_forward.11} parent=11 // pred_check
        %p241 = pneg %p189
      $region26: #{basic_block_forward.11} parent=11 // pred_check_branch
        %243 = sbr.rel (%p241) target = $region28
      $region27: #{basic_block_forward.11} parent=11 // pred_region
        _
      $region28: #{basic_block_forward.11} parent=11 // pred_fallthru
        _
    $region12: #{basic_block_forward.11} parent=5 // pred_fallthru
      _
    %p244 = scmp.lt.s32.totalorder %s13, 90
    // Predicated region
    $region29: #{basic_block_forward.11} parent=5 // pred_check
      %p245 = pneg %p244
    $region30: #{basic_block_forward.11} parent=5 // pred_check_branch
      %247 = sbr.rel (%p245) target = $region32
    $region31: #{basic_block_forward.11} parent=5 // pred_region
      // Predicated region
      $region33: #{basic_block_forward.11} parent=31 // pred_check
        %p248 = pneg %p47
      $region34: #{basic_block_forward.11} parent=31 // pred_check_branch
        %250 = sbr.rel (%p248) target = $region36
      $region35: #{basic_block_forward.11} parent=31 // pred_region
        %p251 = scmp.lt.s32.totalorder %s20, 89
        %s252 = scalar_select %p251, %s20, 89
        %p253 = scmp.lt.s32.totalorder %s21, 0
        %s254 = scalar_select %p253, %s21, 0
        %s255 = sadd.s32 %s254, %s252
        %s256 = smul.addr %s255, 4
        %s257 = scalar_lea.vmem %s0, %s256
      $region36: #{basic_block_forward.11} parent=31 // pred_fallthru
        _
      // Predicated region
      $region37: #{basic_block_forward.11} parent=31 // pred_check
        %p258 = pneg %p73
      $region38: #{basic_block_forward.11} parent=31 // pred_check_branch
        %260 = sbr.rel (%p258) target = $region40
      $region39: #{basic_block_forward.11} parent=31 // pred_region
        %p261 = scmp.lt.s32.totalorder %s20, 89
        %s262 = scalar_select %p261, %s20, 89
        %s263 = smul.addr %s262, 16
        %s264 = smul.addr %s263, 4
        %s265 = scalar_lea.vmem %s1, %s264
      $region40: #{basic_block_forward.11} parent=31 // pred_fallthru
        _
      // Predicated region
      $region41: #{basic_block_forward.11} parent=31 // pred_check
        %p266 = pneg %p99
      $region42: #{basic_block_forward.11} parent=31 // pred_check_branch
        %268 = sbr.rel (%p266) target = $region44
      $region43: #{basic_block_forward.11} parent=31 // pred_region
        %p269 = scmp.lt.s32.totalorder %s20, 89
        %s270 = scalar_select %p269, %s20, 89
        %s271 = scalar_lea.vmem %s2, %s270
      $region44: #{basic_block_forward.11} parent=31 // pred_fallthru
        _
    $region32: #{basic_block_forward.11} parent=5 // pred_fallthru
      _
    %p272 = scmp.le.s32.totalorder 1, %s13
    %p273 = scmp.lt.s32.totalorder %s13, 91
    %p274 = pnand %p272, %p273
    %p275 = pneg %p274
    // Predicated region
    $region45: #{basic_block_forward.11} parent=5 // pred_check
      _
    $region46: #{basic_block_forward.11} parent=5 // pred_check_branch
      %277 = sbr.rel (%p274) target = $region48
    $region47: #{basic_block_forward.11} parent=5 // pred_region
      %s278 = ssub.s32 %s13, 1
      %p279 = scmp.lt.s32.totalorder %s22, 89
      %s280 = scalar_select %p279, %s22, 89
      %p281 = scmp.lt.s32.totalorder %s23, 0
      %s282 = scalar_select %p281, %s23, 0
      %s283 = sadd.s32 %s282, %s280
      %s284 = smul.addr %s283, 4
      %s285 = scalar_lea.vmem %s0, %s284
      %p286 = pneg %p53
      %p287 = pneg %p50
      %p288 = scmp.lt.s32.totalorder %s22, 89
      %s289 = scalar_select %p288, %s22, 89
      %s290 = smul.addr %s289, 16
      %s291 = smul.addr %s290, 4
      %s292 = scalar_lea.vmem %s1, %s291
      %p293 = pneg %p79
      %p294 = pneg %p76
      %p295 = scmp.lt.s32.totalorder %s22, 89
      %s296 = scalar_select %p295, %s22, 89
      %s297 = scalar_lea.vmem %s2, %s296
      %p298 = pneg %p105
      %p299 = pneg %p102
      %p300 = pneg %p126
      %p301 = pneg %p123
      %p302 = pneg %p147
      %p303 = pneg %p144
      %p304 = pneg %p168
      %p305 = pneg %p165
      %p306 = pneg %p189
      %p307 = pneg %p186
      %p308 = pneg %p217
      %p309 = pneg %p214
      %p310 = scmp.lt.s32.totalorder %s22, 89
      %s311 = scalar_select %p310, %s22, 89
      %p312 = scmp.lt.s32.totalorder %s23, 0
      %s313 = scalar_select %p312, %s23, 0
      %s314 = sadd.s32 %s313, %s311
      %s315 = smul.addr %s314, 4
      %s316 = scalar_lea.vmem %s7, %s315
      %p317 = scmp.lt.s32.totalorder %s22, 89
      %s318 = scalar_select %p317, %s22, 89
      %p319 = scmp.lt.s32.totalorder %s23, 0
      %s320 = scalar_select %p319, %s23, 0
      %s321 = sadd.s32 %s320, %s318
      %s322 = smul.addr %s321, 4
      %s323 = scalar_lea.vmem %s0, %s322
      %p324 = scmp.lt.s32.totalorder %s22, 89
      %s325 = scalar_select %p324, %s22, 89
      %s326 = smul.addr %s325, 16
      %s327 = smul.addr %s326, 4
      %s328 = scalar_lea.vmem %s1, %s327
      %p329 = scmp.lt.s32.totalorder %s22, 89
      %s330 = scalar_select %p329, %s22, 89
      %s331 = scalar_lea.vmem %s2, %s330
      %p332 = scmp.lt.s32.totalorder %s22, 89
      %s333 = scalar_select %p332, %s22, 89
      %p334 = scmp.lt.s32.totalorder %s23, 0
      %s335 = scalar_select %p334, %s23, 0
      %s336 = sadd.s32 %s335, %s333
      %s337 = smul.addr %s336, 4
      %s338 = scalar_lea.vmem %s7, %s337
      %p340 = scmp.eq.s32.totalorder %s23, 0
      // Predicated region
      $region49: #{basic_block_forward.11} parent=47 // pred_check
        %p341 = pneg %p340
      $region50: #{basic_block_forward.11} parent=47 // pred_check_branch
        %343 = sbr.rel (%p341) target = $region52
      $region51: #{basic_block_forward.11} parent=47 // pred_region
        %v344 = vld [vmem:[%s328] sm:$0xf]
        %v345 = vld [vmem:[%s328 + $0x4] sm:$0xf]
        %v346 = vld [vmem:[%s328 + $0x8] sm:$0xf]
        %v347 = vld [vmem:[%s328 + $0xc] sm:$0xf]
        %v348 = vld [vmem:[%s328 + $0x10] sm:$0xf]
        %v349 = vld [vmem:[%s328 + $0x14] sm:$0xf]
        %v350 = vld [vmem:[%s328 + $0x18] sm:$0xf]
        %v351 = vld [vmem:[%s328 + $0x1c] sm:$0xf]
        %v352 = vld [vmem:[%s328 + $0x20] sm:$0xf]
        %v353 = vld [vmem:[%s328 + $0x24] sm:$0xf]
        %v354 = vld [vmem:[%s328 + $0x28] sm:$0xf]
        %v355 = vld [vmem:[%s328 + $0x2c] sm:$0xf]
        %v356 = vld [vmem:[%s328 + $0x30] sm:$0xf]
        %v357 = vld [vmem:[%s328 + $0x34] sm:$0xf]
        %v358 = vld [vmem:[%s328 + $0x38] sm:$0xf]
        %v359 = vld [vmem:[%s328 + $0x3c] sm:$0xf]
        %v360 = vld [vmem:[%s4] sm:$0xf]
        %v361 = vld [vmem:[%s4 + $0x4] sm:$0xf]
        %v362 = vld [vmem:[%s4 + $0x8] sm:$0xf]
        %v363 = vld [vmem:[%s4 + $0xc] sm:$0xf]
        %v380 = vunpack.c.l.b16 %v344
        %v381 = vunpack.c.l.b16 %v345
        %v382 = vunpack.c.l.b16 %v346
        %v383 = vunpack.c.l.b16 %v347
        %v384 = vunpack.c.l.b16 %v348
        %v385 = vunpack.c.l.b16 %v349
        %v386 = vunpack.c.l.b16 %v350
        %v387 = vunpack.c.l.b16 %v351
        %v388 = vunpack.c.l.b16 %v352
        %v389 = vunpack.c.l.b16 %v353
        %v390 = vunpack.c.l.b16 %v354
        %v391 = vunpack.c.l.b16 %v355
        %v392 = vunpack.c.l.b16 %v356
        %v393 = vunpack.c.l.b16 %v357
        %v394 = vunpack.c.l.b16 %v358
        %v395 = vunpack.c.l.b16 %v359
        %v396 = vpack.c.b16 %v381, %v380
        %v397 = vpack.c.b16 %v383, %v382
        %v398 = vpack.c.b16 %v385, %v384
        %v399 = vpack.c.b16 %v387, %v386
        %v400 = vpack.c.b16 %v389, %v388
        %v401 = vpack.c.b16 %v391, %v390
        %v402 = vpack.c.b16 %v393, %v392
        %v403 = vpack.c.b16 %v395, %v394
        %v408 = vunpack.c.l.b16 %v360
        %v409 = vunpack.c.l.b16 %v361
        %v410 = vunpack.c.l.b16 %v362
        %v411 = vunpack.c.l.b16 %v363
        %v412 = vpack.c.b16 %v409, %v408
        %v413 = vpack.c.b16 %v411, %v410
        %vm416 = vcmask 261120
        %v418 = vsel %vm416, %v396, 0
        %v421 = vsel %vm416, %v397, 0
        %v424 = vsel %vm416, %v398, 0
        %v427 = vsel %vm416, %v399, 0
        %v430 = vsel %vm416, %v400, 0
        %v433 = vsel %vm416, %v401, 0
        %v436 = vsel %vm416, %v402, 0
        %v439 = vsel %vm416, %v403, 0
        %441 = vmatprep.subr.bf16.mxu0 0
        %442 = vmatpush1.bf16.msra.mxu0 0
        %443 = vmatprep.subr.bf16.mxu0 0
        %444 = vmatpush1.bf16.msra.mxu0 0
        %445 = vmatprep.subr.bf16.mxu0 0
        %446 = vmatpush1.bf16.msra.mxu0 0
        %447 = vmatprep.subr.bf16.mxu0 0
        %448 = vmatpush1.bf16.msra.mxu0 0
        %449 = vmatprep.subr.bf16.mxu0 0
        %450 = vmatpush1.bf16.msra.mxu0 0
        %451 = vmatprep.subr.bf16.mxu0 0
        %452 = vmatpush1.bf16.msra.mxu0 0
        %453 = vmatprep.subr.bf16.mxu0 0
        %454 = vmatpush1.bf16.msra.mxu0 %v413
        %455 = vmatprep.subr.bf16.mxu0 0
        %456 = vmatpush1.bf16.msra.mxu0 %v412
        %457 = vmatprep.subr.bf16.mxu0 0
        %458 = vmatpush2.bf16.msra.mxu0 0
        %459 = vmatprep.subr.bf16.mxu0 0
        %460 = vmatpush2.bf16.msra.mxu0 0
        %461 = vmatprep.subr.bf16.mxu0 0
        %462 = vmatpush2.bf16.msra.mxu0 0
        %463 = vmatprep.subr.bf16.mxu0 0
        %464 = vmatpush2.bf16.msra.mxu0 0
        %465 = vmatprep.subr.bf16.mxu0 0
        %466 = vmatpush2.bf16.msra.mxu0 0
        %467 = vmatprep.subr.bf16.mxu0 0
        %468 = vmatpush2.bf16.msra.mxu0 0
        %469 = vmatprep.subr.bf16.mxu0 0
        %470 = vmatpush2.bf16.msra.mxu0 0
        %471 = vmatprep.subr.bf16.mxu0 0
        %472 = vmatpush2.bf16.msra.mxu0 0
        %473 = vmatprep.mubr.bf16.mxu0 0
        %474 = vmatmul.mubr.bf16.gmra.mxu0 %v418
        %v475 = vpop.f32.mrf.mxu0
        %v476 = vadd.f32 0.0, %v475
        %v477 = vpop.f32.mrf.mxu0
        %v478 = vpop.f32.mrf.mxu0
        %v479 = vadd.f32 0.0, %v478
        %v480 = vpop.f32.mrf.mxu0
        %481 = vmatprep.mubr.bf16.mxu0 0
        %482 = vmatmul.mubr.bf16.gmra.mxu0 %v421
        %v483 = vpop.f32.mrf.mxu0
        %v484 = vadd.f32 0.0, %v483
        %v485 = vpop.f32.mrf.mxu0
        %v486 = vpop.f32.mrf.mxu0
        %v487 = vadd.f32 0.0, %v486
        %v488 = vpop.f32.mrf.mxu0
        %489 = vmatprep.mubr.bf16.mxu0 0
        %490 = vmatmul.mubr.bf16.gmra.mxu0 %v424
        %v491 = vpop.f32.mrf.mxu0
        %v492 = vadd.f32 0.0, %v491
        %v493 = vpop.f32.mrf.mxu0
        %v494 = vpop.f32.mrf.mxu0
        %v495 = vadd.f32 0.0, %v494
        %v496 = vpop.f32.mrf.mxu0
        %497 = vmatprep.mubr.bf16.mxu0 0
        %498 = vmatmul.mubr.bf16.gmra.mxu0 %v427
        %v499 = vpop.f32.mrf.mxu0
        %v500 = vadd.f32 0.0, %v499
        %v501 = vpop.f32.mrf.mxu0
        %v502 = vpop.f32.mrf.mxu0
        %v503 = vadd.f32 0.0, %v502
        %v504 = vpop.f32.mrf.mxu0
        %505 = vmatprep.mubr.bf16.mxu0 0
        %506 = vmatmul.mubr.bf16.gmra.mxu0 %v430
        %v507 = vpop.f32.mrf.mxu0
        %v508 = vadd.f32 0.0, %v507
        %v509 = vpop.f32.mrf.mxu0
        %v510 = vpop.f32.mrf.mxu0
        %v511 = vadd.f32 0.0, %v510
        %v512 = vpop.f32.mrf.mxu0
        %513 = vmatprep.mubr.bf16.mxu0 0
        %514 = vmatmul.mubr.bf16.gmra.mxu0 %v433
        %v515 = vpop.f32.mrf.mxu0
        %v516 = vadd.f32 0.0, %v515
        %v517 = vpop.f32.mrf.mxu0
        %v518 = vpop.f32.mrf.mxu0
        %v519 = vadd.f32 0.0, %v518
        %v520 = vpop.f32.mrf.mxu0
        %521 = vmatprep.mubr.bf16.mxu0 0
        %522 = vmatmul.mubr.bf16.gmra.mxu0 %v436
        %v523 = vpop.f32.mrf.mxu0
        %v524 = vadd.f32 0.0, %v523
        %v525 = vpop.f32.mrf.mxu0
        %v526 = vpop.f32.mrf.mxu0
        %v527 = vadd.f32 0.0, %v526
        %v528 = vpop.f32.mrf.mxu0
        %529 = vmatprep.mubr.bf16.mxu0 0
        %530 = vmatmul.mubr.bf16.gmra.mxu0 %v439
        %v531 = vpop.f32.mrf.mxu0
        %v532 = vadd.f32 0.0, %v531
        %v533 = vpop.f32.mrf.mxu0
        %v534 = vpop.f32.mrf.mxu0
        %v535 = vadd.f32 0.0, %v534
        %v536 = vpop.f32.mrf.mxu0
        %537 = vdwg.mxu0
        %v538 = vpack.c.bf16 %v479, %v476
        %v539 = vpack.c.bf16 %v487, %v484
        %v540 = vpack.c.bf16 %v495, %v492
        %v541 = vpack.c.bf16 %v503, %v500
        %v542 = vpack.c.bf16 %v511, %v508
        %v543 = vpack.c.bf16 %v519, %v516
        %v544 = vpack.c.bf16 %v527, %v524
        %v545 = vpack.c.bf16 %v535, %v532
        %v554 = vunpack.c.l.b16 %v538
        %v555 = vunpack.c.h.b16 %v538
        %v556 = vunpack.c.l.b16 %v539
        %v557 = vunpack.c.h.b16 %v539
        %v558 = vunpack.c.l.b16 %v540
        %v559 = vunpack.c.h.b16 %v540
        %v560 = vunpack.c.l.b16 %v541
        %v561 = vunpack.c.h.b16 %v541
        %v562 = vunpack.c.l.b16 %v542
        %v563 = vunpack.c.h.b16 %v542
        %v564 = vunpack.c.l.b16 %v543
        %v565 = vunpack.c.h.b16 %v543
        %v566 = vunpack.c.l.b16 %v544
        %v567 = vunpack.c.h.b16 %v544
        %v568 = vunpack.c.l.b16 %v545
        %v569 = vunpack.c.h.b16 %v545
        %v570 = vpack.c.b16 %v554, %v554
        %v571 = vpack.c.b16 %v555, %v555
        %v572 = vpack.c.b16 %v556, %v556
        %v573 = vpack.c.b16 %v557, %v557
        %v574 = vpack.c.b16 %v558, %v558
        %v575 = vpack.c.b16 %v559, %v559
        %v576 = vpack.c.b16 %v560, %v560
        %v577 = vpack.c.b16 %v561, %v561
        %v578 = vpack.c.b16 %v562, %v562
        %v579 = vpack.c.b16 %v563, %v563
        %v580 = vpack.c.b16 %v564, %v564
        %v581 = vpack.c.b16 %v565, %v565
        %v582 = vpack.c.b16 %v566, %v566
        %v583 = vpack.c.b16 %v567, %v567
        %v584 = vpack.c.b16 %v568, %v568
        %v585 = vpack.c.b16 %v569, %v569
        %vm602 = vcmask 519168
        %603 = vst.msk [vmem:[#allocation2] sm:$0xf] %vm602, %v570
        %604 = vst.msk [vmem:[#allocation2 + $0x4] sm:$0xf] %vm602, %v571
        %605 = vst.msk [vmem:[#allocation2 + $0x8] sm:$0xf] %vm602, %v572
        %606 = vst.msk [vmem:[#allocation2 + $0xc] sm:$0xf] %vm602, %v573
        %607 = vst.msk [vmem:[#allocation2 + $0x10] sm:$0xf] %vm602, %v574
        %608 = vst.msk [vmem:[#allocation2 + $0x14] sm:$0xf] %vm602, %v575
        %609 = vst.msk [vmem:[#allocation2 + $0x18] sm:$0xf] %vm602, %v576
        %610 = vst.msk [vmem:[#allocation2 + $0x1c] sm:$0xf] %vm602, %v577
        %611 = vst.msk [vmem:[#allocation2 + $0x20] sm:$0xf] %vm602, %v578
        %612 = vst.msk [vmem:[#allocation2 + $0x24] sm:$0xf] %vm602, %v579
        %613 = vst.msk [vmem:[#allocation2 + $0x28] sm:$0xf] %vm602, %v580
        %614 = vst.msk [vmem:[#allocation2 + $0x2c] sm:$0xf] %vm602, %v581
        %615 = vst.msk [vmem:[#allocation2 + $0x30] sm:$0xf] %vm602, %v582
        %616 = vst.msk [vmem:[#allocation2 + $0x34] sm:$0xf] %vm602, %v583
        %617 = vst.msk [vmem:[#allocation2 + $0x38] sm:$0xf] %vm602, %v584
        %618 = vst.msk [vmem:[#allocation2 + $0x3c] sm:$0xf] %vm602, %v585
      $region52: #{basic_block_forward.11} parent=47 // pred_fallthru
        _
      %v619 = vld [vmem:[%s323] sm:$0xf]
      %v620 = vld [vmem:[%s3] sm:$0xf]
      %v621 = vld [vmem:[%s3 + $0x4] sm:$0xf]
      %v622 = vld [vmem:[%s3 + $0x8] sm:$0xf]
      %v623 = vld [vmem:[%s3 + $0xc] sm:$0xf]
      %v628 = vunpack.c.l.b16 %v620
      %v629 = vunpack.c.l.b16 %v621
      %v630 = vunpack.c.l.b16 %v622
      %v631 = vunpack.c.l.b16 %v623
      %v632 = vpack.c.b16 %v629, %v628
      %v633 = vpack.c.b16 %v631, %v630
      %vm636 = vcmask 261120
      %v638 = vsel %vm636, %v619, 0
      %640 = vmatprep.subr.bf16.mxu0 0
      %641 = vmatpush1.bf16.msra.mxu0 0
      %642 = vmatprep.subr.bf16.mxu0 0
      %643 = vmatpush1.bf16.msra.mxu0 0
      %644 = vmatprep.subr.bf16.mxu0 0
      %645 = vmatpush1.bf16.msra.mxu0 0
      %646 = vmatprep.subr.bf16.mxu0 0
      %647 = vmatpush1.bf16.msra.mxu0 0
      %648 = vmatprep.subr.bf16.mxu0 0
      %649 = vmatpush1.bf16.msra.mxu0 0
      %650 = vmatprep.subr.bf16.mxu0 0
      %651 = vmatpush1.bf16.msra.mxu0 0
      %652 = vmatprep.subr.bf16.mxu0 0
      %653 = vmatpush1.bf16.msra.mxu0 %v633
      %654 = vmatprep.subr.bf16.mxu0 0
      %655 = vmatpush1.bf16.msra.mxu0 %v632
      %656 = vmatprep.subr.bf16.mxu0 0
      %657 = vmatpush2.bf16.msra.mxu0 0
      %658 = vmatprep.subr.bf16.mxu0 0
      %659 = vmatpush2.bf16.msra.mxu0 0
      %660 = vmatprep.subr.bf16.mxu0 0
      %661 = vmatpush2.bf16.msra.mxu0 0
      %662 = vmatprep.subr.bf16.mxu0 0
      %663 = vmatpush2.bf16.msra.mxu0 0
      %664 = vmatprep.subr.bf16.mxu0 0
      %665 = vmatpush2.bf16.msra.mxu0 0
      %666 = vmatprep.subr.bf16.mxu0 0
      %667 = vmatpush2.bf16.msra.mxu0 0
      %668 = vmatprep.subr.bf16.mxu0 0
      %669 = vmatpush2.bf16.msra.mxu0 0
      %670 = vmatprep.subr.bf16.mxu0 0
      %671 = vmatpush2.bf16.msra.mxu0 0
      %672 = vmatprep.mubr.bf16.mxu0 0
      %673 = vmatmul.mubr.bf16.gmra.mxu0 %v638
      %v674 = vpop.f32.mrf.mxu0
      %v675 = vadd.f32 0.0, %v674
      %v676 = vpop.f32.mrf.mxu0
      %v677 = vpop.f32.mrf.mxu0
      %v678 = vpop.f32.mrf.mxu0
      %679 = vdwg.mxu0
      %v680 = vpack.c.bf16 %v675, %v675
      %v681 = vld [vmem:[%s331] sm:$0x1]
      %v682 = vld [vmem:[%s6] sm:$0x1]
      %v684 = vlaneseq
      %v685 = vshrl.u32 %v684, 7
      %v686 = vsub.s32 0, %v685
      %v687 = vrot.slane %v682, %v686
      %689 = vst [vmem:[#allocation3] sm:$0xff] %v687
      %v690 = vld [vmem:[#allocation2] sm:$0xf]
      %v691 = vld [vmem:[#allocation2 + $0x4] sm:$0xf]
      %v692 = vld [vmem:[#allocation2 + $0x8] sm:$0xf]
      %v693 = vld [vmem:[#allocation2 + $0xc] sm:$0xf]
      %v694 = vld [vmem:[#allocation2 + $0x10] sm:$0xf]
      %v695 = vld [vmem:[#allocation2 + $0x14] sm:$0xf]
      %v696 = vld [vmem:[#allocation2 + $0x18] sm:$0xf]
      %v697 = vld [vmem:[#allocation2 + $0x1c] sm:$0xf]
      %v698 = vld [vmem:[#allocation2 + $0x20] sm:$0xf]
      %v699 = vld [vmem:[#allocation2 + $0x24] sm:$0xf]
      %v700 = vld [vmem:[#allocation2 + $0x28] sm:$0xf]
      %v701 = vld [vmem:[#allocation2 + $0x2c] sm:$0xf]
      %v702 = vld [vmem:[#allocation2 + $0x30] sm:$0xf]
      %v703 = vld [vmem:[#allocation2 + $0x34] sm:$0xf]
      %v704 = vld [vmem:[#allocation2 + $0x38] sm:$0xf]
      %v705 = vld [vmem:[#allocation2 + $0x3c] sm:$0xf]
      %v707 = vlaneseq
      %v708 = vshrl.u32 %v707, 7
      %v709 = vsub.s32 0, %v708
      %v710 = vrot.slane %v681, %v709
      %v728 = vunpack.c.l.b16 %v690
      %v729 = vunpack.c.l.b16 %v691
      %v730 = vunpack.c.l.b16 %v692
      %v731 = vunpack.c.l.b16 %v693
      %v732 = vunpack.c.l.b16 %v694
      %v733 = vunpack.c.l.b16 %v695
      %v734 = vunpack.c.l.b16 %v696
      %v735 = vunpack.c.l.b16 %v697
      %v736 = vunpack.c.l.b16 %v698
      %v737 = vunpack.c.l.b16 %v699
      %v738 = vunpack.c.l.b16 %v700
      %v739 = vunpack.c.l.b16 %v701
      %v740 = vunpack.c.l.b16 %v702
      %v741 = vunpack.c.l.b16 %v703
      %v742 = vunpack.c.l.b16 %v704
      %v743 = vunpack.c.l.b16 %v705
      %v744 = vpack.c.b16 %v729, %v728
      %v745 = vpack.c.b16 %v731, %v730
      %v746 = vpack.c.b16 %v733, %v732
      %v747 = vpack.c.b16 %v735, %v734
      %v748 = vpack.c.b16 %v737, %v736
      %v749 = vpack.c.b16 %v739, %v738
      %v750 = vpack.c.b16 %v741, %v740
      %v751 = vpack.c.b16 %v743, %v742
      %vm752 = vcmask 130048
      %v754 = vsel %vm752, %v680, 0
      %v757 = vsel %vm752, %v744, 0
      %v760 = vsel %vm752, %v745, 0
      %v763 = vsel %vm752, %v746, 0
      %v766 = vsel %vm752, %v747, 0
      %v769 = vsel %vm752, %v748, 0
      %v772 = vsel %vm752, %v749, 0
      %v775 = vsel %vm752, %v750, 0
      %v778 = vsel %vm752, %v751, 0
      %780 = vmatprep.subr.bf16.mxu0 0
      %781 = vmatpush1.bf16.xpose.msra.mxu0 %v778
      %782 = vmatprep.subr.bf16.mxu0 0
      %783 = vmatpush1.bf16.xpose.msra.mxu0 %v775
      %784 = vmatprep.subr.bf16.mxu0 0
      %785 = vmatpush1.bf16.xpose.msra.mxu0 %v772
      %786 = vmatprep.subr.bf16.mxu0 0
      %787 = vmatpush1.bf16.xpose.msra.mxu0 %v769
      %788 = vmatprep.subr.bf16.mxu0 0
      %789 = vmatpush1.bf16.xpose.msra.mxu0 %v766
      %790 = vmatprep.subr.bf16.mxu0 0
      %791 = vmatpush1.bf16.xpose.msra.mxu0 %v763
      %792 = vmatprep.subr.bf16.mxu0 0
      %793 = vmatpush1.bf16.xpose.msra.mxu0 %v760
      %794 = vmatprep.subr.bf16.mxu0 0
      %795 = vmatpush1.bf16.xpose.msra.mxu0 %v757
      %796 = vmatprep.subr.bf16.mxu0 0
      %797 = vmatpush2.bf16.xpose.msra.mxu0 0
      %798 = vmatprep.subr.bf16.mxu0 0
      %799 = vmatpush2.bf16.xpose.msra.mxu0 0
      %800 = vmatprep.subr.bf16.mxu0 0
      %801 = vmatpush2.bf16.xpose.msra.mxu0 0
      %802 = vmatprep.subr.bf16.mxu0 0
      %803 = vmatpush2.bf16.xpose.msra.mxu0 0
      %804 = vmatprep.subr.bf16.mxu0 0
      %805 = vmatpush2.bf16.xpose.msra.mxu0 0
      %806 = vmatprep.subr.bf16.mxu0 0
      %807 = vmatpush2.bf16.xpose.msra.mxu0 0
      %808 = vmatprep.subr.bf16.mxu0 0
      %809 = vmatpush2.bf16.xpose.msra.mxu0 0
      %810 = vmatprep.subr.bf16.mxu0 0
      %811 = vmatpush2.bf16.xpose.msra.mxu0 0
      %812 = vmatprep.mubr.bf16.mxu0 0
      %813 = vmatmul.mubr.bf16.gmra.mxu0 %v754
      %v814 = vpop.f32.mrf.mxu0
      %v815 = vadd.f32 %v710, %v814
      %v816 = vpop.f32.mrf.mxu0
      %v817 = vpop.f32.mrf.mxu0
      %v818 = vpop.f32.mrf.mxu0
      %819 = vdwg.mxu0
      %820 = vmax.xlane.f32.xlu0 %v815
      %v821 = vpop.xlane.xlu0 %820
      %v822 = vsub.f32 %v815, %v821
      %v823 = vmul.f32 %v822, 1.442695
      %v824 = vpow.pop %v823
      %825 = vadd.xlane.f32.xlu0 %v824
      %v826 = vpop.xlane.xlu0 %825
      %v827 = vrcp.pop %v826
      %v828 = vmul.f32 %v824, %v827
      %v829 = vpack.c.bf16 %v828, %v828
      %830 = vrot.lane.b32.xlu0 %v744, 96
      %v831 = vpop.permute.xlu0 %830
      %832 = vrot.lane.b32.xlu0 %v745, 96
      %v833 = vpop.permute.xlu0 %832
      %834 = vrot.lane.b32.xlu0 %v746, 96
      %v835 = vpop.permute.xlu0 %834
      %836 = vrot.lane.b32.xlu0 %v747, 96
      %v837 = vpop.permute.xlu0 %836
      %838 = vrot.lane.b32.xlu0 %v748, 96
      %v839 = vpop.permute.xlu0 %838
      %840 = vrot.lane.b32.xlu0 %v749, 96
      %v841 = vpop.permute.xlu0 %840
      %842 = vrot.lane.b32.xlu0 %v750, 96
      %v843 = vpop.permute.xlu0 %842
      %844 = vrot.lane.b32.xlu0 %v751, 96
      %v845 = vpop.permute.xlu0 %844
      %854 = vmatprep.subr.bf16.mxu0 0
      %855 = vmatpush1.bf16.msra.mxu0 %v845
      %856 = vmatprep.subr.bf16.mxu0 0
      %857 = vmatpush1.bf16.msra.mxu0 %v843
      %858 = vmatprep.subr.bf16.mxu0 0
      %859 = vmatpush1.bf16.msra.mxu0 %v841
      %860 = vmatprep.subr.bf16.mxu0 0
      %861 = vmatpush1.bf16.msra.mxu0 %v839
      %862 = vmatprep.subr.bf16.mxu0 0
      %863 = vmatpush1.bf16.msra.mxu0 %v837
      %864 = vmatprep.subr.bf16.mxu0 0
      %865 = vmatpush1.bf16.msra.mxu0 %v835
      %866 = vmatprep.subr.bf16.mxu0 0
      %867 = vmatpush1.bf16.msra.mxu0 %v833
      %868 = vmatprep.subr.bf16.mxu0 0
      %869 = vmatpush1.bf16.msra.mxu0 %v831
      %870 = vmatprep.subr.bf16.mxu0 0
      %871 = vmatpush2.bf16.msra.mxu0 0
      %872 = vmatprep.subr.bf16.mxu0 0
      %873 = vmatpush2.bf16.msra.mxu0 0
      %874 = vmatprep.subr.bf16.mxu0 0
      %875 = vmatpush2.bf16.msra.mxu0 0
      %876 = vmatprep.subr.bf16.mxu0 0
      %877 = vmatpush2.bf16.msra.mxu0 0
      %878 = vmatprep.subr.bf16.mxu0 0
      %879 = vmatpush2.bf16.msra.mxu0 0
      %880 = vmatprep.subr.bf16.mxu0 0
      %881 = vmatpush2.bf16.msra.mxu0 0
      %882 = vmatprep.subr.bf16.mxu0 0
      %883 = vmatpush2.bf16.msra.mxu0 0
      %884 = vmatprep.subr.bf16.mxu0 0
      %885 = vmatpush2.bf16.msra.mxu0 0
      %886 = vmatprep.mubr.bf16.mxu0 0
      %887 = vmatmul.mubr.bf16.gmra.mxu0 %v829
      %v888 = vpop.f32.mrf.mxu0
      %v889 = vadd.f32 0.0, %v888
      %v890 = vpop.f32.mrf.mxu0
      %v891 = vpop.f32.mrf.mxu0
      %v892 = vpop.f32.mrf.mxu0
      %893 = vdwg.mxu0
      %v894 = vld [vmem:[#allocation3] sm:$0xff]
      %v895 = vpack.c.bf16 %v889, %v889
      %v896 = vld [vmem:[%s5] sm:$0xf]
      %v897 = vld [vmem:[%s5 + $0x4] sm:$0xf]
      %v900 = vunpack.c.l.b16 %v896
      %v901 = vunpack.c.l.b16 %v897
      %v902 = vpack.c.b16 %v901, %v900
      %v905 = vsel %vm752, %v895, 0
      %907 = vmatprep.subr.bf16.mxu0 0
      %908 = vmatpush1.bf16.msra.mxu0 0
      %909 = vmatprep.subr.bf16.mxu0 0
      %910 = vmatpush1.bf16.msra.mxu0 0
      %911 = vmatprep.subr.bf16.mxu0 0
      %912 = vmatpush1.bf16.msra.mxu0 0
      %913 = vmatprep.subr.bf16.mxu0 0
      %914 = vmatpush1.bf16.msra.mxu0 0
      %915 = vmatprep.subr.bf16.mxu0 0
      %916 = vmatpush1.bf16.msra.mxu0 0
      %917 = vmatprep.subr.bf16.mxu0 0
      %918 = vmatpush1.bf16.msra.mxu0 0
      %919 = vmatprep.subr.bf16.mxu0 0
      %920 = vmatpush1.bf16.msra.mxu0 0
      %921 = vmatprep.subr.bf16.mxu0 0
      %922 = vmatpush1.bf16.msra.mxu0 %v902
      %923 = vmatprep.subr.bf16.mxu0 0
      %924 = vmatpush2.bf16.msra.mxu0 0
      %925 = vmatprep.subr.bf16.mxu0 0
      %926 = vmatpush2.bf16.msra.mxu0 0
      %927 = vmatprep.subr.bf16.mxu0 0
      %928 = vmatpush2.bf16.msra.mxu0 0
      %929 = vmatprep.subr.bf16.mxu0 0
      %930 = vmatpush2.bf16.msra.mxu0 0
      %931 = vmatprep.subr.bf16.mxu0 0
      %932 = vmatpush2.bf16.msra.mxu0 0
      %933 = vmatprep.subr.bf16.mxu0 0
      %934 = vmatpush2.bf16.msra.mxu0 0
      %935 = vmatprep.subr.bf16.mxu0 0
      %936 = vmatpush2.bf16.msra.mxu0 0
      %937 = vmatprep.subr.bf16.mxu0 0
      %938 = vmatpush2.bf16.msra.mxu0 0
      %939 = vmatprep.mubr.bf16.mxu0 0
      %940 = vmatmul.mubr.bf16.gmra.mxu0 %v905
      %v941 = vpop.f32.mrf.mxu0
      %v942 = vadd.f32 0.0, %v941
      %v943 = vpop.f32.mrf.mxu0
      %v944 = vpop.f32.mrf.mxu0
      %v945 = vpop.f32.mrf.mxu0
      %946 = vdwg.mxu0
      %v947 = vadd.f32 %v894, %v942
      %948 = vst [vmem:[#allocation3] sm:$0xff] %v947
      %v949 = vld [vmem:[#allocation2] sm:$0xf]
      %v950 = vld [vmem:[#allocation2 + $0x4] sm:$0xf]
      %v951 = vld [vmem:[#allocation2 + $0x8] sm:$0xf]
      %v952 = vld [vmem:[#allocation2 + $0xc] sm:$0xf]
      %v953 = vld [vmem:[#allocation2 + $0x10] sm:$0xf]
      %v954 = vld [vmem:[#allocation2 + $0x14] sm:$0xf]
      %v955 = vld [vmem:[#allocation2 + $0x18] sm:$0xf]
      %v956 = vld [vmem:[#allocation2 + $0x1c] sm:$0xf]
      %v957 = vld [vmem:[#allocation2 + $0x20] sm:$0xf]
      %v958 = vld [vmem:[#allocation2 + $0x24] sm:$0xf]
      %v959 = vld [vmem:[#allocation2 + $0x28] sm:$0xf]
      %v960 = vld [vmem:[#allocation2 + $0x2c] sm:$0xf]
      %v961 = vld [vmem:[#allocation2 + $0x30] sm:$0xf]
      %v962 = vld [vmem:[#allocation2 + $0x34] sm:$0xf]
      %v963 = vld [vmem:[#allocation2 + $0x38] sm:$0xf]
      %v964 = vld [vmem:[#allocation2 + $0x3c] sm:$0xf]
      %966 = vrot.lane.b32.xlu0 %v680, 112
      %v967 = vpop.permute.xlu0 %966
      %v984 = vunpack.c.l.b16 %v949
      %v985 = vunpack.c.l.b16 %v950
      %v986 = vunpack.c.l.b16 %v951
      %v987 = vunpack.c.l.b16 %v952
      %v988 = vunpack.c.l.b16 %v953
      %v989 = vunpack.c.l.b16 %v954
      %v990 = vunpack.c.l.b16 %v955
      %v991 = vunpack.c.l.b16 %v956
      %v992 = vunpack.c.l.b16 %v957
      %v993 = vunpack.c.l.b16 %v958
      %v994 = vunpack.c.l.b16 %v959
      %v995 = vunpack.c.l.b16 %v960
      %v996 = vunpack.c.l.b16 %v961
      %v997 = vunpack.c.l.b16 %v962
      %v998 = vunpack.c.l.b16 %v963
      %v999 = vunpack.c.l.b16 %v964
      %v1000 = vpack.c.b16 %v985, %v984
      %v1001 = vpack.c.b16 %v987, %v986
      %v1002 = vpack.c.b16 %v989, %v988
      %v1003 = vpack.c.b16 %v991, %v990
      %v1004 = vpack.c.b16 %v993, %v992
      %v1005 = vpack.c.b16 %v995, %v994
      %v1006 = vpack.c.b16 %v997, %v996
      %v1007 = vpack.c.b16 %v999, %v998
      %1008 = vrot.lane.b32.xlu0 %v1000, 112
      %v1009 = vpop.permute.xlu0 %1008
      %1010 = vrot.lane.b32.xlu0 %v1001, 112
      %v1011 = vpop.permute.xlu0 %1010
      %1012 = vrot.lane.b32.xlu0 %v1002, 112
      %v1013 = vpop.permute.xlu0 %1012
      %1014 = vrot.lane.b32.xlu0 %v1003, 112
      %v1015 = vpop.permute.xlu0 %1014
      %1016 = vrot.lane.b32.xlu0 %v1004, 112
      %v1017 = vpop.permute.xlu0 %1016
      %1018 = vrot.lane.b32.xlu0 %v1005, 112
      %v1019 = vpop.permute.xlu0 %1018
      %1020 = vrot.lane.b32.xlu0 %v1006, 112
      %v1021 = vpop.permute.xlu0 %1020
      %1022 = vrot.lane.b32.xlu0 %v1007, 112
      %v1023 = vpop.permute.xlu0 %1022
      %v1025 = vsel %vm752, %v967, 0
      %v1028 = vsel %vm752, %v1009, 0
      %v1031 = vsel %vm752, %v1011, 0
      %v1034 = vsel %vm752, %v1013, 0
      %v1037 = vsel %vm752, %v1015, 0
      %v1040 = vsel %vm752, %v1017, 0
      %v1043 = vsel %vm752, %v1019, 0
      %v1046 = vsel %vm752, %v1021, 0
      %v1049 = vsel %vm752, %v1023, 0
      %1051 = vmatprep.subr.bf16.mxu0 0
      %1052 = vmatpush1.bf16.xpose.msra.mxu0 %v1049
      %1053 = vmatprep.subr.bf16.mxu0 0
      %1054 = vmatpush1.bf16.xpose.msra.mxu0 %v1046
      %1055 = vmatprep.subr.bf16.mxu0 0
      %1056 = vmatpush1.bf16.xpose.msra.mxu0 %v1043
      %1057 = vmatprep.subr.bf16.mxu0 0
      %1058 = vmatpush1.bf16.xpose.msra.mxu0 %v1040
      %1059 = vmatprep.subr.bf16.mxu0 0
      %1060 = vmatpush1.bf16.xpose.msra.mxu0 %v1037
      %1061 = vmatprep.subr.bf16.mxu0 0
      %1062 = vmatpush1.bf16.xpose.msra.mxu0 %v1034
      %1063 = vmatprep.subr.bf16.mxu0 0
      %1064 = vmatpush1.bf16.xpose.msra.mxu0 %v1031
      %1065 = vmatprep.subr.bf16.mxu0 0
      %1066 = vmatpush1.bf16.xpose.msra.mxu0 %v1028
      %1067 = vmatprep.subr.bf16.mxu0 0
      %1068 = vmatpush2.bf16.xpose.msra.mxu0 0
      %1069 = vmatprep.subr.bf16.mxu0 0
      %1070 = vmatpush2.bf16.xpose.msra.mxu0 0
      %1071 = vmatprep.subr.bf16.mxu0 0
      %1072 = vmatpush2.bf16.xpose.msra.mxu0 0
      %1073 = vmatprep.subr.bf16.mxu0 0
      %1074 = vmatpush2.bf16.xpose.msra.mxu0 0
      %1075 = vmatprep.subr.bf16.mxu0 0
      %1076 = vmatpush2.bf16.xpose.msra.mxu0 0
      %1077 = vmatprep.subr.bf16.mxu0 0
      %1078 = vmatpush2.bf16.xpose.msra.mxu0 0
      %1079 = vmatprep.subr.bf16.mxu0 0
      %1080 = vmatpush2.bf16.xpose.msra.mxu0 0
      %1081 = vmatprep.subr.bf16.mxu0 0
      %1082 = vmatpush2.bf16.xpose.msra.mxu0 0
      %1083 = vmatprep.mubr.bf16.mxu0 0
      %1084 = vmatmul.mubr.bf16.gmra.mxu0 %v1025
      %v1085 = vpop.f32.mrf.mxu0
      %v1086 = vadd.f32 %v710, %v1085
      %v1087 = vpop.f32.mrf.mxu0
      %v1088 = vpop.f32.mrf.mxu0
      %v1089 = vpop.f32.mrf.mxu0
      %1090 = vdwg.mxu0
      %1091 = vmax.xlane.f32.xlu0 %v1086
      %v1092 = vpop.xlane.xlu0 %1091
      %v1093 = vsub.f32 %v1086, %v1092
      %v1094 = vmul.f32 %v1093, 1.442695
      %v1095 = vpow.pop %v1094
      %1096 = vadd.xlane.f32.xlu0 %v1095
      %v1097 = vpop.xlane.xlu0 %1096
      %v1098 = vrcp.pop %v1097
      %v1099 = vmul.f32 %v1095, %v1098
      %v1100 = vpack.c.bf16 %v1099, %v1099
      %1101 = vrot.lane.b32.xlu0 %v1000, 80
      %v1102 = vpop.permute.xlu0 %1101
      %1103 = vrot.lane.b32.xlu0 %v1001, 80
      %v1104 = vpop.permute.xlu0 %1103
      %1105 = vrot.lane.b32.xlu0 %v1002, 80
      %v1106 = vpop.permute.xlu0 %1105
      %1107 = vrot.lane.b32.xlu0 %v1003, 80
      %v1108 = vpop.permute.xlu0 %1107
      %1109 = vrot.lane.b32.xlu0 %v1004, 80
      %v1110 = vpop.permute.xlu0 %1109
      %1111 = vrot.lane.b32.xlu0 %v1005, 80
      %v1112 = vpop.permute.xlu0 %1111
      %1113 = vrot.lane.b32.xlu0 %v1006, 80
      %v1114 = vpop.permute.xlu0 %1113
      %1115 = vrot.lane.b32.xlu0 %v1007, 80
      %v1116 = vpop.permute.xlu0 %1115
      %1125 = vmatprep.subr.bf16.mxu0 0
      %1126 = vmatpush1.bf16.msra.mxu0 %v1116
      %1127 = vmatprep.subr.bf16.mxu0 0
      %1128 = vmatpush1.bf16.msra.mxu0 %v1114
      %1129 = vmatprep.subr.bf16.mxu0 0
      %1130 = vmatpush1.bf16.msra.mxu0 %v1112
      %1131 = vmatprep.subr.bf16.mxu0 0
      %1132 = vmatpush1.bf16.msra.mxu0 %v1110
      %1133 = vmatprep.subr.bf16.mxu0 0
      %1134 = vmatpush1.bf16.msra.mxu0 %v1108
      %1135 = vmatprep.subr.bf16.mxu0 0
      %1136 = vmatpush1.bf16.msra.mxu0 %v1106
      %1137 = vmatprep.subr.bf16.mxu0 0
      %1138 = vmatpush1.bf16.msra.mxu0 %v1104
      %1139 = vmatprep.subr.bf16.mxu0 0
      %1140 = vmatpush1.bf16.msra.mxu0 %v1102
      %1141 = vmatprep.subr.bf16.mxu0 0
      %1142 = vmatpush2.bf16.msra.mxu0 0
      %1143 = vmatprep.subr.bf16.mxu0 0
      %1144 = vmatpush2.bf16.msra.mxu0 0
      %1145 = vmatprep.subr.bf16.mxu0 0
      %1146 = vmatpush2.bf16.msra.mxu0 0
      %1147 = vmatprep.subr.bf16.mxu0 0
      %1148 = vmatpush2.bf16.msra.mxu0 0
      %1149 = vmatprep.subr.bf16.mxu0 0
      %1150 = vmatpush2.bf16.msra.mxu0 0
      %1151 = vmatprep.subr.bf16.mxu0 0
      %1152 = vmatpush2.bf16.msra.mxu0 0
      %1153 = vmatprep.subr.bf16.mxu0 0
      %1154 = vmatpush2.bf16.msra.mxu0 0
      %1155 = vmatprep.subr.bf16.mxu0 0
      %1156 = vmatpush2.bf16.msra.mxu0 0
      %1157 = vmatprep.mubr.bf16.mxu0 0
      %1158 = vmatmul.mubr.bf16.gmra.mxu0 %v1100
      %v1159 = vpop.f32.mrf.mxu0
      %v1160 = vadd.f32 0.0, %v1159
      %v1161 = vpop.f32.mrf.mxu0
      %v1162 = vpop.f32.mrf.mxu0
      %v1163 = vpop.f32.mrf.mxu0
      %1164 = vdwg.mxu0
      %v1165 = vld [vmem:[#allocation3] sm:$0xff]
      %v1166 = vpack.c.bf16 %v1160, %v1160
      %v1167 = vld [vmem:[%s5 + $0x8] sm:$0xf]
      %v1168 = vld [vmem:[%s5 + $0xc] sm:$0xf]
      %v1171 = vunpack.c.l.b16 %v1167
      %v1172 = vunpack.c.l.b16 %v1168
      %v1173 = vpack.c.b16 %v1172, %v1171
      %v1176 = vsel %vm752, %v1166, 0
      %1178 = vmatprep.subr.bf16.mxu0 0
      %1179 = vmatpush1.bf16.msra.mxu0 0
      %1180 = vmatprep.subr.bf16.mxu0 0
      %1181 = vmatpush1.bf16.msra.mxu0 0
      %1182 = vmatprep.subr.bf16.mxu0 0
      %1183 = vmatpush1.bf16.msra.mxu0 0
      %1184 = vmatprep.subr.bf16.mxu0 0
      %1185 = vmatpush1.bf16.msra.mxu0 0
      %1186 = vmatprep.subr.bf16.mxu0 0
      %1187 = vmatpush1.bf16.msra.mxu0 0
      %1188 = vmatprep.subr.bf16.mxu0 0
      %1189 = vmatpush1.bf16.msra.mxu0 0
      %1190 = vmatprep.subr.bf16.mxu0 0
      %1191 = vmatpush1.bf16.msra.mxu0 0
      %1192 = vmatprep.subr.bf16.mxu0 0
      %1193 = vmatpush1.bf16.msra.mxu0 %v1173
      %1194 = vmatprep.subr.bf16.mxu0 0
      %1195 = vmatpush2.bf16.msra.mxu0 0
      %1196 = vmatprep.subr.bf16.mxu0 0
      %1197 = vmatpush2.bf16.msra.mxu0 0
      %1198 = vmatprep.subr.bf16.mxu0 0
      %1199 = vmatpush2.bf16.msra.mxu0 0
      %1200 = vmatprep.subr.bf16.mxu0 0
      %1201 = vmatpush2.bf16.msra.mxu0 0
      %1202 = vmatprep.subr.bf16.mxu0 0
      %1203 = vmatpush2.bf16.msra.mxu0 0
      %1204 = vmatprep.subr.bf16.mxu0 0
      %1205 = vmatpush2.bf16.msra.mxu0 0
      %1206 = vmatprep.subr.bf16.mxu0 0
      %1207 = vmatpush2.bf16.msra.mxu0 0
      %1208 = vmatprep.subr.bf16.mxu0 0
      %1209 = vmatpush2.bf16.msra.mxu0 0
      %1210 = vmatprep.mubr.bf16.mxu0 0
      %1211 = vmatmul.mubr.bf16.gmra.mxu0 %v1176
      %v1212 = vpop.f32.mrf.mxu0
      %v1213 = vadd.f32 0.0, %v1212
      %v1214 = vpop.f32.mrf.mxu0
      %v1215 = vpop.f32.mrf.mxu0
      %v1216 = vpop.f32.mrf.mxu0
      %1217 = vdwg.mxu0
      %v1218 = vadd.f32 %v1165, %v1213
      %1219 = vst [vmem:[#allocation3] sm:$0xff] %v1218
      %v1220 = vld [vmem:[#allocation3] sm:$0xff]
      %v1221 = vpack.c.bf16 %v1220, %v1220
      %1222 = vst [vmem:[%s338] sm:$0xf] %v1221
      %p1223 = scmp.lt.s32.totalorder %s22, 89
      %s1224 = scalar_select %p1223, %s22, 89
      %p1225 = scmp.lt.s32.totalorder %s23, 0
      %s1226 = scalar_select %p1225, %s23, 0
      %s1227 = sadd.s32 %s1226, %s1224
      %s1228 = smul.addr %s1227, 4
      %s1229 = scalar_lea.vmem %s7, %s1228
      // Predicated region
      $region53: #{basic_block_forward.11} parent=47 // pred_check
        %p1230 = pneg %p214
      $region54: #{basic_block_forward.11} parent=47 // pred_check_branch
        %1232 = sbr.rel (%p1230) target = $region56
      $region55: #{basic_block_forward.11} parent=47 // pred_region
        _
      $region56: #{basic_block_forward.11} parent=47 // pred_fallthru
        _
    $region48: #{basic_block_forward.11} parent=5 // pred_fallthru
      _
    %p1233 = scmp.le.s32.totalorder 2, %s13
    // Predicated region
    $region57: #{basic_block_forward.11} parent=5 // pred_check
      %p1234 = pneg %p1233
    $region58: #{basic_block_forward.11} parent=5 // pred_check_branch
      %1236 = sbr.rel (%p1234) target = $region60
    $region59: #{basic_block_forward.11} parent=5 // pred_region
      %s1237 = ssub.s32 %s13, 2
      // Predicated region
      $region61: #{basic_block_forward.11} parent=59 // pred_check
        %p1238 = pneg %p220
      $region62: #{basic_block_forward.11} parent=59 // pred_check_branch
        %1240 = sbr.rel (%p1238) target = $region64
      $region63: #{basic_block_forward.11} parent=59 // pred_region
        %p1241 = scmp.lt.s32.totalorder %s24, 89
        %s1242 = scalar_select %p1241, %s24, 89
        %p1243 = scmp.lt.s32.totalorder %s25, 0
        %s1244 = scalar_select %p1243, %s25, 0
        %s1245 = sadd.s32 %s1244, %s1242
        %s1246 = smul.addr %s1245, 4
        %s1247 = scalar_lea.vmem %s7, %s1246
      $region64: #{basic_block_forward.11} parent=59 // pred_fallthru
        _
    $region60: #{basic_block_forward.11} parent=5 // pred_fallthru
      _
  $region6: #{basic_block_forward.11} parent=0 // loop_footer
    %s17 = sadd.s32 1, %s13
  $region7: #{basic_block_forward.11} parent=0 // loop_footer_branch
    %12 = sbr.rel target = $region3
  $region8: #{basic_block_forward.11} parent=0 // loop_exit
    _

// kernel: basic_block_forward.14
$region0: #{basic_block_forward.14}
  #allocation0 [shape = 'u32[]', space=smem, size = 0x4, offset = 0x4, fixed_abs, tag = 'smem constant byte address 0x4 - core index']
  #allocation1 [shape = 'u32[144,128]{1,0:T(1,128)}', space=vmem, size = 0x12000, scoped, tag = 'internal scratch']
  %s0 = inlined_call_operand.vmem [shape: bf16[96,56], index: 0, kind: input, shape index: {}]
  %s1 = inlined_call_operand.vmem [shape: bf16[96,128], index: 1, kind: input, shape index: {}]
  %s2 = inlined_call_operand.vmem [shape: bf16[56,128], index: 2, kind: input, shape index: {}]
  %s3 = inlined_call_operand.vmem [shape: bf16[128,128], index: 3, kind: input, shape index: {}]
  %s4 = inlined_call_operand.vmem [shape: f32[1,128], index: 4, kind: input, shape index: {}, may-alias: {4,6}]
  %s5 = inlined_call_operand.vmem [shape: bf16[128,128], index: 5, kind: input, shape index: {}]
  %s6 = inlined_call_operand.vmem [shape: f32[1,128], index: 6, kind: input, shape index: {}, may-alias: {4,6}]
  %s7 = inlined_call_operand.vmem [shape: f32[96,128], index: 7, kind: output, shape index: {}]
  %s8 = sld [smem:[#allocation0]]
  $region38: #{basic_block_forward.14} parent=0
    _
  %s10 = ssub.s32 1, %s8
  %s11 = scalar_select 0, %s10, %s8
  // Predicated region
  $region2: #{basic_block_forward.14} parent=0 // pred_check
    _
  $region3: #{basic_block_forward.14} parent=0 // pred_check_branch
    %13 = sbr.rel (0) target = $region5
  $region4: #{basic_block_forward.14} parent=0 // pred_region
    _
  $region5: #{basic_block_forward.14} parent=0 // pred_fallthru
    _
  // Predicated region
  $region6: #{basic_block_forward.14} parent=0 // pred_check
    _
  $region7: #{basic_block_forward.14} parent=0 // pred_check_branch
    %15 = sbr.rel (0) target = $region9
  $region8: #{basic_block_forward.14} parent=0 // pred_region
    _
  $region9: #{basic_block_forward.14} parent=0 // pred_fallthru
    _
  // Predicated region
  $region10: #{basic_block_forward.14} parent=0 // pred_check
    _
  $region11: #{basic_block_forward.14} parent=0 // pred_check_branch
    %17 = sbr.rel (0) target = $region13
  $region12: #{basic_block_forward.14} parent=0 // pred_region
    _
  $region13: #{basic_block_forward.14} parent=0 // pred_fallthru
    _
  // Predicated region
  $region14: #{basic_block_forward.14} parent=0 // pred_check
    _
  $region15: #{basic_block_forward.14} parent=0 // pred_check_branch
    %19 = sbr.rel (0) target = $region17
  $region16: #{basic_block_forward.14} parent=0 // pred_region
    _
  $region17: #{basic_block_forward.14} parent=0 // pred_fallthru
    _
  // Predicated region
  $region18: #{basic_block_forward.14} parent=0 // pred_check
    _
  $region19: #{basic_block_forward.14} parent=0 // pred_check_branch
    %21 = sbr.rel (0) target = $region21
  $region20: #{basic_block_forward.14} parent=0 // pred_region
    _
  $region21: #{basic_block_forward.14} parent=0 // pred_fallthru
    _
  // Predicated region
  $region22: #{basic_block_forward.14} parent=0 // pred_check
    _
  $region23: #{basic_block_forward.14} parent=0 // pred_check_branch
    %23 = sbr.rel (0) target = $region25
  $region24: #{basic_block_forward.14} parent=0 // pred_region
    _
  $region25: #{basic_block_forward.14} parent=0 // pred_fallthru
    _
  // Predicated region
  $region26: #{basic_block_forward.14} parent=0 // pred_check
    _
  $region27: #{basic_block_forward.14} parent=0 // pred_check_branch
    %25 = sbr.rel (0) target = $region29
  $region28: #{basic_block_forward.14} parent=0 // pred_region
    _
  $region29: #{basic_block_forward.14} parent=0 // pred_fallthru
    _
  %v27 = vld [vmem:[%s0] sm:$0xf]
  %v28 = vld [vmem:[%s0 + $0x4] sm:$0xf]
  %v29 = vld [vmem:[%s0 + $0x8] sm:$0xf]
  %v30 = vld [vmem:[%s0 + $0xc] sm:$0xf]
  %v31 = vld [vmem:[%s0 + $0x10] sm:$0xf]
  %v32 = vld [vmem:[%s0 + $0x14] sm:$0xf]
  %v33 = vld [vmem:[%s0 + $0x18] sm:$0xf]
  %v34 = vld [vmem:[%s0 + $0x1c] sm:$0xf]
  %v35 = vld [vmem:[%s0 + $0x20] sm:$0xf]
  %v36 = vld [vmem:[%s0 + $0x24] sm:$0xf]
  %v37 = vld [vmem:[%s0 + $0x28] sm:$0xf]
  %v38 = vld [vmem:[%s0 + $0x2c] sm:$0xf]
  %v39 = vld [vmem:[%s2] sm:$0xf]
  %v40 = vld [vmem:[%s2 + $0x4] sm:$0xf]
  %v41 = vld [vmem:[%s2 + $0x8] sm:$0xf]
  %v42 = vld [vmem:[%s2 + $0xc] sm:$0xf]
  %v43 = vld [vmem:[%s2 + $0x10] sm:$0xf]
  %v44 = vld [vmem:[%s2 + $0x14] sm:$0xf]
  %v45 = vld [vmem:[%s2 + $0x18] sm:$0xf]
  %v46 = vld [vmem:[%s1] sm:$0xf]
  %v47 = vld [vmem:[%s1 + $0x4] sm:$0xf]
  %v48 = vld [vmem:[%s1 + $0x8] sm:$0xf]
  %v49 = vld [vmem:[%s1 + $0xc] sm:$0xf]
  %v50 = vld [vmem:[%s1 + $0x10] sm:$0xf]
  %v51 = vld [vmem:[%s1 + $0x14] sm:$0xf]
  %v52 = vld [vmem:[%s1 + $0x18] sm:$0xf]
  %v53 = vld [vmem:[%s1 + $0x1c] sm:$0xf]
  %v54 = vld [vmem:[%s1 + $0x20] sm:$0xf]
  %v55 = vld [vmem:[%s1 + $0x24] sm:$0xf]
  %v56 = vld [vmem:[%s1 + $0x28] sm:$0xf]
  %v57 = vld [vmem:[%s1 + $0x2c] sm:$0xf]
  %v58 = vunpack.c.l.bf16 %v46
  %v59 = vunpack.c.l.bf16 %v47
  %v60 = vunpack.c.l.bf16 %v48
  %v61 = vunpack.c.l.bf16 %v49
  %v62 = vunpack.c.l.bf16 %v50
  %v63 = vunpack.c.l.bf16 %v51
  %v64 = vunpack.c.l.bf16 %v52
  %v65 = vunpack.c.l.bf16 %v53
  %v66 = vunpack.c.l.bf16 %v54
  %v67 = vunpack.c.l.bf16 %v55
  %v68 = vunpack.c.l.bf16 %v56
  %v69 = vunpack.c.l.bf16 %v57
  %v82 = vunpack.c.l.b16 %v27
  %v83 = vunpack.c.l.b16 %v28
  %v84 = vunpack.c.l.b16 %v29
  %v85 = vunpack.c.l.b16 %v30
  %v86 = vunpack.c.l.b16 %v31
  %v87 = vunpack.c.l.b16 %v32
  %v88 = vunpack.c.l.b16 %v33
  %v89 = vunpack.c.l.b16 %v34
  %v90 = vunpack.c.l.b16 %v35
  %v91 = vunpack.c.l.b16 %v36
  %v92 = vunpack.c.l.b16 %v37
  %v93 = vunpack.c.l.b16 %v38
  %v94 = vpack.c.b16 %v83, %v82
  %v95 = vpack.c.b16 %v85, %v84
  %v96 = vpack.c.b16 %v87, %v86
  %v97 = vpack.c.b16 %v89, %v88
  %v98 = vpack.c.b16 %v91, %v90
  %v99 = vpack.c.b16 %v93, %v92
  %v107 = vunpack.c.l.b16 %v39
  %v108 = vunpack.c.l.b16 %v40
  %v109 = vunpack.c.l.b16 %v41
  %v110 = vunpack.c.l.b16 %v42
  %v111 = vunpack.c.l.b16 %v43
  %v112 = vunpack.c.l.b16 %v44
  %v113 = vunpack.c.l.b16 %v45
  %v114 = vpack.c.b16 %v108, %v107
  %v115 = vpack.c.b16 %v110, %v109
  %v116 = vpack.c.b16 %v112, %v111
  %v117 = vpack.c.b16 %v113, %v113
  %vm121 = vcmask 457728
  %v123 = vsel %vm121, %v94, 0
  %v126 = vsel %vm121, %v95, 0
  %v129 = vsel %vm121, %v96, 0
  %v132 = vsel %vm121, %v97, 0
  %v135 = vsel %vm121, %v98, 0
  %v138 = vsel %vm121, %v99, 0
  %vm140 = vcmask 1043456
  %v142 = vsel %vm140, %v117, 0
  %144 = vmatprep.subr.bf16.mxu0 0
  %145 = vmatpush1.bf16.msra.mxu0 0
  %146 = vmatprep.subr.bf16.mxu0 0
  %147 = vmatpush1.bf16.msra.mxu0 0
  %148 = vmatprep.subr.bf16.mxu0 0
  %149 = vmatpush1.bf16.msra.mxu0 0
  %150 = vmatprep.subr.bf16.mxu0 0
  %151 = vmatpush1.bf16.msra.mxu0 0
  %152 = vmatprep.subr.bf16.mxu0 0
  %153 = vmatpush1.bf16.msra.mxu0 %v142
  %154 = vmatprep.subr.bf16.mxu0 0
  %155 = vmatpush1.bf16.msra.mxu0 %v116
  %156 = vmatprep.subr.bf16.mxu0 0
  %157 = vmatpush1.bf16.msra.mxu0 %v115
  %158 = vmatprep.subr.bf16.mxu0 0
  %159 = vmatpush1.bf16.msra.mxu0 %v114
  %160 = vmatprep.subr.bf16.mxu0 0
  %161 = vmatpush2.bf16.msra.mxu0 0
  %162 = vmatprep.subr.bf16.mxu0 0
  %163 = vmatpush2.bf16.msra.mxu0 0
  %164 = vmatprep.subr.bf16.mxu0 0
  %165 = vmatpush2.bf16.msra.mxu0 0
  %166 = vmatprep.subr.bf16.mxu0 0
  %167 = vmatpush2.bf16.msra.mxu0 0
  %168 = vmatprep.subr.bf16.mxu0 0
  %169 = vmatpush2.bf16.msra.mxu0 0
  %170 = vmatprep.subr.bf16.mxu0 0
  %171 = vmatpush2.bf16.msra.mxu0 0
  %172 = vmatprep.subr.bf16.mxu0 0
  %173 = vmatpush2.bf16.msra.mxu0 0
  %174 = vmatprep.subr.bf16.mxu0 0
  %175 = vmatpush2.bf16.msra.mxu0 0
  %176 = vmatprep.mubr.bf16.mxu0 0
  %177 = vmatmul.mubr.bf16.gmra.mxu0 %v123
  %v178 = vpop.f32.mrf.mxu0
  %v179 = vadd.f32 %v58, %v178
  %v180 = vpop.f32.mrf.mxu0
  %v181 = vpop.f32.mrf.mxu0
  %v182 = vadd.f32 %v59, %v181
  %v183 = vpop.f32.mrf.mxu0
  %184 = vmatprep.mubr.bf16.mxu0 0
  %185 = vmatmul.mubr.bf16.gmra.mxu0 %v126
  %v186 = vpop.f32.mrf.mxu0
  %v187 = vadd.f32 %v60, %v186
  %v188 = vpop.f32.mrf.mxu0
  %v189 = vpop.f32.mrf.mxu0
  %v190 = vadd.f32 %v61, %v189
  %v191 = vpop.f32.mrf.mxu0
  %192 = vmatprep.mubr.bf16.mxu0 0
  %193 = vmatmul.mubr.bf16.gmra.mxu0 %v129
  %v194 = vpop.f32.mrf.mxu0
  %v195 = vadd.f32 %v62, %v194
  %v196 = vpop.f32.mrf.mxu0
  %v197 = vpop.f32.mrf.mxu0
  %v198 = vadd.f32 %v63, %v197
  %v199 = vpop.f32.mrf.mxu0
  %200 = vmatprep.mubr.bf16.mxu0 0
  %201 = vmatmul.mubr.bf16.gmra.mxu0 %v132
  %v202 = vpop.f32.mrf.mxu0
  %v203 = vadd.f32 %v64, %v202
  %v204 = vpop.f32.mrf.mxu0
  %v205 = vpop.f32.mrf.mxu0
  %v206 = vadd.f32 %v65, %v205
  %v207 = vpop.f32.mrf.mxu0
  %208 = vmatprep.mubr.bf16.mxu0 0
  %209 = vmatmul.mubr.bf16.gmra.mxu0 %v135
  %v210 = vpop.f32.mrf.mxu0
  %v211 = vadd.f32 %v66, %v210
  %v212 = vpop.f32.mrf.mxu0
  %v213 = vpop.f32.mrf.mxu0
  %v214 = vadd.f32 %v67, %v213
  %v215 = vpop.f32.mrf.mxu0
  %216 = vmatprep.mubr.bf16.mxu0 0
  %217 = vmatmul.mubr.bf16.gmra.mxu0 %v138
  %v218 = vpop.f32.mrf.mxu0
  %v219 = vadd.f32 %v68, %v218
  %v220 = vpop.f32.mrf.mxu0
  %v221 = vpop.f32.mrf.mxu0
  %v222 = vadd.f32 %v69, %v221
  %v223 = vpop.f32.mrf.mxu0
  %224 = vdwg.mxu0
  %v225 = vpack.c.bf16 %v182, %v179
  %v226 = vpack.c.bf16 %v190, %v187
  %v227 = vpack.c.bf16 %v198, %v195
  %v228 = vpack.c.bf16 %v206, %v203
  %v229 = vpack.c.bf16 %v214, %v211
  %v230 = vpack.c.bf16 %v222, %v219
  %v231 = vld [vmem:[%s3] sm:$0xf]
  %v232 = vld [vmem:[%s3 + $0x4] sm:$0xf]
  %v233 = vld [vmem:[%s3 + $0x8] sm:$0xf]
  %v234 = vld [vmem:[%s3 + $0xc] sm:$0xf]
  %v235 = vld [vmem:[%s3 + $0x10] sm:$0xf]
  %v236 = vld [vmem:[%s3 + $0x14] sm:$0xf]
  %v237 = vld [vmem:[%s3 + $0x18] sm:$0xf]
  %v238 = vld [vmem:[%s3 + $0x1c] sm:$0xf]
  %v239 = vld [vmem:[%s3 + $0x20] sm:$0xf]
  %v240 = vld [vmem:[%s3 + $0x24] sm:$0xf]
  %v241 = vld [vmem:[%s3 + $0x28] sm:$0xf]
  %v242 = vld [vmem:[%s3 + $0x2c] sm:$0xf]
  %v243 = vld [vmem:[%s3 + $0x30] sm:$0xf]
  %v244 = vld [vmem:[%s3 + $0x34] sm:$0xf]
  %v245 = vld [vmem:[%s3 + $0x38] sm:$0xf]
  %v246 = vld [vmem:[%s3 + $0x3c] sm:$0xf]
  %v247 = vld [vmem:[%s4] sm:$0x1]
  %v249 = vlaneseq
  %v250 = vshrl.u32 %v249, 7
  %v251 = vsub.s32 0, %v250
  %v252 = vrot.slane %v247, %v251
  %v270 = vunpack.c.l.b16 %v231
  %v271 = vunpack.c.l.b16 %v232
  %v272 = vunpack.c.l.b16 %v233
  %v273 = vunpack.c.l.b16 %v234
  %v274 = vunpack.c.l.b16 %v235
  %v275 = vunpack.c.l.b16 %v236
  %v276 = vunpack.c.l.b16 %v237
  %v277 = vunpack.c.l.b16 %v238
  %v278 = vunpack.c.l.b16 %v239
  %v279 = vunpack.c.l.b16 %v240
  %v280 = vunpack.c.l.b16 %v241
  %v281 = vunpack.c.l.b16 %v242
  %v282 = vunpack.c.l.b16 %v243
  %v283 = vunpack.c.l.b16 %v244
  %v284 = vunpack.c.l.b16 %v245
  %v285 = vunpack.c.l.b16 %v246
  %v286 = vpack.c.b16 %v271, %v270
  %v287 = vpack.c.b16 %v273, %v272
  %v288 = vpack.c.b16 %v275, %v274
  %v289 = vpack.c.b16 %v277, %v276
  %v290 = vpack.c.b16 %v279, %v278
  %v291 = vpack.c.b16 %v281, %v280
  %v292 = vpack.c.b16 %v283, %v282
  %v293 = vpack.c.b16 %v285, %v284
  %302 = vmatprep.subr.bf16.mxu0 0
  %303 = vmatpush1.bf16.msra.mxu0 %v293
  %304 = vmatprep.subr.bf16.mxu0 0
  %305 = vmatpush1.bf16.msra.mxu0 %v292
  %306 = vmatprep.subr.bf16.mxu0 0
  %307 = vmatpush1.bf16.msra.mxu0 %v291
  %308 = vmatprep.subr.bf16.mxu0 0
  %309 = vmatpush1.bf16.msra.mxu0 %v290
  %310 = vmatprep.subr.bf16.mxu0 0
  %311 = vmatpush1.bf16.msra.mxu0 %v289
  %312 = vmatprep.subr.bf16.mxu0 0
  %313 = vmatpush1.bf16.msra.mxu0 %v288
  %314 = vmatprep.subr.bf16.mxu0 0
  %315 = vmatpush1.bf16.msra.mxu0 %v287
  %316 = vmatprep.subr.bf16.mxu0 0
  %317 = vmatpush1.bf16.msra.mxu0 %v286
  %318 = vmatprep.subr.bf16.mxu0 0
  %319 = vmatpush2.bf16.msra.mxu0 0
  %320 = vmatprep.subr.bf16.mxu0 0
  %321 = vmatpush2.bf16.msra.mxu0 0
  %322 = vmatprep.subr.bf16.mxu0 0
  %323 = vmatpush2.bf16.msra.mxu0 0
  %324 = vmatprep.subr.bf16.mxu0 0
  %325 = vmatpush2.bf16.msra.mxu0 0
  %326 = vmatprep.subr.bf16.mxu0 0
  %327 = vmatpush2.bf16.msra.mxu0 0
  %328 = vmatprep.subr.bf16.mxu0 0
  %329 = vmatpush2.bf16.msra.mxu0 0
  %330 = vmatprep.subr.bf16.mxu0 0
  %331 = vmatpush2.bf16.msra.mxu0 0
  %332 = vmatprep.subr.bf16.mxu0 0
  %333 = vmatpush2.bf16.msra.mxu0 0
  %334 = vmatprep.mubr.bf16.mxu0 0
  %335 = vmatmul.mubr.bf16.gmra.mxu0 %v225
  %v336 = vpop.f32.mrf.mxu0
  %v337 = vadd.f32 %v252, %v336
  %v338 = vpop.f32.mrf.mxu0
  %v339 = vpop.f32.mrf.mxu0
  %v340 = vadd.f32 %v252, %v339
  %v341 = vpop.f32.mrf.mxu0
  %342 = vmatprep.mubr.bf16.mxu0 0
  %343 = vmatmul.mubr.bf16.gmra.mxu0 %v226
  %v344 = vpop.f32.mrf.mxu0
  %v345 = vadd.f32 %v252, %v344
  %v346 = vpop.f32.mrf.mxu0
  %v347 = vpop.f32.mrf.mxu0
  %v348 = vadd.f32 %v252, %v347
  %v349 = vpop.f32.mrf.mxu0
  %350 = vmatprep.mubr.bf16.mxu0 0
  %351 = vmatmul.mubr.bf16.gmra.mxu0 %v227
  %v352 = vpop.f32.mrf.mxu0
  %v353 = vadd.f32 %v252, %v352
  %v354 = vpop.f32.mrf.mxu0
  %v355 = vpop.f32.mrf.mxu0
  %v356 = vadd.f32 %v252, %v355
  %v357 = vpop.f32.mrf.mxu0
  %358 = vmatprep.mubr.bf16.mxu0 0
  %359 = vmatmul.mubr.bf16.gmra.mxu0 %v228
  %v360 = vpop.f32.mrf.mxu0
  %v361 = vadd.f32 %v252, %v360
  %v362 = vpop.f32.mrf.mxu0
  %v363 = vpop.f32.mrf.mxu0
  %v364 = vadd.f32 %v252, %v363
  %v365 = vpop.f32.mrf.mxu0
  %366 = vmatprep.mubr.bf16.mxu0 0
  %367 = vmatmul.mubr.bf16.gmra.mxu0 %v229
  %v368 = vpop.f32.mrf.mxu0
  %v369 = vadd.f32 %v252, %v368
  %v370 = vpop.f32.mrf.mxu0
  %v371 = vpop.f32.mrf.mxu0
  %v372 = vadd.f32 %v252, %v371
  %v373 = vpop.f32.mrf.mxu0
  %374 = vmatprep.mubr.bf16.mxu0 0
  %375 = vmatmul.mubr.bf16.gmra.mxu0 %v230
  %v376 = vpop.f32.mrf.mxu0
  %v377 = vadd.f32 %v252, %v376
  %v378 = vpop.f32.mrf.mxu0
  %v379 = vpop.f32.mrf.mxu0
  %v380 = vadd.f32 %v252, %v379
  %v381 = vpop.f32.mrf.mxu0
  %382 = vdwg.mxu0
  %v383 = vmul.f32 %v337, 0.5
  %v384 = vmul.f32 %v340, 0.5
  %v385 = vmul.f32 %v345, 0.5
  %v386 = vmul.f32 %v348, 0.5
  %v387 = vmul.f32 %v353, 0.5
  %v388 = vmul.f32 %v356, 0.5
  %v389 = vmul.f32 %v361, 0.5
  %v390 = vmul.f32 %v364, 0.5
  %v391 = vmul.f32 %v369, 0.5
  %v392 = vmul.f32 %v372, 0.5
  %v393 = vmul.f32 %v377, 0.5
  %v394 = vmul.f32 %v380, 0.5
  %v395 = vmul.f32 %v337, %v337
  %v396 = vmul.f32 %v340, %v340
  %v397 = vmul.f32 %v345, %v345
  %v398 = vmul.f32 %v348, %v348
  %v399 = vmul.f32 %v353, %v353
  %v400 = vmul.f32 %v356, %v356
  %v401 = vmul.f32 %v361, %v361
  %v402 = vmul.f32 %v364, %v364
  %v403 = vmul.f32 %v369, %v369
  %v404 = vmul.f32 %v372, %v372
  %v405 = vmul.f32 %v377, %v377
  %v406 = vmul.f32 %v380, %v380
  %v407 = vmul.f32 %v395, %v337
  %v408 = vmul.f32 %v396, %v340
  %v409 = vmul.f32 %v397, %v345
  %v410 = vmul.f32 %v398, %v348
  %v411 = vmul.f32 %v399, %v353
  %v412 = vmul.f32 %v400, %v356
  %v413 = vmul.f32 %v401, %v361
  %v414 = vmul.f32 %v402, %v364
  %v415 = vmul.f32 %v403, %v369
  %v416 = vmul.f32 %v404, %v372
  %v417 = vmul.f32 %v405, %v377
  %v418 = vmul.f32 %v406, %v380
  %v419 = vmul.f32 %v407, 0.044715
  %v420 = vmul.f32 %v408, 0.044715
  %v421 = vmul.f32 %v409, 0.044715
  %v422 = vmul.f32 %v410, 0.044715
  %v423 = vmul.f32 %v411, 0.044715
  %v424 = vmul.f32 %v412, 0.044715
  %v425 = vmul.f32 %v413, 0.044715
  %v426 = vmul.f32 %v414, 0.044715
  %v427 = vmul.f32 %v415, 0.044715
  %v428 = vmul.f32 %v416, 0.044715
  %v429 = vmul.f32 %v417, 0.044715
  %v430 = vmul.f32 %v418, 0.044715
  %v431 = vadd.f32 %v337, %v419
  %v432 = vadd.f32 %v340, %v420
  %v433 = vadd.f32 %v345, %v421
  %v434 = vadd.f32 %v348, %v422
  %v435 = vadd.f32 %v353, %v423
  %v436 = vadd.f32 %v356, %v424
  %v437 = vadd.f32 %v361, %v425
  %v438 = vadd.f32 %v364, %v426
  %v439 = vadd.f32 %v369, %v427
  %v440 = vadd.f32 %v372, %v428
  %v441 = vadd.f32 %v377, %v429
  %v442 = vadd.f32 %v380, %v430
  %v443 = vmul.f32 %v431, 0.7978846
  %v444 = vmul.f32 %v432, 0.7978846
  %v445 = vmul.f32 %v433, 0.7978846
  %v446 = vmul.f32 %v434, 0.7978846
  %v447 = vmul.f32 %v435, 0.7978846
  %v448 = vmul.f32 %v436, 0.7978846
  %v449 = vmul.f32 %v437, 0.7978846
  %v450 = vmul.f32 %v438, 0.7978846
  %v451 = vmul.f32 %v439, 0.7978846
  %v452 = vmul.f32 %v440, 0.7978846
  %v453 = vmul.f32 %v441, 0.7978846
  %v454 = vmul.f32 %v442, 0.7978846
  %v455 = vtanh.pop %v443
  %v456 = vtanh.pop %v444
  %v457 = vtanh.pop %v445
  %v458 = vtanh.pop %v446
  %v459 = vtanh.pop %v447
  %v460 = vtanh.pop %v448
  %v461 = vtanh.pop %v449
  %v462 = vtanh.pop %v450
  %v463 = vtanh.pop %v451
  %v464 = vtanh.pop %v452
  %v465 = vtanh.pop %v453
  %v466 = vtanh.pop %v454
  %v467 = vadd.f32 %v455, 1.0
  %v468 = vadd.f32 %v456, 1.0
  %v469 = vadd.f32 %v457, 1.0
  %v470 = vadd.f32 %v458, 1.0
  %v471 = vadd.f32 %v459, 1.0
  %v472 = vadd.f32 %v460, 1.0
  %v473 = vadd.f32 %v461, 1.0
  %v474 = vadd.f32 %v462, 1.0
  %v475 = vadd.f32 %v463, 1.0
  %v476 = vadd.f32 %v464, 1.0
  %v477 = vadd.f32 %v465, 1.0
  %v478 = vadd.f32 %v466, 1.0
  %v479 = vmul.f32 %v383, %v467
  %v480 = vmul.f32 %v384, %v468
  %v481 = vmul.f32 %v385, %v469
  %v482 = vmul.f32 %v386, %v470
  %v483 = vmul.f32 %v387, %v471
  %v484 = vmul.f32 %v388, %v472
  %v485 = vmul.f32 %v389, %v473
  %v486 = vmul.f32 %v390, %v474
  %v487 = vmul.f32 %v391, %v475
  %v488 = vmul.f32 %v392, %v476
  %v489 = vmul.f32 %v393, %v477
  %v490 = vmul.f32 %v394, %v478
  %v491 = vpack.c.bf16 %v480, %v479
  %v492 = vpack.c.bf16 %v482, %v481
  %v493 = vpack.c.bf16 %v484, %v483
  %v494 = vpack.c.bf16 %v486, %v485
  %v495 = vpack.c.bf16 %v488, %v487
  %v496 = vpack.c.bf16 %v490, %v489
  %v497 = vld [vmem:[%s5] sm:$0xf]
  %v498 = vld [vmem:[%s5 + $0x4] sm:$0xf]
  %v499 = vld [vmem:[%s5 + $0x8] sm:$0xf]
  %v500 = vld [vmem:[%s5 + $0xc] sm:$0xf]
  %v501 = vld [vmem:[%s5 + $0x10] sm:$0xf]
  %v502 = vld [vmem:[%s5 + $0x14] sm:$0xf]
  %v503 = vld [vmem:[%s5 + $0x18] sm:$0xf]
  %v504 = vld [vmem:[%s5 + $0x1c] sm:$0xf]
  %v505 = vld [vmem:[%s5 + $0x20] sm:$0xf]
  %v506 = vld [vmem:[%s5 + $0x24] sm:$0xf]
  %v507 = vld [vmem:[%s5 + $0x28] sm:$0xf]
  %v508 = vld [vmem:[%s5 + $0x2c] sm:$0xf]
  %v509 = vld [vmem:[%s5 + $0x30] sm:$0xf]
  %v510 = vld [vmem:[%s5 + $0x34] sm:$0xf]
  %v511 = vld [vmem:[%s5 + $0x38] sm:$0xf]
  %v512 = vld [vmem:[%s5 + $0x3c] sm:$0xf]
  %v513 = vld [vmem:[%s6] sm:$0x1]
  %v515 = vlaneseq
  %v516 = vshrl.u32 %v515, 7
  %v517 = vsub.s32 0, %v516
  %v518 = vrot.slane %v513, %v517
  %v536 = vunpack.c.l.b16 %v497
  %v537 = vunpack.c.l.b16 %v498
  %v538 = vunpack.c.l.b16 %v499
  %v539 = vunpack.c.l.b16 %v500
  %v540 = vunpack.c.l.b16 %v501
  %v541 = vunpack.c.l.b16 %v502
  %v542 = vunpack.c.l.b16 %v503
  %v543 = vunpack.c.l.b16 %v504
  %v544 = vunpack.c.l.b16 %v505
  %v545 = vunpack.c.l.b16 %v506
  %v546 = vunpack.c.l.b16 %v507
  %v547 = vunpack.c.l.b16 %v508
  %v548 = vunpack.c.l.b16 %v509
  %v549 = vunpack.c.l.b16 %v510
  %v550 = vunpack.c.l.b16 %v511
  %v551 = vunpack.c.l.b16 %v512
  %v552 = vpack.c.b16 %v537, %v536
  %v553 = vpack.c.b16 %v539, %v538
  %v554 = vpack.c.b16 %v541, %v540
  %v555 = vpack.c.b16 %v543, %v542
  %v556 = vpack.c.b16 %v545, %v544
  %v557 = vpack.c.b16 %v547, %v546
  %v558 = vpack.c.b16 %v549, %v548
  %v559 = vpack.c.b16 %v551, %v550
  %568 = vmatprep.subr.bf16.mxu0 0
  %569 = vmatpush1.bf16.msra.mxu0 %v559
  %570 = vmatprep.subr.bf16.mxu0 0
  %571 = vmatpush1.bf16.msra.mxu0 %v558
  %572 = vmatprep.subr.bf16.mxu0 0
  %573 = vmatpush1.bf16.msra.mxu0 %v557
  %574 = vmatprep.subr.bf16.mxu0 0
  %575 = vmatpush1.bf16.msra.mxu0 %v556
  %576 = vmatprep.subr.bf16.mxu0 0
  %577 = vmatpush1.bf16.msra.mxu0 %v555
  %578 = vmatprep.subr.bf16.mxu0 0
  %579 = vmatpush1.bf16.msra.mxu0 %v554
  %580 = vmatprep.subr.bf16.mxu0 0
  %581 = vmatpush1.bf16.msra.mxu0 %v553
  %582 = vmatprep.subr.bf16.mxu0 0
  %583 = vmatpush1.bf16.msra.mxu0 %v552
  %584 = vmatprep.subr.bf16.mxu0 0
  %585 = vmatpush2.bf16.msra.mxu0 0
  %586 = vmatprep.subr.bf16.mxu0 0
  %587 = vmatpush2.bf16.msra.mxu0 0
  %588 = vmatprep.subr.bf16.mxu0 0
  %589 = vmatpush2.bf16.msra.mxu0 0
  %590 = vmatprep.subr.bf16.mxu0 0
  %591 = vmatpush2.bf16.msra.mxu0 0
  %592 = vmatprep.subr.bf16.mxu0 0
  %593 = vmatpush2.bf16.msra.mxu0 0
  %594 = vmatprep.subr.bf16.mxu0 0
  %595 = vmatpush2.bf16.msra.mxu0 0
  %596 = vmatprep.subr.bf16.mxu0 0
  %597 = vmatpush2.bf16.msra.mxu0 0
  %598 = vmatprep.subr.bf16.mxu0 0
  %599 = vmatpush2.bf16.msra.mxu0 0
  %600 = vmatprep.mubr.bf16.mxu0 0
  %601 = vmatmul.mubr.bf16.gmra.mxu0 %v491
  %v602 = vpop.f32.mrf.mxu0
  %v603 = vadd.f32 %v518, %v602
  %v604 = vpop.f32.mrf.mxu0
  %v605 = vpop.f32.mrf.mxu0
  %v606 = vadd.f32 %v518, %v605
  %v607 = vpop.f32.mrf.mxu0
  %608 = vmatprep.mubr.bf16.mxu0 0
  %609 = vmatmul.mubr.bf16.gmra.mxu0 %v492
  %v610 = vpop.f32.mrf.mxu0
  %v611 = vadd.f32 %v518, %v610
  %v612 = vpop.f32.mrf.mxu0
  %v613 = vpop.f32.mrf.mxu0
  %v614 = vadd.f32 %v518, %v613
  %v615 = vpop.f32.mrf.mxu0
  %616 = vmatprep.mubr.bf16.mxu0 0
  %617 = vmatmul.mubr.bf16.gmra.mxu0 %v493
  %v618 = vpop.f32.mrf.mxu0
  %v619 = vadd.f32 %v518, %v618
  %v620 = vpop.f32.mrf.mxu0
  %v621 = vpop.f32.mrf.mxu0
  %v622 = vadd.f32 %v518, %v621
  %v623 = vpop.f32.mrf.mxu0
  %624 = vmatprep.mubr.bf16.mxu0 0
  %625 = vmatmul.mubr.bf16.gmra.mxu0 %v494
  %v626 = vpop.f32.mrf.mxu0
  %v627 = vadd.f32 %v518, %v626
  %v628 = vpop.f32.mrf.mxu0
  %v629 = vpop.f32.mrf.mxu0
  %v630 = vadd.f32 %v518, %v629
  %v631 = vpop.f32.mrf.mxu0
  %632 = vmatprep.mubr.bf16.mxu0 0
  %633 = vmatmul.mubr.bf16.gmra.mxu0 %v495
  %v634 = vpop.f32.mrf.mxu0
  %v635 = vadd.f32 %v518, %v634
  %v636 = vpop.f32.mrf.mxu0
  %v637 = vpop.f32.mrf.mxu0
  %v638 = vadd.f32 %v518, %v637
  %v639 = vpop.f32.mrf.mxu0
  %640 = vmatprep.mubr.bf16.mxu0 0
  %641 = vmatmul.mubr.bf16.gmra.mxu0 %v496
  %v642 = vpop.f32.mrf.mxu0
  %v643 = vadd.f32 %v518, %v642
  %v644 = vpop.f32.mrf.mxu0
  %v645 = vpop.f32.mrf.mxu0
  %v646 = vadd.f32 %v518, %v645
  %v647 = vpop.f32.mrf.mxu0
  %648 = vdwg.mxu0
  %v649 = vadd.f32 %v179, %v603
  %v650 = vadd.f32 %v182, %v606
  %v651 = vadd.f32 %v187, %v611
  %v652 = vadd.f32 %v190, %v614
  %v653 = vadd.f32 %v195, %v619
  %v654 = vadd.f32 %v198, %v622
  %v655 = vadd.f32 %v203, %v627
  %v656 = vadd.f32 %v206, %v630
  %v657 = vadd.f32 %v211, %v635
  %v658 = vadd.f32 %v214, %v638
  %v659 = vadd.f32 %v219, %v643
  %v660 = vadd.f32 %v222, %v646
  %661 = vst [vmem:[%s7] sm:$0xff] %v649
  %662 = vst [vmem:[%s7 + $0x8] sm:$0xff] %v650
  %663 = vst [vmem:[%s7 + $0x10] sm:$0xff] %v651
  %664 = vst [vmem:[%s7 + $0x18] sm:$0xff] %v652
  %665 = vst [vmem:[%s7 + $0x20] sm:$0xff] %v653
  %666 = vst [vmem:[%s7 + $0x28] sm:$0xff] %v654
  %667 = vst [vmem:[%s7 + $0x30] sm:$0xff] %v655
  %668 = vst [vmem:[%s7 + $0x38] sm:$0xff] %v656
  %669 = vst [vmem:[%s7 + $0x40] sm:$0xff] %v657
  %670 = vst [vmem:[%s7 + $0x48] sm:$0xff] %v658
  %671 = vst [vmem:[%s7 + $0x50] sm:$0xff] %v659
  %672 = vst [vmem:[%s7 + $0x58] sm:$0xff] %v660
  // Predicated region
  $region30: #{basic_block_forward.14} parent=0 // pred_check
    _
  $region31: #{basic_block_forward.14} parent=0 // pred_check_branch
    %674 = sbr.rel (0) target = $region33
  $region32: #{basic_block_forward.14} parent=0 // pred_region
    _
  $region33: #{basic_block_forward.14} parent=0 // pred_fallthru
    _
  // Predicated region
  $region34: #{basic_block_forward.14} parent=0 // pred_check
    _
  $region35: #{basic_block_forward.14} parent=0 // pred_check_branch
    %676 = sbr.rel (0) target = $region37
  $region36: #{basic_block_forward.14} parent=0 // pred_region
    _
  $region37: #{basic_block_forward.14} parent=0 // pred_fallthru
    _

</llo_original>
